<compile_context>
chip_gen: v5e
topology: v5e:2x2
jax: 0.10.0
libtpu: 0.0.40
codegen_flags: <defaults>
</compile_context>

<pallas_src>
import functools

import jax
import jax.numpy as jnp
from jax.experimental import pallas as pl
from jax.experimental.pallas import tpu as pltpu

OUTPUTS_A = 8
OUT_PAD = 128          # lane-dense padded output width
TAB_PAD = 8            # padded feature width of tab (only 3 columns are real)
TILE_B = 512           # batch tile (multiple of 256, fits every VMEM budget)


def mlp_kernel(tab_ref,
               w2_ref, b2_ref,
               w3_ref, b3_ref,
               w4_ref, b4_ref,
               w5_ref, b5_ref,
               w6_ref, b6_ref,
               out_ref):
    """One batch tile of the MLP: 4 MXU matmuls (bf16 in, f32 acc) + VPU layer-2."""
    tab = tab_ref[...].astype(jnp.float32)            # (TILE_B, TAB_PAD), cols 0..2 real
    w2 = w2_ref[...]                                  # (3, 256) f32

    # ---- linear2 (in=3) on the VPU: broadcast-FMA, avoids a K=3 MXU matmul ----
    h = (b2_ref[...]
         + tab[:, 0:1] * w2[0:1, :]
         + tab[:, 1:2] * w2[1:2, :]
         + tab[:, 2:3] * w2[2:3, :])                  # (TILE_B, 256) f32
    h = jnp.maximum(h, 0.0)

    # ---- linear3 + relu : (TILE_B,256) @ (256,256), bf16 operands, f32 acc ----
    h = jnp.dot(h.astype(jnp.bfloat16), w3_ref[...],
                preferred_element_type=jnp.float32) + b3_ref[...]
    h = jnp.maximum(h, 0.0)

    # ---- linear4 + relu : (TILE_B,256) @ (256,128) ----
    h = jnp.dot(h.astype(jnp.bfloat16), w4_ref[...],
                preferred_element_type=jnp.float32) + b4_ref[...]
    h = jnp.maximum(h, 0.0)

    # ---- linear5 + relu : (TILE_B,128) @ (128,64) ----
    h = jnp.dot(h.astype(jnp.bfloat16), w5_ref[...],
                preferred_element_type=jnp.float32) + b5_ref[...]
    h = jnp.maximum(h, 0.0)

    # ---- linear6 (no activation), padded to 128 lane-dense outputs ----
    h = jnp.dot(h.astype(jnp.bfloat16), w6_ref[...],
                preferred_element_type=jnp.float32) + b6_ref[...]

    out_ref[...] = h.astype(out_ref.dtype)            # (TILE_B, 128)


@functools.partial(jax.jit, static_argnames=("tile_b",))
def mlp_forward(x, tab, params, *, tile_b=TILE_B):
    """Forward pass matching the PyTorch MLP. `x` is accepted but unused
    (exactly like the PyTorch module's forward)."""
    del x  # unused by MLP.forward
    (w2, b2), (w3, b3), (w4, b4), (w5, b5), (w6, b6) = params

    B = tab.shape[0]
    n_tiles = pl.cdiv(B, tile_b)
    b_pad = n_tiles * tile_b

    # Host-side layout fixes (done once per call, outside the kernel):
    #  * pad batch to a multiple of tile_b,
    #  * pad tab features 3 -> TAB_PAD (rows become >= 32 B),
    #  * pad W6/b6 outputs OUTPUTS_A -> 128 (lane-dense stores),
    #  * cast MXU weights to bf16 (layer-2 stays f32: it runs on the VPU).
    tab_p = jnp.zeros((b_pad, TAB_PAD), jnp.float32).at[:B, :3].set(
        tab.astype(jnp.float32))
    w6_p = jnp.zeros((w6.shape[0], OUT_PAD), jnp.float32).at[:, :OUTPUTS_A].set(w6)
    b6_p = jnp.zeros((1, OUT_PAD), jnp.float32).at[:, :OUTPUTS_A].set(b6)

    w3b, w4b, w5b, w6b = (w3.astype(jnp.bfloat16), w4.astype(jnp.bfloat16),
                          w5.astype(jnp.bfloat16), w6_p.astype(jnp.bfloat16))

    def const_spec(shape):
        # Weights / biases: same block every grid step -> fetched once, VMEM-resident.
        return pl.BlockSpec(shape, lambda i: (0, 0))

    out = pl.pallas_call(
        mlp_kernel,
        out_shape=jax.ShapeDtypeStruct((b_pad, OUT_PAD), jnp.float32),
        grid=(n_tiles,),
        in_specs=[
            pl.BlockSpec((tile_b, TAB_PAD), lambda i: (i, 0)),   # tab (pipelined)
            const_spec(w2.shape), const_spec(b2.shape),          # linear2 (f32, VPU)
            const_spec(w3b.shape), const_spec(b3.shape),         # linear3
            const_spec(w4b.shape), const_spec(b4.shape),         # linear4
            const_spec(w5b.shape), const_spec(b5.shape),         # linear5
            const_spec(w6b.shape), const_spec(b6_p.shape),       # linear6 (padded)
        ],
        out_specs=pl.BlockSpec((tile_b, OUT_PAD), lambda i: (i, 0)),
        compiler_params=pltpu.CompilerParams(
            dimension_semantics=("parallel",),
            vmem_limit_bytes=32 * 1024 * 1024,
        ),
    )(tab_p, w2, b2, w3b, b3, w4b, b4, w5b, b5, w6b, b6_p)

    return out[:B, :OUTPUTS_A]


def init_linear(key, fan_in, fan_out):
    """Deterministic init mimicking torch.nn.Linear default (U[-1/sqrt(fan_in), ...])."""
    kw, kb = jax.random.split(key)
    bound = 1.0 / jnp.sqrt(jnp.float32(fan_in))
    w = jax.random.uniform(kw, (fan_in, fan_out), jnp.float32, -bound, bound)
    b = jax.random.uniform(kb, (1, fan_out), jnp.float32, -bound, bound)
    return w, b


def init_params(key):
    keys = jax.random.split(key, 5)
    return (
        init_linear(keys[0], 3, 256),          # linear2
        init_linear(keys[1], 256, 256),        # linear3
        init_linear(keys[2], 256, 128),        # linear4
        init_linear(keys[3], 128, 64),         # linear5
        init_linear(keys[4], 64, OUTPUTS_A),   # linear6
    )


def mlp_reference(tab, params):
    """Pure-JAX f32 reference (matches the PyTorch forward)."""
    h = tab
    for i, (w, b) in enumerate(params):
        h = h @ w + b
        if i < len(params) - 1:
            h = jnp.maximum(h, 0.0)
    return h


if __name__ == "__main__":
    key = jax.random.PRNGKey(0)
    k_params, k_x, k_tab = jax.random.split(key, 3)

    params = init_params(k_params)

    B = 8
    x = jax.random.normal(k_x, (B, 16), jnp.float32)    # unused by forward (as in PyTorch)
    tab = jax.random.normal(k_tab, (B, 3), jnp.float32)

    out = mlp_forward(x, tab, params)
    out = jax.block_until_ready(out)

    ref = mlp_reference(tab, params)
    assert out.shape == (B, OUTPUTS_A), out.shape
    # bf16 MXU operands vs f32 reference: loosen tolerance accordingly.
    assert jnp.allclose(out, ref, atol=5e-2, rtol=5e-2), float(
        jnp.max(jnp.abs(out - ref)))

    print("KERNEL_OK")
</pallas_src>

<mosaic_0001>
module attributes {stable_mosaic.version = 11 : i64} {
  func.func @mlp_kernel(%arg0: i32, %arg1: memref<512x8xf32, #tpu.memory_space<vmem>>, %arg2: memref<3x256xf32, #tpu.memory_space<vmem>>, %arg3: memref<1x256xf32, #tpu.memory_space<vmem>>, %arg4: memref<256x256xbf16, #tpu.memory_space<vmem>>, %arg5: memref<1x256xf32, #tpu.memory_space<vmem>>, %arg6: memref<256x128xbf16, #tpu.memory_space<vmem>>, %arg7: memref<1x128xf32, #tpu.memory_space<vmem>>, %arg8: memref<128x64xbf16, #tpu.memory_space<vmem>>, %arg9: memref<1x64xf32, #tpu.memory_space<vmem>>, %arg10: memref<64x128xbf16, #tpu.memory_space<vmem>>, %arg11: memref<1x128xf32, #tpu.memory_space<vmem>>, %arg12: memref<512x128xf32, #tpu.memory_space<vmem>>) attributes {dimension_semantics = [#tpu.dimension_semantics<parallel>], iteration_bounds = array<i64: 1>, scalar_prefetch = 0 : i64, scratch_operands = 0 : i64, tpu.core_type = #tpu.core_type<tc>, window_params = [{transform_indices = @transform_0, window_bounds = array<i64: 512, 8>}, {pipeline_mode = #tpu.pipeline_mode<synchronous>, transform_indices = @transform_1, window_bounds = array<i64: 3, 256>}, {pipeline_mode = #tpu.pipeline_mode<synchronous>, transform_indices = @transform_2, window_bounds = array<i64: 1, 256>}, {pipeline_mode = #tpu.pipeline_mode<synchronous>, transform_indices = @transform_3, window_bounds = array<i64: 256, 256>}, {pipeline_mode = #tpu.pipeline_mode<synchronous>, transform_indices = @transform_4, window_bounds = array<i64: 1, 256>}, {pipeline_mode = #tpu.pipeline_mode<synchronous>, transform_indices = @transform_5, window_bounds = array<i64: 256, 128>}, {pipeline_mode = #tpu.pipeline_mode<synchronous>, transform_indices = @transform_6, window_bounds = array<i64: 1, 128>}, {pipeline_mode = #tpu.pipeline_mode<synchronous>, transform_indices = @transform_7, window_bounds = array<i64: 128, 64>}, {pipeline_mode = #tpu.pipeline_mode<synchronous>, transform_indices = @transform_8, window_bounds = array<i64: 1, 64>}, {pipeline_mode = #tpu.pipeline_mode<synchronous>, transform_indices = @transform_9, window_bounds = array<i64: 64, 128>}, {pipeline_mode = #tpu.pipeline_mode<synchronous>, transform_indices = @transform_10, window_bounds = array<i64: 1, 128>}, {transform_indices = @transform_11, window_bounds = array<i64: 512, 128>}]} {
    %c0 = arith.constant 0 : index
    %c0_0 = arith.constant 0 : index
    %0 = vector.load %arg1[%c0, %c0_0] : memref<512x8xf32, #tpu.memory_space<vmem>>, vector<512x8xf32>
    %c0_1 = arith.constant 0 : index
    %c0_2 = arith.constant 0 : index
    %1 = vector.load %arg2[%c0_1, %c0_2] : memref<3x256xf32, #tpu.memory_space<vmem>>, vector<3x256xf32>
    %c0_3 = arith.constant 0 : index
    %c0_4 = arith.constant 0 : index
    %2 = vector.load %arg3[%c0_3, %c0_4] : memref<1x256xf32, #tpu.memory_space<vmem>>, vector<1x256xf32>
    %3 = vector.extract_strided_slice %0 {offsets = [0, 0], sizes = [512, 1], strides = [1, 1]} : vector<512x8xf32> to vector<512x1xf32>
    %4 = vector.extract_strided_slice %1 {offsets = [0, 0], sizes = [1, 256], strides = [1, 1]} : vector<3x256xf32> to vector<1x256xf32>
    %5 = vector.broadcast %3 : vector<512x1xf32> to vector<512x256xf32>
    %6 = vector.broadcast %4 : vector<1x256xf32> to vector<512x256xf32>
    %7 = arith.mulf %5, %6 : vector<512x256xf32>
    %8 = vector.broadcast %2 : vector<1x256xf32> to vector<512x256xf32>
    %9 = arith.addf %8, %7 : vector<512x256xf32>
    %10 = vector.extract_strided_slice %0 {offsets = [0, 1], sizes = [512, 1], strides = [1, 1]} : vector<512x8xf32> to vector<512x1xf32>
    %11 = vector.extract_strided_slice %1 {offsets = [1, 0], sizes = [1, 256], strides = [1, 1]} : vector<3x256xf32> to vector<1x256xf32>
    %12 = vector.broadcast %10 : vector<512x1xf32> to vector<512x256xf32>
    %13 = vector.broadcast %11 : vector<1x256xf32> to vector<512x256xf32>
    %14 = arith.mulf %12, %13 : vector<512x256xf32>
    %15 = arith.addf %9, %14 : vector<512x256xf32>
    %16 = vector.extract_strided_slice %0 {offsets = [0, 2], sizes = [512, 1], strides = [1, 1]} : vector<512x8xf32> to vector<512x1xf32>
    %17 = vector.extract_strided_slice %1 {offsets = [2, 0], sizes = [1, 256], strides = [1, 1]} : vector<3x256xf32> to vector<1x256xf32>
    %18 = vector.broadcast %16 : vector<512x1xf32> to vector<512x256xf32>
    %19 = vector.broadcast %17 : vector<1x256xf32> to vector<512x256xf32>
    %20 = arith.mulf %18, %19 : vector<512x256xf32>
    %21 = arith.addf %15, %20 : vector<512x256xf32>
    %cst = arith.constant 0.000000e+00 : f32
    %22 = vector.broadcast %cst : f32 to vector<512x256xf32>
    %23 = arith.maximumf %21, %22 : vector<512x256xf32>
    %24 = arith.truncf %23 : vector<512x256xf32> to vector<512x256xbf16>
    %c0_5 = arith.constant 0 : index
    %c0_6 = arith.constant 0 : index
    %25 = vector.load %arg4[%c0_5, %c0_6] : memref<256x256xbf16, #tpu.memory_space<vmem>>, vector<256x256xbf16>
    %cst_7 = arith.constant dense<0.000000e+00> : vector<512x256xf32>
    %26 = tpu.matmul %24, %25, %cst_7 {dimension_numbers = #tpu.dot_dimension_numbers<[1], [0], [0], [1], [0, 0, 1, 1], [], []>} : vector<512x256xbf16>, vector<256x256xbf16>, vector<512x256xf32> -> vector<512x256xf32>
    %c0_8 = arith.constant 0 : index
    %c0_9 = arith.constant 0 : index
    %27 = vector.load %arg5[%c0_8, %c0_9] : memref<1x256xf32, #tpu.memory_space<vmem>>, vector<1x256xf32>
    %28 = vector.broadcast %27 : vector<1x256xf32> to vector<512x256xf32>
    %29 = arith.addf %26, %28 : vector<512x256xf32>
    %cst_10 = arith.constant 0.000000e+00 : f32
    %30 = vector.broadcast %cst_10 : f32 to vector<512x256xf32>
    %31 = arith.maximumf %29, %30 : vector<512x256xf32>
    %32 = arith.truncf %31 : vector<512x256xf32> to vector<512x256xbf16>
    %c0_11 = arith.constant 0 : index
    %c0_12 = arith.constant 0 : index
    %33 = vector.load %arg6[%c0_11, %c0_12] : memref<256x128xbf16, #tpu.memory_space<vmem>>, vector<256x128xbf16>
    %cst_13 = arith.constant dense<0.000000e+00> : vector<512x128xf32>
    %34 = tpu.matmul %32, %33, %cst_13 {dimension_numbers = #tpu.dot_dimension_numbers<[1], [0], [0], [1], [0, 0, 1, 1], [], []>} : vector<512x256xbf16>, vector<256x128xbf16>, vector<512x128xf32> -> vector<512x128xf32>
    %c0_14 = arith.constant 0 : index
    %c0_15 = arith.constant 0 : index
    %35 = vector.load %arg7[%c0_14, %c0_15] : memref<1x128xf32, #tpu.memory_space<vmem>>, vector<1x128xf32>
    %36 = vector.broadcast %35 : vector<1x128xf32> to vector<512x128xf32>
    %37 = arith.addf %34, %36 : vector<512x128xf32>
    %cst_16 = arith.constant 0.000000e+00 : f32
    %38 = vector.broadcast %cst_16 : f32 to vector<512x128xf32>
    %39 = arith.maximumf %37, %38 : vector<512x128xf32>
    %40 = arith.truncf %39 : vector<512x128xf32> to vector<512x128xbf16>
    %c0_17 = arith.constant 0 : index
    %c0_18 = arith.constant 0 : index
    %41 = vector.load %arg8[%c0_17, %c0_18] : memref<128x64xbf16, #tpu.memory_space<vmem>>, vector<128x64xbf16>
    %cst_19 = arith.constant dense<0.000000e+00> : vector<512x64xf32>
    %42 = tpu.matmul %40, %41, %cst_19 {dimension_numbers = #tpu.dot_dimension_numbers<[1], [0], [0], [1], [0, 0, 1, 1], [], []>} : vector<512x128xbf16>, vector<128x64xbf16>, vector<512x64xf32> -> vector<512x64xf32>
    %c0_20 = arith.constant 0 : index
    %c0_21 = arith.constant 0 : index
    %43 = vector.load %arg9[%c0_20, %c0_21] : memref<1x64xf32, #tpu.memory_space<vmem>>, vector<1x64xf32>
    %44 = vector.broadcast %43 : vector<1x64xf32> to vector<512x64xf32>
    %45 = arith.addf %42, %44 : vector<512x64xf32>
    %cst_22 = arith.constant 0.000000e+00 : f32
    %46 = vector.broadcast %cst_22 : f32 to vector<512x64xf32>
    %47 = arith.maximumf %45, %46 : vector<512x64xf32>
    %48 = arith.truncf %47 : vector<512x64xf32> to vector<512x64xbf16>
    %c0_23 = arith.constant 0 : index
    %c0_24 = arith.constant 0 : index
    %49 = vector.load %arg10[%c0_23, %c0_24] : memref<64x128xbf16, #tpu.memory_space<vmem>>, vector<64x128xbf16>
    %cst_25 = arith.constant dense<0.000000e+00> : vector<512x128xf32>
    %50 = tpu.matmul %48, %49, %cst_25 {dimension_numbers = #tpu.dot_dimension_numbers<[1], [0], [0], [1], [0, 0, 1, 1], [], []>} : vector<512x64xbf16>, vector<64x128xbf16>, vector<512x128xf32> -> vector<512x128xf32>
    %c0_26 = arith.constant 0 : index
    %c0_27 = arith.constant 0 : index
    %51 = vector.load %arg11[%c0_26, %c0_27] : memref<1x128xf32, #tpu.memory_space<vmem>>, vector<1x128xf32>
    %52 = vector.broadcast %51 : vector<1x128xf32> to vector<512x128xf32>
    %53 = arith.addf %50, %52 : vector<512x128xf32>
    %c0_28 = arith.constant 0 : index
    %c0_29 = arith.constant 0 : index
    %54 = vector.load %arg12[%c0_28, %c0_29] : memref<512x128xf32, #tpu.memory_space<vmem>>, vector<512x128xf32>
    tpu.vector_store %arg12[%c0_28, %c0_29], %53 {strides = array<i32>} : memref<512x128xf32, #tpu.memory_space<vmem>>, vector<512x128xf32>,
    return
  }
  func.func @transform_0(%arg0: i32) -> (i32, i32) {
    %c0_i32 = arith.constant 0 : i32
    %c0_i32_0 = arith.constant 0 : i32
    return %arg0, %c0_i32 : i32, i32
  }
  func.func @transform_1(%arg0: i32) -> (i32, i32) {
    %c0_i32 = arith.constant 0 : i32
    %c0_i32_0 = arith.constant 0 : i32
    %c0_i32_1 = arith.constant 0 : i32
    return %c0_i32, %c0_i32_0 : i32, i32
  }
  func.func @transform_2(%arg0: i32) -> (i32, i32) {
    %c0_i32 = arith.constant 0 : i32
    %c0_i32_0 = arith.constant 0 : i32
    %c0_i32_1 = arith.constant 0 : i32
    return %c0_i32, %c0_i32_0 : i32, i32
  }
  func.func @transform_3(%arg0: i32) -> (i32, i32) {
    %c0_i32 = arith.constant 0 : i32
    %c0_i32_0 = arith.constant 0 : i32
    %c0_i32_1 = arith.constant 0 : i32
    return %c0_i32, %c0_i32_0 : i32, i32
  }
  func.func @transform_4(%arg0: i32) -> (i32, i32) {
    %c0_i32 = arith.constant 0 : i32
    %c0_i32_0 = arith.constant 0 : i32
    %c0_i32_1 = arith.constant 0 : i32
    return %c0_i32, %c0_i32_0 : i32, i32
  }
  func.func @transform_5(%arg0: i32) -> (i32, i32) {
    %c0_i32 = arith.constant 0 : i32
    %c0_i32_0 = arith.constant 0 : i32
    %c0_i32_1 = arith.constant 0 : i32
    return %c0_i32, %c0_i32_0 : i32, i32
  }
  func.func @transform_6(%arg0: i32) -> (i32, i32) {
    %c0_i32 = arith.constant 0 : i32
    %c0_i32_0 = arith.constant 0 : i32
    %c0_i32_1 = arith.constant 0 : i32
    return %c0_i32, %c0_i32_0 : i32, i32
  }
  func.func @transform_7(%arg0: i32) -> (i32, i32) {
    %c0_i32 = arith.constant 0 : i32
    %c0_i32_0 = arith.constant 0 : i32
    %c0_i32_1 = arith.constant 0 : i32
    return %c0_i32, %c0_i32_0 : i32, i32
  }
  func.func @transform_8(%arg0: i32) -> (i32, i32) {
    %c0_i32 = arith.constant 0 : i32
    %c0_i32_0 = arith.constant 0 : i32
    %c0_i32_1 = arith.constant 0 : i32
    return %c0_i32, %c0_i32_0 : i32, i32
  }
  func.func @transform_9(%arg0: i32) -> (i32, i32) {
    %c0_i32 = arith.constant 0 : i32
    %c0_i32_0 = arith.constant 0 : i32
    %c0_i32_1 = arith.constant 0 : i32
    return %c0_i32, %c0_i32_0 : i32, i32
  }
  func.func @transform_10(%arg0: i32) -> (i32, i32) {
    %c0_i32 = arith.constant 0 : i32
    %c0_i32_0 = arith.constant 0 : i32
    %c0_i32_1 = arith.constant 0 : i32
    return %c0_i32, %c0_i32_0 : i32, i32
  }
  func.func @transform_11(%arg0: i32) -> (i32, i32) {
    %c0_i32 = arith.constant 0 : i32
    %c0_i32_0 = arith.constant 0 : i32
    return %arg0, %c0_i32 : i32, i32
  }
}

</mosaic_0001>

<llo_original>
// kernel: mlp_forward.1
$region0: #{mlp_forward.1}
  #allocation0 [shape = 'u32[]', space=smem, size = 0x4, offset = 0x4, fixed_abs, tag = 'smem constant byte address 0x4 - core index']
  #allocation1 [shape = 'u32[72,128]{1,0:T(1,128)}', space=vmem, size = 0x9000, scoped, tag = 'internal scratch']
  %s0 = inlined_call_operand.vmem [shape: f32[512,8], index: 0, kind: input, shape index: {}]
  %s1 = inlined_call_operand.vmem [shape: f32[3,256], index: 1, kind: input, shape index: {}]
  %s2 = inlined_call_operand.vmem [shape: f32[1,256], index: 2, kind: input, shape index: {}]
  %s3 = inlined_call_operand.vmem [shape: bf16[256,256], index: 3, kind: input, shape index: {}]
  %s4 = inlined_call_operand.vmem [shape: f32[1,256], index: 4, kind: input, shape index: {}]
  %s5 = inlined_call_operand.vmem [shape: bf16[256,128], index: 5, kind: input, shape index: {}]
  %s6 = inlined_call_operand.vmem [shape: f32[1,128], index: 6, kind: input, shape index: {}]
  %s7 = inlined_call_operand.vmem [shape: bf16[128,64], index: 7, kind: input, shape index: {}]
  %s8 = inlined_call_operand.vmem [shape: f32[1,64], index: 8, kind: input, shape index: {}]
  %s9 = inlined_call_operand.vmem [shape: bf16[64,128], index: 9, kind: input, shape index: {}]
  %s10 = inlined_call_operand.vmem [shape: f32[1,128], index: 10, kind: input, shape index: {}]
  %s11 = inlined_call_operand.vmem [shape: f32[512,128], index: 11, kind: output, shape index: {}]
  %s12 = sld [smem:[#allocation0]]
  $region54: #{mlp_forward.1} parent=0
    _
  %s14 = ssub.s32 1, %s12
  %s15 = scalar_select 0, %s14, %s12
  // Predicated region
  $region2: #{mlp_forward.1} parent=0 // pred_check
    _
  $region3: #{mlp_forward.1} parent=0 // pred_check_branch
    %17 = sbr.rel (0) target = $region5
  $region4: #{mlp_forward.1} parent=0 // pred_region
    _
  $region5: #{mlp_forward.1} parent=0 // pred_fallthru
    _
  // Predicated region
  $region6: #{mlp_forward.1} parent=0 // pred_check
    _
  $region7: #{mlp_forward.1} parent=0 // pred_check_branch
    %19 = sbr.rel (0) target = $region9
  $region8: #{mlp_forward.1} parent=0 // pred_region
    _
  $region9: #{mlp_forward.1} parent=0 // pred_fallthru
    _
  // Predicated region
  $region10: #{mlp_forward.1} parent=0 // pred_check
    _
  $region11: #{mlp_forward.1} parent=0 // pred_check_branch
    %21 = sbr.rel (0) target = $region13
  $region12: #{mlp_forward.1} parent=0 // pred_region
    _
  $region13: #{mlp_forward.1} parent=0 // pred_fallthru
    _
  // Predicated region
  $region14: #{mlp_forward.1} parent=0 // pred_check
    _
  $region15: #{mlp_forward.1} parent=0 // pred_check_branch
    %23 = sbr.rel (0) target = $region17
  $region16: #{mlp_forward.1} parent=0 // pred_region
    _
  $region17: #{mlp_forward.1} parent=0 // pred_fallthru
    _
  // Predicated region
  $region18: #{mlp_forward.1} parent=0 // pred_check
    _
  $region19: #{mlp_forward.1} parent=0 // pred_check_branch
    %25 = sbr.rel (0) target = $region21
  $region20: #{mlp_forward.1} parent=0 // pred_region
    _
  $region21: #{mlp_forward.1} parent=0 // pred_fallthru
    _
  // Predicated region
  $region22: #{mlp_forward.1} parent=0 // pred_check
    _
  $region23: #{mlp_forward.1} parent=0 // pred_check_branch
    %27 = sbr.rel (0) target = $region25
  $region24: #{mlp_forward.1} parent=0 // pred_region
    _
  $region25: #{mlp_forward.1} parent=0 // pred_fallthru
    _
  // Predicated region
  $region26: #{mlp_forward.1} parent=0 // pred_check
    _
  $region27: #{mlp_forward.1} parent=0 // pred_check_branch
    %29 = sbr.rel (0) target = $region29
  $region28: #{mlp_forward.1} parent=0 // pred_region
    _
  $region29: #{mlp_forward.1} parent=0 // pred_fallthru
    _
  // Predicated region
  $region30: #{mlp_forward.1} parent=0 // pred_check
    _
  $region31: #{mlp_forward.1} parent=0 // pred_check_branch
    %31 = sbr.rel (0) target = $region33
  $region32: #{mlp_forward.1} parent=0 // pred_region
    _
  $region33: #{mlp_forward.1} parent=0 // pred_fallthru
    _
  // Predicated region
  $region34: #{mlp_forward.1} parent=0 // pred_check
    _
  $region35: #{mlp_forward.1} parent=0 // pred_check_branch
    %33 = sbr.rel (0) target = $region37
  $region36: #{mlp_forward.1} parent=0 // pred_region
    _
  $region37: #{mlp_forward.1} parent=0 // pred_fallthru
    _
  // Predicated region
  $region38: #{mlp_forward.1} parent=0 // pred_check
    _
  $region39: #{mlp_forward.1} parent=0 // pred_check_branch
    %35 = sbr.rel (0) target = $region41
  $region40: #{mlp_forward.1} parent=0 // pred_region
    _
  $region41: #{mlp_forward.1} parent=0 // pred_fallthru
    _
  // Predicated region
  $region42: #{mlp_forward.1} parent=0 // pred_check
    _
  $region43: #{mlp_forward.1} parent=0 // pred_check_branch
    %37 = sbr.rel (0) target = $region45
  $region44: #{mlp_forward.1} parent=0 // pred_region
    _
  $region45: #{mlp_forward.1} parent=0 // pred_fallthru
    _
  %v39 = vld [vmem:[%s0] sm:$0xff]
  %v40 = vld [vmem:[%s0 + $0x8] sm:$0xff]
  %v41 = vld [vmem:[%s0 + $0x10] sm:$0xff]
  %v42 = vld [vmem:[%s0 + $0x18] sm:$0xff]
  %v43 = vld [vmem:[%s0 + $0x20] sm:$0xff]
  %v44 = vld [vmem:[%s0 + $0x28] sm:$0xff]
  %v45 = vld [vmem:[%s0 + $0x30] sm:$0xff]
  %v46 = vld [vmem:[%s0 + $0x38] sm:$0xff]
  %v47 = vld [vmem:[%s0 + $0x40] sm:$0xff]
  %v48 = vld [vmem:[%s0 + $0x48] sm:$0xff]
  %v49 = vld [vmem:[%s0 + $0x50] sm:$0xff]
  %v50 = vld [vmem:[%s0 + $0x58] sm:$0xff]
  %v51 = vld [vmem:[%s0 + $0x60] sm:$0xff]
  %v52 = vld [vmem:[%s0 + $0x68] sm:$0xff]
  %v53 = vld [vmem:[%s0 + $0x70] sm:$0xff]
  %v54 = vld [vmem:[%s0 + $0x78] sm:$0xff]
  %v55 = vld [vmem:[%s0 + $0x80] sm:$0xff]
  %v56 = vld [vmem:[%s0 + $0x88] sm:$0xff]
  %v57 = vld [vmem:[%s0 + $0x90] sm:$0xff]
  %v58 = vld [vmem:[%s0 + $0x98] sm:$0xff]
  %v59 = vld [vmem:[%s0 + $0xa0] sm:$0xff]
  %v60 = vld [vmem:[%s0 + $0xa8] sm:$0xff]
  %v61 = vld [vmem:[%s0 + $0xb0] sm:$0xff]
  %v62 = vld [vmem:[%s0 + $0xb8] sm:$0xff]
  %v63 = vld [vmem:[%s0 + $0xc0] sm:$0xff]
  %v64 = vld [vmem:[%s0 + $0xc8] sm:$0xff]
  %v65 = vld [vmem:[%s0 + $0xd0] sm:$0xff]
  %v66 = vld [vmem:[%s0 + $0xd8] sm:$0xff]
  %v67 = vld [vmem:[%s0 + $0xe0] sm:$0xff]
  %v68 = vld [vmem:[%s0 + $0xe8] sm:$0xff]
  %v69 = vld [vmem:[%s0 + $0xf0] sm:$0xff]
  %v70 = vld [vmem:[%s0 + $0xf8] sm:$0xff]
  %v71 = vld [vmem:[%s0 + $0x100] sm:$0xff]
  %v72 = vld [vmem:[%s0 + $0x108] sm:$0xff]
  %v73 = vld [vmem:[%s0 + $0x110] sm:$0xff]
  %v74 = vld [vmem:[%s0 + $0x118] sm:$0xff]
  %v75 = vld [vmem:[%s0 + $0x120] sm:$0xff]
  %v76 = vld [vmem:[%s0 + $0x128] sm:$0xff]
  %v77 = vld [vmem:[%s0 + $0x130] sm:$0xff]
  %v78 = vld [vmem:[%s0 + $0x138] sm:$0xff]
  %v79 = vld [vmem:[%s0 + $0x140] sm:$0xff]
  %v80 = vld [vmem:[%s0 + $0x148] sm:$0xff]
  %v81 = vld [vmem:[%s0 + $0x150] sm:$0xff]
  %v82 = vld [vmem:[%s0 + $0x158] sm:$0xff]
  %v83 = vld [vmem:[%s0 + $0x160] sm:$0xff]
  %v84 = vld [vmem:[%s0 + $0x168] sm:$0xff]
  %v85 = vld [vmem:[%s0 + $0x170] sm:$0xff]
  %v86 = vld [vmem:[%s0 + $0x178] sm:$0xff]
  %v87 = vld [vmem:[%s0 + $0x180] sm:$0xff]
  %v88 = vld [vmem:[%s0 + $0x188] sm:$0xff]
  %v89 = vld [vmem:[%s0 + $0x190] sm:$0xff]
  %v90 = vld [vmem:[%s0 + $0x198] sm:$0xff]
  %v91 = vld [vmem:[%s0 + $0x1a0] sm:$0xff]
  %v92 = vld [vmem:[%s0 + $0x1a8] sm:$0xff]
  %v93 = vld [vmem:[%s0 + $0x1b0] sm:$0xff]
  %v94 = vld [vmem:[%s0 + $0x1b8] sm:$0xff]
  %v95 = vld [vmem:[%s0 + $0x1c0] sm:$0xff]
  %v96 = vld [vmem:[%s0 + $0x1c8] sm:$0xff]
  %v97 = vld [vmem:[%s0 + $0x1d0] sm:$0xff]
  %v98 = vld [vmem:[%s0 + $0x1d8] sm:$0xff]
  %v99 = vld [vmem:[%s0 + $0x1e0] sm:$0xff]
  %v100 = vld [vmem:[%s0 + $0x1e8] sm:$0xff]
  %v101 = vld [vmem:[%s0 + $0x1f0] sm:$0xff]
  %v102 = vld [vmem:[%s0 + $0x1f8] sm:$0xff]
  %v103 = vld [vmem:[%s1] sm:$0x77]
  %v104 = vld [vmem:[%s2] sm:$0x3]
  %106 = vset.pattern.permute.xlu0 0
  %107 = vperm.xlu0 %106, %v39
  %v108 = vpop.permute.xlu0 %107
  %111 = vset.pattern.permute.xlu0 0
  %112 = vperm.xlu0 %111, %v40
  %v113 = vpop.permute.xlu0 %112
  %116 = vset.pattern.permute.xlu0 0
  %117 = vperm.xlu0 %116, %v41
  %v118 = vpop.permute.xlu0 %117
  %121 = vset.pattern.permute.xlu0 0
  %122 = vperm.xlu0 %121, %v42
  %v123 = vpop.permute.xlu0 %122
  %126 = vset.pattern.permute.xlu0 0
  %127 = vperm.xlu0 %126, %v43
  %v128 = vpop.permute.xlu0 %127
  %131 = vset.pattern.permute.xlu0 0
  %132 = vperm.xlu0 %131, %v44
  %v133 = vpop.permute.xlu0 %132
  %136 = vset.pattern.permute.xlu0 0
  %137 = vperm.xlu0 %136, %v45
  %v138 = vpop.permute.xlu0 %137
  %141 = vset.pattern.permute.xlu0 0
  %142 = vperm.xlu0 %141, %v46
  %v143 = vpop.permute.xlu0 %142
  %146 = vset.pattern.permute.xlu0 0
  %147 = vperm.xlu0 %146, %v47
  %v148 = vpop.permute.xlu0 %147
  %151 = vset.pattern.permute.xlu0 0
  %152 = vperm.xlu0 %151, %v48
  %v153 = vpop.permute.xlu0 %152
  %156 = vset.pattern.permute.xlu0 0
  %157 = vperm.xlu0 %156, %v49
  %v158 = vpop.permute.xlu0 %157
  %161 = vset.pattern.permute.xlu0 0
  %162 = vperm.xlu0 %161, %v50
  %v163 = vpop.permute.xlu0 %162
  %166 = vset.pattern.permute.xlu0 0
  %167 = vperm.xlu0 %166, %v51
  %v168 = vpop.permute.xlu0 %167
  %171 = vset.pattern.permute.xlu0 0
  %172 = vperm.xlu0 %171, %v52
  %v173 = vpop.permute.xlu0 %172
  %176 = vset.pattern.permute.xlu0 0
  %177 = vperm.xlu0 %176, %v53
  %v178 = vpop.permute.xlu0 %177
  %181 = vset.pattern.permute.xlu0 0
  %182 = vperm.xlu0 %181, %v54
  %v183 = vpop.permute.xlu0 %182
  %186 = vset.pattern.permute.xlu0 0
  %187 = vperm.xlu0 %186, %v55
  %v188 = vpop.permute.xlu0 %187
  %191 = vset.pattern.permute.xlu0 0
  %192 = vperm.xlu0 %191, %v56
  %v193 = vpop.permute.xlu0 %192
  %196 = vset.pattern.permute.xlu0 0
  %197 = vperm.xlu0 %196, %v57
  %v198 = vpop.permute.xlu0 %197
  %201 = vset.pattern.permute.xlu0 0
  %202 = vperm.xlu0 %201, %v58
  %v203 = vpop.permute.xlu0 %202
  %206 = vset.pattern.permute.xlu0 0
  %207 = vperm.xlu0 %206, %v59
  %v208 = vpop.permute.xlu0 %207
  %211 = vset.pattern.permute.xlu0 0
  %212 = vperm.xlu0 %211, %v60
  %v213 = vpop.permute.xlu0 %212
  %216 = vset.pattern.permute.xlu0 0
  %217 = vperm.xlu0 %216, %v61
  %v218 = vpop.permute.xlu0 %217
  %221 = vset.pattern.permute.xlu0 0
  %222 = vperm.xlu0 %221, %v62
  %v223 = vpop.permute.xlu0 %222
  %226 = vset.pattern.permute.xlu0 0
  %227 = vperm.xlu0 %226, %v63
  %v228 = vpop.permute.xlu0 %227
  %231 = vset.pattern.permute.xlu0 0
  %232 = vperm.xlu0 %231, %v64
  %v233 = vpop.permute.xlu0 %232
  %236 = vset.pattern.permute.xlu0 0
  %237 = vperm.xlu0 %236, %v65
  %v238 = vpop.permute.xlu0 %237
  %241 = vset.pattern.permute.xlu0 0
  %242 = vperm.xlu0 %241, %v66
  %v243 = vpop.permute.xlu0 %242
  %246 = vset.pattern.permute.xlu0 0
  %247 = vperm.xlu0 %246, %v67
  %v248 = vpop.permute.xlu0 %247
  %251 = vset.pattern.permute.xlu0 0
  %252 = vperm.xlu0 %251, %v68
  %v253 = vpop.permute.xlu0 %252
  %256 = vset.pattern.permute.xlu0 0
  %257 = vperm.xlu0 %256, %v69
  %v258 = vpop.permute.xlu0 %257
  %261 = vset.pattern.permute.xlu0 0
  %262 = vperm.xlu0 %261, %v70
  %v263 = vpop.permute.xlu0 %262
  %266 = vset.pattern.permute.xlu0 0
  %267 = vperm.xlu0 %266, %v71
  %v268 = vpop.permute.xlu0 %267
  %271 = vset.pattern.permute.xlu0 0
  %272 = vperm.xlu0 %271, %v72
  %v273 = vpop.permute.xlu0 %272
  %276 = vset.pattern.permute.xlu0 0
  %277 = vperm.xlu0 %276, %v73
  %v278 = vpop.permute.xlu0 %277
  %281 = vset.pattern.permute.xlu0 0
  %282 = vperm.xlu0 %281, %v74
  %v283 = vpop.permute.xlu0 %282
  %286 = vset.pattern.permute.xlu0 0
  %287 = vperm.xlu0 %286, %v75
  %v288 = vpop.permute.xlu0 %287
  %291 = vset.pattern.permute.xlu0 0
  %292 = vperm.xlu0 %291, %v76
  %v293 = vpop.permute.xlu0 %292
  %296 = vset.pattern.permute.xlu0 0
  %297 = vperm.xlu0 %296, %v77
  %v298 = vpop.permute.xlu0 %297
  %301 = vset.pattern.permute.xlu0 0
  %302 = vperm.xlu0 %301, %v78
  %v303 = vpop.permute.xlu0 %302
  %306 = vset.pattern.permute.xlu0 0
  %307 = vperm.xlu0 %306, %v79
  %v308 = vpop.permute.xlu0 %307
  %311 = vset.pattern.permute.xlu0 0
  %312 = vperm.xlu0 %311, %v80
  %v313 = vpop.permute.xlu0 %312
  %316 = vset.pattern.permute.xlu0 0
  %317 = vperm.xlu0 %316, %v81
  %v318 = vpop.permute.xlu0 %317
  %321 = vset.pattern.permute.xlu0 0
  %322 = vperm.xlu0 %321, %v82
  %v323 = vpop.permute.xlu0 %322
  %326 = vset.pattern.permute.xlu0 0
  %327 = vperm.xlu0 %326, %v83
  %v328 = vpop.permute.xlu0 %327
  %331 = vset.pattern.permute.xlu0 0
  %332 = vperm.xlu0 %331, %v84
  %v333 = vpop.permute.xlu0 %332
  %336 = vset.pattern.permute.xlu0 0
  %337 = vperm.xlu0 %336, %v85
  %v338 = vpop.permute.xlu0 %337
  %341 = vset.pattern.permute.xlu0 0
  %342 = vperm.xlu0 %341, %v86
  %v343 = vpop.permute.xlu0 %342
  %346 = vset.pattern.permute.xlu0 0
  %347 = vperm.xlu0 %346, %v87
  %v348 = vpop.permute.xlu0 %347
  %351 = vset.pattern.permute.xlu0 0
  %352 = vperm.xlu0 %351, %v88
  %v353 = vpop.permute.xlu0 %352
  %356 = vset.pattern.permute.xlu0 0
  %357 = vperm.xlu0 %356, %v89
  %v358 = vpop.permute.xlu0 %357
  %361 = vset.pattern.permute.xlu0 0
  %362 = vperm.xlu0 %361, %v90
  %v363 = vpop.permute.xlu0 %362
  %366 = vset.pattern.permute.xlu0 0
  %367 = vperm.xlu0 %366, %v91
  %v368 = vpop.permute.xlu0 %367
  %371 = vset.pattern.permute.xlu0 0
  %372 = vperm.xlu0 %371, %v92
  %v373 = vpop.permute.xlu0 %372
  %376 = vset.pattern.permute.xlu0 0
  %377 = vperm.xlu0 %376, %v93
  %v378 = vpop.permute.xlu0 %377
  %381 = vset.pattern.permute.xlu0 0
  %382 = vperm.xlu0 %381, %v94
  %v383 = vpop.permute.xlu0 %382
  %386 = vset.pattern.permute.xlu0 0
  %387 = vperm.xlu0 %386, %v95
  %v388 = vpop.permute.xlu0 %387
  %391 = vset.pattern.permute.xlu0 0
  %392 = vperm.xlu0 %391, %v96
  %v393 = vpop.permute.xlu0 %392
  %396 = vset.pattern.permute.xlu0 0
  %397 = vperm.xlu0 %396, %v97
  %v398 = vpop.permute.xlu0 %397
  %401 = vset.pattern.permute.xlu0 0
  %402 = vperm.xlu0 %401, %v98
  %v403 = vpop.permute.xlu0 %402
  %406 = vset.pattern.permute.xlu0 0
  %407 = vperm.xlu0 %406, %v99
  %v408 = vpop.permute.xlu0 %407
  %411 = vset.pattern.permute.xlu0 0
  %412 = vperm.xlu0 %411, %v100
  %v413 = vpop.permute.xlu0 %412
  %416 = vset.pattern.permute.xlu0 0
  %417 = vperm.xlu0 %416, %v101
  %v418 = vpop.permute.xlu0 %417
  %421 = vset.pattern.permute.xlu0 0
  %422 = vperm.xlu0 %421, %v102
  %v423 = vpop.permute.xlu0 %422
  %v426 = vperm.slane %v103, 0
  %v427 = vperm.slane %v103, 4
  %v430 = vperm.slane %v426, 0
  %v431 = vperm.slane %v427, 0
  %v432 = vmul.f32 %v108, %v430
  %v433 = vmul.f32 %v108, %v431
  %v434 = vmul.f32 %v113, %v430
  %v435 = vmul.f32 %v113, %v431
  %v436 = vmul.f32 %v118, %v430
  %v437 = vmul.f32 %v118, %v431
  %v438 = vmul.f32 %v123, %v430
  %v439 = vmul.f32 %v123, %v431
  %v440 = vmul.f32 %v128, %v430
  %v441 = vmul.f32 %v128, %v431
  %v442 = vmul.f32 %v133, %v430
  %v443 = vmul.f32 %v133, %v431
  %v444 = vmul.f32 %v138, %v430
  %v445 = vmul.f32 %v138, %v431
  %v446 = vmul.f32 %v143, %v430
  %v447 = vmul.f32 %v143, %v431
  %v448 = vmul.f32 %v148, %v430
  %v449 = vmul.f32 %v148, %v431
  %v450 = vmul.f32 %v153, %v430
  %v451 = vmul.f32 %v153, %v431
  %v452 = vmul.f32 %v158, %v430
  %v453 = vmul.f32 %v158, %v431
  %v454 = vmul.f32 %v163, %v430
  %v455 = vmul.f32 %v163, %v431
  %v456 = vmul.f32 %v168, %v430
  %v457 = vmul.f32 %v168, %v431
  %v458 = vmul.f32 %v173, %v430
  %v459 = vmul.f32 %v173, %v431
  %v460 = vmul.f32 %v178, %v430
  %v461 = vmul.f32 %v178, %v431
  %v462 = vmul.f32 %v183, %v430
  %v463 = vmul.f32 %v183, %v431
  %v464 = vmul.f32 %v188, %v430
  %v465 = vmul.f32 %v188, %v431
  %v466 = vmul.f32 %v193, %v430
  %v467 = vmul.f32 %v193, %v431
  %v468 = vmul.f32 %v198, %v430
  %v469 = vmul.f32 %v198, %v431
  %v470 = vmul.f32 %v203, %v430
  %v471 = vmul.f32 %v203, %v431
  %v472 = vmul.f32 %v208, %v430
  %v473 = vmul.f32 %v208, %v431
  %v474 = vmul.f32 %v213, %v430
  %v475 = vmul.f32 %v213, %v431
  %v476 = vmul.f32 %v218, %v430
  %v477 = vmul.f32 %v218, %v431
  %v478 = vmul.f32 %v223, %v430
  %v479 = vmul.f32 %v223, %v431
  %v480 = vmul.f32 %v228, %v430
  %v481 = vmul.f32 %v228, %v431
  %v482 = vmul.f32 %v233, %v430
  %v483 = vmul.f32 %v233, %v431
  %v484 = vmul.f32 %v238, %v430
  %v485 = vmul.f32 %v238, %v431
  %v486 = vmul.f32 %v243, %v430
  %v487 = vmul.f32 %v243, %v431
  %v488 = vmul.f32 %v248, %v430
  %v489 = vmul.f32 %v248, %v431
  %v490 = vmul.f32 %v253, %v430
  %v491 = vmul.f32 %v253, %v431
  %v492 = vmul.f32 %v258, %v430
  %v493 = vmul.f32 %v258, %v431
  %v494 = vmul.f32 %v263, %v430
  %v495 = vmul.f32 %v263, %v431
  %v496 = vmul.f32 %v268, %v430
  %v497 = vmul.f32 %v268, %v431
  %v498 = vmul.f32 %v273, %v430
  %v499 = vmul.f32 %v273, %v431
  %v500 = vmul.f32 %v278, %v430
  %v501 = vmul.f32 %v278, %v431
  %v502 = vmul.f32 %v283, %v430
  %v503 = vmul.f32 %v283, %v431
  %v504 = vmul.f32 %v288, %v430
  %v505 = vmul.f32 %v288, %v431
  %v506 = vmul.f32 %v293, %v430
  %v507 = vmul.f32 %v293, %v431
  %v508 = vmul.f32 %v298, %v430
  %v509 = vmul.f32 %v298, %v431
  %v510 = vmul.f32 %v303, %v430
  %v511 = vmul.f32 %v303, %v431
  %v512 = vmul.f32 %v308, %v430
  %v513 = vmul.f32 %v308, %v431
  %v514 = vmul.f32 %v313, %v430
  %v515 = vmul.f32 %v313, %v431
  %v516 = vmul.f32 %v318, %v430
  %v517 = vmul.f32 %v318, %v431
  %v518 = vmul.f32 %v323, %v430
  %v519 = vmul.f32 %v323, %v431
  %v520 = vmul.f32 %v328, %v430
  %v521 = vmul.f32 %v328, %v431
  %v522 = vmul.f32 %v333, %v430
  %v523 = vmul.f32 %v333, %v431
  %v524 = vmul.f32 %v338, %v430
  %v525 = vmul.f32 %v338, %v431
  %v526 = vmul.f32 %v343, %v430
  %v527 = vmul.f32 %v343, %v431
  %v528 = vmul.f32 %v348, %v430
  %v529 = vmul.f32 %v348, %v431
  %v530 = vmul.f32 %v353, %v430
  %v531 = vmul.f32 %v353, %v431
  %v532 = vmul.f32 %v358, %v430
  %v533 = vmul.f32 %v358, %v431
  %v534 = vmul.f32 %v363, %v430
  %v535 = vmul.f32 %v363, %v431
  %v536 = vmul.f32 %v368, %v430
  %v537 = vmul.f32 %v368, %v431
  %v538 = vmul.f32 %v373, %v430
  %v539 = vmul.f32 %v373, %v431
  %v540 = vmul.f32 %v378, %v430
  %v541 = vmul.f32 %v378, %v431
  %v542 = vmul.f32 %v383, %v430
  %v543 = vmul.f32 %v383, %v431
  %v544 = vmul.f32 %v388, %v430
  %v545 = vmul.f32 %v388, %v431
  %v546 = vmul.f32 %v393, %v430
  %v547 = vmul.f32 %v393, %v431
  %v548 = vmul.f32 %v398, %v430
  %v549 = vmul.f32 %v398, %v431
  %v550 = vmul.f32 %v403, %v430
  %v551 = vmul.f32 %v403, %v431
  %v552 = vmul.f32 %v408, %v430
  %v553 = vmul.f32 %v408, %v431
  %v554 = vmul.f32 %v413, %v430
  %v555 = vmul.f32 %v413, %v431
  %v556 = vmul.f32 %v418, %v430
  %v557 = vmul.f32 %v418, %v431
  %v558 = vmul.f32 %v423, %v430
  %v559 = vmul.f32 %v423, %v431
  %v561 = vperm.slane %v104, 0
  %v562 = vperm.slane %v104, 1
  %v565 = vadd.f32 %v561, %v432
  %v566 = vadd.f32 %v562, %v433
  %v567 = vadd.f32 %v561, %v434
  %v568 = vadd.f32 %v562, %v435
  %v569 = vadd.f32 %v561, %v436
  %v570 = vadd.f32 %v562, %v437
  %v571 = vadd.f32 %v561, %v438
  %v572 = vadd.f32 %v562, %v439
  %v573 = vadd.f32 %v561, %v440
  %v574 = vadd.f32 %v562, %v441
  %v575 = vadd.f32 %v561, %v442
  %v576 = vadd.f32 %v562, %v443
  %v577 = vadd.f32 %v561, %v444
  %v578 = vadd.f32 %v562, %v445
  %v579 = vadd.f32 %v561, %v446
  %v580 = vadd.f32 %v562, %v447
  %v581 = vadd.f32 %v561, %v448
  %v582 = vadd.f32 %v562, %v449
  %v583 = vadd.f32 %v561, %v450
  %v584 = vadd.f32 %v562, %v451
  %v585 = vadd.f32 %v561, %v452
  %v586 = vadd.f32 %v562, %v453
  %v587 = vadd.f32 %v561, %v454
  %v588 = vadd.f32 %v562, %v455
  %v589 = vadd.f32 %v561, %v456
  %v590 = vadd.f32 %v562, %v457
  %v591 = vadd.f32 %v561, %v458
  %v592 = vadd.f32 %v562, %v459
  %v593 = vadd.f32 %v561, %v460
  %v594 = vadd.f32 %v562, %v461
  %v595 = vadd.f32 %v561, %v462
  %v596 = vadd.f32 %v562, %v463
  %v597 = vadd.f32 %v561, %v464
  %v598 = vadd.f32 %v562, %v465
  %v599 = vadd.f32 %v561, %v466
  %v600 = vadd.f32 %v562, %v467
  %v601 = vadd.f32 %v561, %v468
  %v602 = vadd.f32 %v562, %v469
  %v603 = vadd.f32 %v561, %v470
  %v604 = vadd.f32 %v562, %v471
  %v605 = vadd.f32 %v561, %v472
  %v606 = vadd.f32 %v562, %v473
  %v607 = vadd.f32 %v561, %v474
  %v608 = vadd.f32 %v562, %v475
  %v609 = vadd.f32 %v561, %v476
  %v610 = vadd.f32 %v562, %v477
  %v611 = vadd.f32 %v561, %v478
  %v612 = vadd.f32 %v562, %v479
  %v613 = vadd.f32 %v561, %v480
  %v614 = vadd.f32 %v562, %v481
  %v615 = vadd.f32 %v561, %v482
  %v616 = vadd.f32 %v562, %v483
  %v617 = vadd.f32 %v561, %v484
  %v618 = vadd.f32 %v562, %v485
  %v619 = vadd.f32 %v561, %v486
  %v620 = vadd.f32 %v562, %v487
  %v621 = vadd.f32 %v561, %v488
  %v622 = vadd.f32 %v562, %v489
  %v623 = vadd.f32 %v561, %v490
  %v624 = vadd.f32 %v562, %v491
  %v625 = vadd.f32 %v561, %v492
  %v626 = vadd.f32 %v562, %v493
  %v627 = vadd.f32 %v561, %v494
  %v628 = vadd.f32 %v562, %v495
  %v629 = vadd.f32 %v561, %v496
  %v630 = vadd.f32 %v562, %v497
  %v631 = vadd.f32 %v561, %v498
  %v632 = vadd.f32 %v562, %v499
  %v633 = vadd.f32 %v561, %v500
  %v634 = vadd.f32 %v562, %v501
  %v635 = vadd.f32 %v561, %v502
  %v636 = vadd.f32 %v562, %v503
  %v637 = vadd.f32 %v561, %v504
  %v638 = vadd.f32 %v562, %v505
  %v639 = vadd.f32 %v561, %v506
  %v640 = vadd.f32 %v562, %v507
  %v641 = vadd.f32 %v561, %v508
  %v642 = vadd.f32 %v562, %v509
  %v643 = vadd.f32 %v561, %v510
  %v644 = vadd.f32 %v562, %v511
  %v645 = vadd.f32 %v561, %v512
  %v646 = vadd.f32 %v562, %v513
  %v647 = vadd.f32 %v561, %v514
  %v648 = vadd.f32 %v562, %v515
  %v649 = vadd.f32 %v561, %v516
  %v650 = vadd.f32 %v562, %v517
  %v651 = vadd.f32 %v561, %v518
  %v652 = vadd.f32 %v562, %v519
  %v653 = vadd.f32 %v561, %v520
  %v654 = vadd.f32 %v562, %v521
  %v655 = vadd.f32 %v561, %v522
  %v656 = vadd.f32 %v562, %v523
  %v657 = vadd.f32 %v561, %v524
  %v658 = vadd.f32 %v562, %v525
  %v659 = vadd.f32 %v561, %v526
  %v660 = vadd.f32 %v562, %v527
  %v661 = vadd.f32 %v561, %v528
  %v662 = vadd.f32 %v562, %v529
  %v663 = vadd.f32 %v561, %v530
  %v664 = vadd.f32 %v562, %v531
  %v665 = vadd.f32 %v561, %v532
  %v666 = vadd.f32 %v562, %v533
  %v667 = vadd.f32 %v561, %v534
  %v668 = vadd.f32 %v562, %v535
  %v669 = vadd.f32 %v561, %v536
  %v670 = vadd.f32 %v562, %v537
  %v671 = vadd.f32 %v561, %v538
  %v672 = vadd.f32 %v562, %v539
  %v673 = vadd.f32 %v561, %v540
  %v674 = vadd.f32 %v562, %v541
  %v675 = vadd.f32 %v561, %v542
  %v676 = vadd.f32 %v562, %v543
  %v677 = vadd.f32 %v561, %v544
  %v678 = vadd.f32 %v562, %v545
  %v679 = vadd.f32 %v561, %v546
  %v680 = vadd.f32 %v562, %v547
  %v681 = vadd.f32 %v561, %v548
  %v682 = vadd.f32 %v562, %v549
  %v683 = vadd.f32 %v561, %v550
  %v684 = vadd.f32 %v562, %v551
  %v685 = vadd.f32 %v561, %v552
  %v686 = vadd.f32 %v562, %v553
  %v687 = vadd.f32 %v561, %v554
  %v688 = vadd.f32 %v562, %v555
  %v689 = vadd.f32 %v561, %v556
  %v690 = vadd.f32 %v562, %v557
  %v691 = vadd.f32 %v561, %v558
  %v692 = vadd.f32 %v562, %v559
  %693 = vset.pattern.permute.xlu0 1
  %694 = vperm.xlu0 %693, %v39
  %v695 = vpop.permute.xlu0 %694
  %697 = vset.pattern.permute.xlu0 1
  %698 = vperm.xlu0 %697, %v40
  %v699 = vpop.permute.xlu0 %698
  %701 = vset.pattern.permute.xlu0 1
  %702 = vperm.xlu0 %701, %v41
  %v703 = vpop.permute.xlu0 %702
  %705 = vset.pattern.permute.xlu0 1
  %706 = vperm.xlu0 %705, %v42
  %v707 = vpop.permute.xlu0 %706
  %709 = vset.pattern.permute.xlu0 1
  %710 = vperm.xlu0 %709, %v43
  %v711 = vpop.permute.xlu0 %710
  %713 = vset.pattern.permute.xlu0 1
  %714 = vperm.xlu0 %713, %v44
  %v715 = vpop.permute.xlu0 %714
  %717 = vset.pattern.permute.xlu0 1
  %718 = vperm.xlu0 %717, %v45
  %v719 = vpop.permute.xlu0 %718
  %721 = vset.pattern.permute.xlu0 1
  %722 = vperm.xlu0 %721, %v46
  %v723 = vpop.permute.xlu0 %722
  %725 = vset.pattern.permute.xlu0 1
  %726 = vperm.xlu0 %725, %v47
  %v727 = vpop.permute.xlu0 %726
  %729 = vset.pattern.permute.xlu0 1
  %730 = vperm.xlu0 %729, %v48
  %v731 = vpop.permute.xlu0 %730
  %733 = vset.pattern.permute.xlu0 1
  %734 = vperm.xlu0 %733, %v49
  %v735 = vpop.permute.xlu0 %734
  %737 = vset.pattern.permute.xlu0 1
  %738 = vperm.xlu0 %737, %v50
  %v739 = vpop.permute.xlu0 %738
  %741 = vset.pattern.permute.xlu0 1
  %742 = vperm.xlu0 %741, %v51
  %v743 = vpop.permute.xlu0 %742
  %745 = vset.pattern.permute.xlu0 1
  %746 = vperm.xlu0 %745, %v52
  %v747 = vpop.permute.xlu0 %746
  %749 = vset.pattern.permute.xlu0 1
  %750 = vperm.xlu0 %749, %v53
  %v751 = vpop.permute.xlu0 %750
  %753 = vset.pattern.permute.xlu0 1
  %754 = vperm.xlu0 %753, %v54
  %v755 = vpop.permute.xlu0 %754
  %757 = vset.pattern.permute.xlu0 1
  %758 = vperm.xlu0 %757, %v55
  %v759 = vpop.permute.xlu0 %758
  %761 = vset.pattern.permute.xlu0 1
  %762 = vperm.xlu0 %761, %v56
  %v763 = vpop.permute.xlu0 %762
  %765 = vset.pattern.permute.xlu0 1
  %766 = vperm.xlu0 %765, %v57
  %v767 = vpop.permute.xlu0 %766
  %769 = vset.pattern.permute.xlu0 1
  %770 = vperm.xlu0 %769, %v58
  %v771 = vpop.permute.xlu0 %770
  %773 = vset.pattern.permute.xlu0 1
  %774 = vperm.xlu0 %773, %v59
  %v775 = vpop.permute.xlu0 %774
  %777 = vset.pattern.permute.xlu0 1
  %778 = vperm.xlu0 %777, %v60
  %v779 = vpop.permute.xlu0 %778
  %781 = vset.pattern.permute.xlu0 1
  %782 = vperm.xlu0 %781, %v61
  %v783 = vpop.permute.xlu0 %782
  %785 = vset.pattern.permute.xlu0 1
  %786 = vperm.xlu0 %785, %v62
  %v787 = vpop.permute.xlu0 %786
  %789 = vset.pattern.permute.xlu0 1
  %790 = vperm.xlu0 %789, %v63
  %v791 = vpop.permute.xlu0 %790
  %793 = vset.pattern.permute.xlu0 1
  %794 = vperm.xlu0 %793, %v64
  %v795 = vpop.permute.xlu0 %794
  %797 = vset.pattern.permute.xlu0 1
  %798 = vperm.xlu0 %797, %v65
  %v799 = vpop.permute.xlu0 %798
  %801 = vset.pattern.permute.xlu0 1
  %802 = vperm.xlu0 %801, %v66
  %v803 = vpop.permute.xlu0 %802
  %805 = vset.pattern.permute.xlu0 1
  %806 = vperm.xlu0 %805, %v67
  %v807 = vpop.permute.xlu0 %806
  %809 = vset.pattern.permute.xlu0 1
  %810 = vperm.xlu0 %809, %v68
  %v811 = vpop.permute.xlu0 %810
  %813 = vset.pattern.permute.xlu0 1
  %814 = vperm.xlu0 %813, %v69
  %v815 = vpop.permute.xlu0 %814
  %817 = vset.pattern.permute.xlu0 1
  %818 = vperm.xlu0 %817, %v70
  %v819 = vpop.permute.xlu0 %818
  %821 = vset.pattern.permute.xlu0 1
  %822 = vperm.xlu0 %821, %v71
  %v823 = vpop.permute.xlu0 %822
  %825 = vset.pattern.permute.xlu0 1
  %826 = vperm.xlu0 %825, %v72
  %v827 = vpop.permute.xlu0 %826
  %829 = vset.pattern.permute.xlu0 1
  %830 = vperm.xlu0 %829, %v73
  %v831 = vpop.permute.xlu0 %830
  %833 = vset.pattern.permute.xlu0 1
  %834 = vperm.xlu0 %833, %v74
  %v835 = vpop.permute.xlu0 %834
  %837 = vset.pattern.permute.xlu0 1
  %838 = vperm.xlu0 %837, %v75
  %v839 = vpop.permute.xlu0 %838
  %841 = vset.pattern.permute.xlu0 1
  %842 = vperm.xlu0 %841, %v76
  %v843 = vpop.permute.xlu0 %842
  %845 = vset.pattern.permute.xlu0 1
  %846 = vperm.xlu0 %845, %v77
  %v847 = vpop.permute.xlu0 %846
  %849 = vset.pattern.permute.xlu0 1
  %850 = vperm.xlu0 %849, %v78
  %v851 = vpop.permute.xlu0 %850
  %853 = vset.pattern.permute.xlu0 1
  %854 = vperm.xlu0 %853, %v79
  %v855 = vpop.permute.xlu0 %854
  %857 = vset.pattern.permute.xlu0 1
  %858 = vperm.xlu0 %857, %v80
  %v859 = vpop.permute.xlu0 %858
  %861 = vset.pattern.permute.xlu0 1
  %862 = vperm.xlu0 %861, %v81
  %v863 = vpop.permute.xlu0 %862
  %865 = vset.pattern.permute.xlu0 1
  %866 = vperm.xlu0 %865, %v82
  %v867 = vpop.permute.xlu0 %866
  %869 = vset.pattern.permute.xlu0 1
  %870 = vperm.xlu0 %869, %v83
  %v871 = vpop.permute.xlu0 %870
  %873 = vset.pattern.permute.xlu0 1
  %874 = vperm.xlu0 %873, %v84
  %v875 = vpop.permute.xlu0 %874
  %877 = vset.pattern.permute.xlu0 1
  %878 = vperm.xlu0 %877, %v85
  %v879 = vpop.permute.xlu0 %878
  %881 = vset.pattern.permute.xlu0 1
  %882 = vperm.xlu0 %881, %v86
  %v883 = vpop.permute.xlu0 %882
  %885 = vset.pattern.permute.xlu0 1
  %886 = vperm.xlu0 %885, %v87
  %v887 = vpop.permute.xlu0 %886
  %889 = vset.pattern.permute.xlu0 1
  %890 = vperm.xlu0 %889, %v88
  %v891 = vpop.permute.xlu0 %890
  %893 = vset.pattern.permute.xlu0 1
  %894 = vperm.xlu0 %893, %v89
  %v895 = vpop.permute.xlu0 %894
  %897 = vset.pattern.permute.xlu0 1
  %898 = vperm.xlu0 %897, %v90
  %v899 = vpop.permute.xlu0 %898
  %901 = vset.pattern.permute.xlu0 1
  %902 = vperm.xlu0 %901, %v91
  %v903 = vpop.permute.xlu0 %902
  %905 = vset.pattern.permute.xlu0 1
  %906 = vperm.xlu0 %905, %v92
  %v907 = vpop.permute.xlu0 %906
  %909 = vset.pattern.permute.xlu0 1
  %910 = vperm.xlu0 %909, %v93
  %v911 = vpop.permute.xlu0 %910
  %913 = vset.pattern.permute.xlu0 1
  %914 = vperm.xlu0 %913, %v94
  %v915 = vpop.permute.xlu0 %914
  %917 = vset.pattern.permute.xlu0 1
  %918 = vperm.xlu0 %917, %v95
  %v919 = vpop.permute.xlu0 %918
  %921 = vset.pattern.permute.xlu0 1
  %922 = vperm.xlu0 %921, %v96
  %v923 = vpop.permute.xlu0 %922
  %925 = vset.pattern.permute.xlu0 1
  %926 = vperm.xlu0 %925, %v97
  %v927 = vpop.permute.xlu0 %926
  %929 = vset.pattern.permute.xlu0 1
  %930 = vperm.xlu0 %929, %v98
  %v931 = vpop.permute.xlu0 %930
  %933 = vset.pattern.permute.xlu0 1
  %934 = vperm.xlu0 %933, %v99
  %v935 = vpop.permute.xlu0 %934
  %937 = vset.pattern.permute.xlu0 1
  %938 = vperm.xlu0 %937, %v100
  %v939 = vpop.permute.xlu0 %938
  %941 = vset.pattern.permute.xlu0 1
  %942 = vperm.xlu0 %941, %v101
  %v943 = vpop.permute.xlu0 %942
  %945 = vset.pattern.permute.xlu0 1
  %946 = vperm.xlu0 %945, %v102
  %v947 = vpop.permute.xlu0 %946
  %v949 = vperm.slane %v103, 1
  %v950 = vperm.slane %v103, 5
  %v953 = vperm.slane %v949, 1
  %v954 = vperm.slane %v950, 1
  %v955 = vmul.f32 %v695, %v953
  %v956 = vmul.f32 %v695, %v954
  %v957 = vmul.f32 %v699, %v953
  %v958 = vmul.f32 %v699, %v954
  %v959 = vmul.f32 %v703, %v953
  %v960 = vmul.f32 %v703, %v954
  %v961 = vmul.f32 %v707, %v953
  %v962 = vmul.f32 %v707, %v954
  %v963 = vmul.f32 %v711, %v953
  %v964 = vmul.f32 %v711, %v954
  %v965 = vmul.f32 %v715, %v953
  %v966 = vmul.f32 %v715, %v954
  %v967 = vmul.f32 %v719, %v953
  %v968 = vmul.f32 %v719, %v954
  %v969 = vmul.f32 %v723, %v953
  %v970 = vmul.f32 %v723, %v954
  %v971 = vmul.f32 %v727, %v953
  %v972 = vmul.f32 %v727, %v954
  %v973 = vmul.f32 %v731, %v953
  %v974 = vmul.f32 %v731, %v954
  %v975 = vmul.f32 %v735, %v953
  %v976 = vmul.f32 %v735, %v954
  %v977 = vmul.f32 %v739, %v953
  %v978 = vmul.f32 %v739, %v954
  %v979 = vmul.f32 %v743, %v953
  %v980 = vmul.f32 %v743, %v954
  %v981 = vmul.f32 %v747, %v953
  %v982 = vmul.f32 %v747, %v954
  %v983 = vmul.f32 %v751, %v953
  %v984 = vmul.f32 %v751, %v954
  %v985 = vmul.f32 %v755, %v953
  %v986 = vmul.f32 %v755, %v954
  %v987 = vmul.f32 %v759, %v953
  %v988 = vmul.f32 %v759, %v954
  %v989 = vmul.f32 %v763, %v953
  %v990 = vmul.f32 %v763, %v954
  %v991 = vmul.f32 %v767, %v953
  %v992 = vmul.f32 %v767, %v954
  %v993 = vmul.f32 %v771, %v953
  %v994 = vmul.f32 %v771, %v954
  %v995 = vmul.f32 %v775, %v953
  %v996 = vmul.f32 %v775, %v954
  %v997 = vmul.f32 %v779, %v953
  %v998 = vmul.f32 %v779, %v954
  %v999 = vmul.f32 %v783, %v953
  %v1000 = vmul.f32 %v783, %v954
  %v1001 = vmul.f32 %v787, %v953
  %v1002 = vmul.f32 %v787, %v954
  %v1003 = vmul.f32 %v791, %v953
  %v1004 = vmul.f32 %v791, %v954
  %v1005 = vmul.f32 %v795, %v953
  %v1006 = vmul.f32 %v795, %v954
  %v1007 = vmul.f32 %v799, %v953
  %v1008 = vmul.f32 %v799, %v954
  %v1009 = vmul.f32 %v803, %v953
  %v1010 = vmul.f32 %v803, %v954
  %v1011 = vmul.f32 %v807, %v953
  %v1012 = vmul.f32 %v807, %v954
  %v1013 = vmul.f32 %v811, %v953
  %v1014 = vmul.f32 %v811, %v954
  %v1015 = vmul.f32 %v815, %v953
  %v1016 = vmul.f32 %v815, %v954
  %v1017 = vmul.f32 %v819, %v953
  %v1018 = vmul.f32 %v819, %v954
  %v1019 = vmul.f32 %v823, %v953
  %v1020 = vmul.f32 %v823, %v954
  %v1021 = vmul.f32 %v827, %v953
  %v1022 = vmul.f32 %v827, %v954
  %v1023 = vmul.f32 %v831, %v953
  %v1024 = vmul.f32 %v831, %v954
  %v1025 = vmul.f32 %v835, %v953
  %v1026 = vmul.f32 %v835, %v954
  %v1027 = vmul.f32 %v839, %v953
  %v1028 = vmul.f32 %v839, %v954
  %v1029 = vmul.f32 %v843, %v953
  %v1030 = vmul.f32 %v843, %v954
  %v1031 = vmul.f32 %v847, %v953
  %v1032 = vmul.f32 %v847, %v954
  %v1033 = vmul.f32 %v851, %v953
  %v1034 = vmul.f32 %v851, %v954
  %v1035 = vmul.f32 %v855, %v953
  %v1036 = vmul.f32 %v855, %v954
  %v1037 = vmul.f32 %v859, %v953
  %v1038 = vmul.f32 %v859, %v954
  %v1039 = vmul.f32 %v863, %v953
  %v1040 = vmul.f32 %v863, %v954
  %v1041 = vmul.f32 %v867, %v953
  %v1042 = vmul.f32 %v867, %v954
  %v1043 = vmul.f32 %v871, %v953
  %v1044 = vmul.f32 %v871, %v954
  %v1045 = vmul.f32 %v875, %v953
  %v1046 = vmul.f32 %v875, %v954
  %v1047 = vmul.f32 %v879, %v953
  %v1048 = vmul.f32 %v879, %v954
  %v1049 = vmul.f32 %v883, %v953
  %v1050 = vmul.f32 %v883, %v954
  %v1051 = vmul.f32 %v887, %v953
  %v1052 = vmul.f32 %v887, %v954
  %v1053 = vmul.f32 %v891, %v953
  %v1054 = vmul.f32 %v891, %v954
  %v1055 = vmul.f32 %v895, %v953
  %v1056 = vmul.f32 %v895, %v954
  %v1057 = vmul.f32 %v899, %v953
  %v1058 = vmul.f32 %v899, %v954
  %v1059 = vmul.f32 %v903, %v953
  %v1060 = vmul.f32 %v903, %v954
  %v1061 = vmul.f32 %v907, %v953
  %v1062 = vmul.f32 %v907, %v954
  %v1063 = vmul.f32 %v911, %v953
  %v1064 = vmul.f32 %v911, %v954
  %v1065 = vmul.f32 %v915, %v953
  %v1066 = vmul.f32 %v915, %v954
  %v1067 = vmul.f32 %v919, %v953
  %v1068 = vmul.f32 %v919, %v954
  %v1069 = vmul.f32 %v923, %v953
  %v1070 = vmul.f32 %v923, %v954
  %v1071 = vmul.f32 %v927, %v953
  %v1072 = vmul.f32 %v927, %v954
  %v1073 = vmul.f32 %v931, %v953
  %v1074 = vmul.f32 %v931, %v954
  %v1075 = vmul.f32 %v935, %v953
  %v1076 = vmul.f32 %v935, %v954
  %v1077 = vmul.f32 %v939, %v953
  %v1078 = vmul.f32 %v939, %v954
  %v1079 = vmul.f32 %v943, %v953
  %v1080 = vmul.f32 %v943, %v954
  %v1081 = vmul.f32 %v947, %v953
  %v1082 = vmul.f32 %v947, %v954
  %v1083 = vadd.f32 %v565, %v955
  %v1084 = vadd.f32 %v566, %v956
  %v1085 = vadd.f32 %v567, %v957
  %v1086 = vadd.f32 %v568, %v958
  %v1087 = vadd.f32 %v569, %v959
  %v1088 = vadd.f32 %v570, %v960
  %v1089 = vadd.f32 %v571, %v961
  %v1090 = vadd.f32 %v572, %v962
  %v1091 = vadd.f32 %v573, %v963
  %v1092 = vadd.f32 %v574, %v964
  %v1093 = vadd.f32 %v575, %v965
  %v1094 = vadd.f32 %v576, %v966
  %v1095 = vadd.f32 %v577, %v967
  %v1096 = vadd.f32 %v578, %v968
  %v1097 = vadd.f32 %v579, %v969
  %v1098 = vadd.f32 %v580, %v970
  %v1099 = vadd.f32 %v581, %v971
  %v1100 = vadd.f32 %v582, %v972
  %v1101 = vadd.f32 %v583, %v973
  %v1102 = vadd.f32 %v584, %v974
  %v1103 = vadd.f32 %v585, %v975
  %v1104 = vadd.f32 %v586, %v976
  %v1105 = vadd.f32 %v587, %v977
  %v1106 = vadd.f32 %v588, %v978
  %v1107 = vadd.f32 %v589, %v979
  %v1108 = vadd.f32 %v590, %v980
  %v1109 = vadd.f32 %v591, %v981
  %v1110 = vadd.f32 %v592, %v982
  %v1111 = vadd.f32 %v593, %v983
  %v1112 = vadd.f32 %v594, %v984
  %v1113 = vadd.f32 %v595, %v985
  %v1114 = vadd.f32 %v596, %v986
  %v1115 = vadd.f32 %v597, %v987
  %v1116 = vadd.f32 %v598, %v988
  %v1117 = vadd.f32 %v599, %v989
  %v1118 = vadd.f32 %v600, %v990
  %v1119 = vadd.f32 %v601, %v991
  %v1120 = vadd.f32 %v602, %v992
  %v1121 = vadd.f32 %v603, %v993
  %v1122 = vadd.f32 %v604, %v994
  %v1123 = vadd.f32 %v605, %v995
  %v1124 = vadd.f32 %v606, %v996
  %v1125 = vadd.f32 %v607, %v997
  %v1126 = vadd.f32 %v608, %v998
  %v1127 = vadd.f32 %v609, %v999
  %v1128 = vadd.f32 %v610, %v1000
  %v1129 = vadd.f32 %v611, %v1001
  %v1130 = vadd.f32 %v612, %v1002
  %v1131 = vadd.f32 %v613, %v1003
  %v1132 = vadd.f32 %v614, %v1004
  %v1133 = vadd.f32 %v615, %v1005
  %v1134 = vadd.f32 %v616, %v1006
  %v1135 = vadd.f32 %v617, %v1007
  %v1136 = vadd.f32 %v618, %v1008
  %v1137 = vadd.f32 %v619, %v1009
  %v1138 = vadd.f32 %v620, %v1010
  %v1139 = vadd.f32 %v621, %v1011
  %v1140 = vadd.f32 %v622, %v1012
  %v1141 = vadd.f32 %v623, %v1013
  %v1142 = vadd.f32 %v624, %v1014
  %v1143 = vadd.f32 %v625, %v1015
  %v1144 = vadd.f32 %v626, %v1016
  %v1145 = vadd.f32 %v627, %v1017
  %v1146 = vadd.f32 %v628, %v1018
  %v1147 = vadd.f32 %v629, %v1019
  %v1148 = vadd.f32 %v630, %v1020
  %v1149 = vadd.f32 %v631, %v1021
  %v1150 = vadd.f32 %v632, %v1022
  %v1151 = vadd.f32 %v633, %v1023
  %v1152 = vadd.f32 %v634, %v1024
  %v1153 = vadd.f32 %v635, %v1025
  %v1154 = vadd.f32 %v636, %v1026
  %v1155 = vadd.f32 %v637, %v1027
  %v1156 = vadd.f32 %v638, %v1028
  %v1157 = vadd.f32 %v639, %v1029
  %v1158 = vadd.f32 %v640, %v1030
  %v1159 = vadd.f32 %v641, %v1031
  %v1160 = vadd.f32 %v642, %v1032
  %v1161 = vadd.f32 %v643, %v1033
  %v1162 = vadd.f32 %v644, %v1034
  %v1163 = vadd.f32 %v645, %v1035
  %v1164 = vadd.f32 %v646, %v1036
  %v1165 = vadd.f32 %v647, %v1037
  %v1166 = vadd.f32 %v648, %v1038
  %v1167 = vadd.f32 %v649, %v1039
  %v1168 = vadd.f32 %v650, %v1040
  %v1169 = vadd.f32 %v651, %v1041
  %v1170 = vadd.f32 %v652, %v1042
  %v1171 = vadd.f32 %v653, %v1043
  %v1172 = vadd.f32 %v654, %v1044
  %v1173 = vadd.f32 %v655, %v1045
  %v1174 = vadd.f32 %v656, %v1046
  %v1175 = vadd.f32 %v657, %v1047
  %v1176 = vadd.f32 %v658, %v1048
  %v1177 = vadd.f32 %v659, %v1049
  %v1178 = vadd.f32 %v660, %v1050
  %v1179 = vadd.f32 %v661, %v1051
  %v1180 = vadd.f32 %v662, %v1052
  %v1181 = vadd.f32 %v663, %v1053
  %v1182 = vadd.f32 %v664, %v1054
  %v1183 = vadd.f32 %v665, %v1055
  %v1184 = vadd.f32 %v666, %v1056
  %v1185 = vadd.f32 %v667, %v1057
  %v1186 = vadd.f32 %v668, %v1058
  %v1187 = vadd.f32 %v669, %v1059
  %v1188 = vadd.f32 %v670, %v1060
  %v1189 = vadd.f32 %v671, %v1061
  %v1190 = vadd.f32 %v672, %v1062
  %v1191 = vadd.f32 %v673, %v1063
  %v1192 = vadd.f32 %v674, %v1064
  %v1193 = vadd.f32 %v675, %v1065
  %v1194 = vadd.f32 %v676, %v1066
  %v1195 = vadd.f32 %v677, %v1067
  %v1196 = vadd.f32 %v678, %v1068
  %v1197 = vadd.f32 %v679, %v1069
  %v1198 = vadd.f32 %v680, %v1070
  %v1199 = vadd.f32 %v681, %v1071
  %v1200 = vadd.f32 %v682, %v1072
  %v1201 = vadd.f32 %v683, %v1073
  %v1202 = vadd.f32 %v684, %v1074
  %v1203 = vadd.f32 %v685, %v1075
  %v1204 = vadd.f32 %v686, %v1076
  %v1205 = vadd.f32 %v687, %v1077
  %v1206 = vadd.f32 %v688, %v1078
  %v1207 = vadd.f32 %v689, %v1079
  %v1208 = vadd.f32 %v690, %v1080
  %v1209 = vadd.f32 %v691, %v1081
  %v1210 = vadd.f32 %v692, %v1082
  %1211 = vset.pattern.permute.xlu0 2
  %1212 = vperm.xlu0 %1211, %v39
  %v1213 = vpop.permute.xlu0 %1212
  %1215 = vset.pattern.permute.xlu0 2
  %1216 = vperm.xlu0 %1215, %v40
  %v1217 = vpop.permute.xlu0 %1216
  %1219 = vset.pattern.permute.xlu0 2
  %1220 = vperm.xlu0 %1219, %v41
  %v1221 = vpop.permute.xlu0 %1220
  %1223 = vset.pattern.permute.xlu0 2
  %1224 = vperm.xlu0 %1223, %v42
  %v1225 = vpop.permute.xlu0 %1224
  %1227 = vset.pattern.permute.xlu0 2
  %1228 = vperm.xlu0 %1227, %v43
  %v1229 = vpop.permute.xlu0 %1228
  %1231 = vset.pattern.permute.xlu0 2
  %1232 = vperm.xlu0 %1231, %v44
  %v1233 = vpop.permute.xlu0 %1232
  %1235 = vset.pattern.permute.xlu0 2
  %1236 = vperm.xlu0 %1235, %v45
  %v1237 = vpop.permute.xlu0 %1236
  %1239 = vset.pattern.permute.xlu0 2
  %1240 = vperm.xlu0 %1239, %v46
  %v1241 = vpop.permute.xlu0 %1240
  %1243 = vset.pattern.permute.xlu0 2
  %1244 = vperm.xlu0 %1243, %v47
  %v1245 = vpop.permute.xlu0 %1244
  %1247 = vset.pattern.permute.xlu0 2
  %1248 = vperm.xlu0 %1247, %v48
  %v1249 = vpop.permute.xlu0 %1248
  %1251 = vset.pattern.permute.xlu0 2
  %1252 = vperm.xlu0 %1251, %v49
  %v1253 = vpop.permute.xlu0 %1252
  %1255 = vset.pattern.permute.xlu0 2
  %1256 = vperm.xlu0 %1255, %v50
  %v1257 = vpop.permute.xlu0 %1256
  %1259 = vset.pattern.permute.xlu0 2
  %1260 = vperm.xlu0 %1259, %v51
  %v1261 = vpop.permute.xlu0 %1260
  %1263 = vset.pattern.permute.xlu0 2
  %1264 = vperm.xlu0 %1263, %v52
  %v1265 = vpop.permute.xlu0 %1264
  %1267 = vset.pattern.permute.xlu0 2
  %1268 = vperm.xlu0 %1267, %v53
  %v1269 = vpop.permute.xlu0 %1268
  %1271 = vset.pattern.permute.xlu0 2
  %1272 = vperm.xlu0 %1271, %v54
  %v1273 = vpop.permute.xlu0 %1272
  %1275 = vset.pattern.permute.xlu0 2
  %1276 = vperm.xlu0 %1275, %v55
  %v1277 = vpop.permute.xlu0 %1276
  %1279 = vset.pattern.permute.xlu0 2
  %1280 = vperm.xlu0 %1279, %v56
  %v1281 = vpop.permute.xlu0 %1280
  %1283 = vset.pattern.permute.xlu0 2
  %1284 = vperm.xlu0 %1283, %v57
  %v1285 = vpop.permute.xlu0 %1284
  %1287 = vset.pattern.permute.xlu0 2
  %1288 = vperm.xlu0 %1287, %v58
  %v1289 = vpop.permute.xlu0 %1288
  %1291 = vset.pattern.permute.xlu0 2
  %1292 = vperm.xlu0 %1291, %v59
  %v1293 = vpop.permute.xlu0 %1292
  %1295 = vset.pattern.permute.xlu0 2
  %1296 = vperm.xlu0 %1295, %v60
  %v1297 = vpop.permute.xlu0 %1296
  %1299 = vset.pattern.permute.xlu0 2
  %1300 = vperm.xlu0 %1299, %v61
  %v1301 = vpop.permute.xlu0 %1300
  %1303 = vset.pattern.permute.xlu0 2
  %1304 = vperm.xlu0 %1303, %v62
  %v1305 = vpop.permute.xlu0 %1304
  %1307 = vset.pattern.permute.xlu0 2
  %1308 = vperm.xlu0 %1307, %v63
  %v1309 = vpop.permute.xlu0 %1308
  %1311 = vset.pattern.permute.xlu0 2
  %1312 = vperm.xlu0 %1311, %v64
  %v1313 = vpop.permute.xlu0 %1312
  %1315 = vset.pattern.permute.xlu0 2
  %1316 = vperm.xlu0 %1315, %v65
  %v1317 = vpop.permute.xlu0 %1316
  %1319 = vset.pattern.permute.xlu0 2
  %1320 = vperm.xlu0 %1319, %v66
  %v1321 = vpop.permute.xlu0 %1320
  %1323 = vset.pattern.permute.xlu0 2
  %1324 = vperm.xlu0 %1323, %v67
  %v1325 = vpop.permute.xlu0 %1324
  %1327 = vset.pattern.permute.xlu0 2
  %1328 = vperm.xlu0 %1327, %v68
  %v1329 = vpop.permute.xlu0 %1328
  %1331 = vset.pattern.permute.xlu0 2
  %1332 = vperm.xlu0 %1331, %v69
  %v1333 = vpop.permute.xlu0 %1332
  %1335 = vset.pattern.permute.xlu0 2
  %1336 = vperm.xlu0 %1335, %v70
  %v1337 = vpop.permute.xlu0 %1336
  %1339 = vset.pattern.permute.xlu0 2
  %1340 = vperm.xlu0 %1339, %v71
  %v1341 = vpop.permute.xlu0 %1340
  %1343 = vset.pattern.permute.xlu0 2
  %1344 = vperm.xlu0 %1343, %v72
  %v1345 = vpop.permute.xlu0 %1344
  %1347 = vset.pattern.permute.xlu0 2
  %1348 = vperm.xlu0 %1347, %v73
  %v1349 = vpop.permute.xlu0 %1348
  %1351 = vset.pattern.permute.xlu0 2
  %1352 = vperm.xlu0 %1351, %v74
  %v1353 = vpop.permute.xlu0 %1352
  %1355 = vset.pattern.permute.xlu0 2
  %1356 = vperm.xlu0 %1355, %v75
  %v1357 = vpop.permute.xlu0 %1356
  %1359 = vset.pattern.permute.xlu0 2
  %1360 = vperm.xlu0 %1359, %v76
  %v1361 = vpop.permute.xlu0 %1360
  %1363 = vset.pattern.permute.xlu0 2
  %1364 = vperm.xlu0 %1363, %v77
  %v1365 = vpop.permute.xlu0 %1364
  %1367 = vset.pattern.permute.xlu0 2
  %1368 = vperm.xlu0 %1367, %v78
  %v1369 = vpop.permute.xlu0 %1368
  %1371 = vset.pattern.permute.xlu0 2
  %1372 = vperm.xlu0 %1371, %v79
  %v1373 = vpop.permute.xlu0 %1372
  %1375 = vset.pattern.permute.xlu0 2
  %1376 = vperm.xlu0 %1375, %v80
  %v1377 = vpop.permute.xlu0 %1376
  %1379 = vset.pattern.permute.xlu0 2
  %1380 = vperm.xlu0 %1379, %v81
  %v1381 = vpop.permute.xlu0 %1380
  %1383 = vset.pattern.permute.xlu0 2
  %1384 = vperm.xlu0 %1383, %v82
  %v1385 = vpop.permute.xlu0 %1384
  %1387 = vset.pattern.permute.xlu0 2
  %1388 = vperm.xlu0 %1387, %v83
  %v1389 = vpop.permute.xlu0 %1388
  %1391 = vset.pattern.permute.xlu0 2
  %1392 = vperm.xlu0 %1391, %v84
  %v1393 = vpop.permute.xlu0 %1392
  %1395 = vset.pattern.permute.xlu0 2
  %1396 = vperm.xlu0 %1395, %v85
  %v1397 = vpop.permute.xlu0 %1396
  %1399 = vset.pattern.permute.xlu0 2
  %1400 = vperm.xlu0 %1399, %v86
  %v1401 = vpop.permute.xlu0 %1400
  %1403 = vset.pattern.permute.xlu0 2
  %1404 = vperm.xlu0 %1403, %v87
  %v1405 = vpop.permute.xlu0 %1404
  %1407 = vset.pattern.permute.xlu0 2
  %1408 = vperm.xlu0 %1407, %v88
  %v1409 = vpop.permute.xlu0 %1408
  %1411 = vset.pattern.permute.xlu0 2
  %1412 = vperm.xlu0 %1411, %v89
  %v1413 = vpop.permute.xlu0 %1412
  %1415 = vset.pattern.permute.xlu0 2
  %1416 = vperm.xlu0 %1415, %v90
  %v1417 = vpop.permute.xlu0 %1416
  %1419 = vset.pattern.permute.xlu0 2
  %1420 = vperm.xlu0 %1419, %v91
  %v1421 = vpop.permute.xlu0 %1420
  %1423 = vset.pattern.permute.xlu0 2
  %1424 = vperm.xlu0 %1423, %v92
  %v1425 = vpop.permute.xlu0 %1424
  %1427 = vset.pattern.permute.xlu0 2
  %1428 = vperm.xlu0 %1427, %v93
  %v1429 = vpop.permute.xlu0 %1428
  %1431 = vset.pattern.permute.xlu0 2
  %1432 = vperm.xlu0 %1431, %v94
  %v1433 = vpop.permute.xlu0 %1432
  %1435 = vset.pattern.permute.xlu0 2
  %1436 = vperm.xlu0 %1435, %v95
  %v1437 = vpop.permute.xlu0 %1436
  %1439 = vset.pattern.permute.xlu0 2
  %1440 = vperm.xlu0 %1439, %v96
  %v1441 = vpop.permute.xlu0 %1440
  %1443 = vset.pattern.permute.xlu0 2
  %1444 = vperm.xlu0 %1443, %v97
  %v1445 = vpop.permute.xlu0 %1444
  %1447 = vset.pattern.permute.xlu0 2
  %1448 = vperm.xlu0 %1447, %v98
  %v1449 = vpop.permute.xlu0 %1448
  %1451 = vset.pattern.permute.xlu0 2
  %1452 = vperm.xlu0 %1451, %v99
  %v1453 = vpop.permute.xlu0 %1452
  %1455 = vset.pattern.permute.xlu0 2
  %1456 = vperm.xlu0 %1455, %v100
  %v1457 = vpop.permute.xlu0 %1456
  %1459 = vset.pattern.permute.xlu0 2
  %1460 = vperm.xlu0 %1459, %v101
  %v1461 = vpop.permute.xlu0 %1460
  %1463 = vset.pattern.permute.xlu0 2
  %1464 = vperm.xlu0 %1463, %v102
  %v1465 = vpop.permute.xlu0 %1464
  %v1467 = vperm.slane %v103, 2
  %v1468 = vperm.slane %v103, 6
  %v1471 = vperm.slane %v1467, 2
  %v1472 = vperm.slane %v1468, 2
  %v1473 = vmul.f32 %v1213, %v1471
  %v1474 = vmul.f32 %v1213, %v1472
  %v1475 = vmul.f32 %v1217, %v1471
  %v1476 = vmul.f32 %v1217, %v1472
  %v1477 = vmul.f32 %v1221, %v1471
  %v1478 = vmul.f32 %v1221, %v1472
  %v1479 = vmul.f32 %v1225, %v1471
  %v1480 = vmul.f32 %v1225, %v1472
  %v1481 = vmul.f32 %v1229, %v1471
  %v1482 = vmul.f32 %v1229, %v1472
  %v1483 = vmul.f32 %v1233, %v1471
  %v1484 = vmul.f32 %v1233, %v1472
  %v1485 = vmul.f32 %v1237, %v1471
  %v1486 = vmul.f32 %v1237, %v1472
  %v1487 = vmul.f32 %v1241, %v1471
  %v1488 = vmul.f32 %v1241, %v1472
  %v1489 = vmul.f32 %v1245, %v1471
  %v1490 = vmul.f32 %v1245, %v1472
  %v1491 = vmul.f32 %v1249, %v1471
  %v1492 = vmul.f32 %v1249, %v1472
  %v1493 = vmul.f32 %v1253, %v1471
  %v1494 = vmul.f32 %v1253, %v1472
  %v1495 = vmul.f32 %v1257, %v1471
  %v1496 = vmul.f32 %v1257, %v1472
  %v1497 = vmul.f32 %v1261, %v1471
  %v1498 = vmul.f32 %v1261, %v1472
  %v1499 = vmul.f32 %v1265, %v1471
  %v1500 = vmul.f32 %v1265, %v1472
  %v1501 = vmul.f32 %v1269, %v1471
  %v1502 = vmul.f32 %v1269, %v1472
  %v1503 = vmul.f32 %v1273, %v1471
  %v1504 = vmul.f32 %v1273, %v1472
  %v1505 = vmul.f32 %v1277, %v1471
  %v1506 = vmul.f32 %v1277, %v1472
  %v1507 = vmul.f32 %v1281, %v1471
  %v1508 = vmul.f32 %v1281, %v1472
  %v1509 = vmul.f32 %v1285, %v1471
  %v1510 = vmul.f32 %v1285, %v1472
  %v1511 = vmul.f32 %v1289, %v1471
  %v1512 = vmul.f32 %v1289, %v1472
  %v1513 = vmul.f32 %v1293, %v1471
  %v1514 = vmul.f32 %v1293, %v1472
  %v1515 = vmul.f32 %v1297, %v1471
  %v1516 = vmul.f32 %v1297, %v1472
  %v1517 = vmul.f32 %v1301, %v1471
  %v1518 = vmul.f32 %v1301, %v1472
  %v1519 = vmul.f32 %v1305, %v1471
  %v1520 = vmul.f32 %v1305, %v1472
  %v1521 = vmul.f32 %v1309, %v1471
  %v1522 = vmul.f32 %v1309, %v1472
  %v1523 = vmul.f32 %v1313, %v1471
  %v1524 = vmul.f32 %v1313, %v1472
  %v1525 = vmul.f32 %v1317, %v1471
  %v1526 = vmul.f32 %v1317, %v1472
  %v1527 = vmul.f32 %v1321, %v1471
  %v1528 = vmul.f32 %v1321, %v1472
  %v1529 = vmul.f32 %v1325, %v1471
  %v1530 = vmul.f32 %v1325, %v1472
  %v1531 = vmul.f32 %v1329, %v1471
  %v1532 = vmul.f32 %v1329, %v1472
  %v1533 = vmul.f32 %v1333, %v1471
  %v1534 = vmul.f32 %v1333, %v1472
  %v1535 = vmul.f32 %v1337, %v1471
  %v1536 = vmul.f32 %v1337, %v1472
  %v1537 = vmul.f32 %v1341, %v1471
  %v1538 = vmul.f32 %v1341, %v1472
  %v1539 = vmul.f32 %v1345, %v1471
  %v1540 = vmul.f32 %v1345, %v1472
  %v1541 = vmul.f32 %v1349, %v1471
  %v1542 = vmul.f32 %v1349, %v1472
  %v1543 = vmul.f32 %v1353, %v1471
  %v1544 = vmul.f32 %v1353, %v1472
  %v1545 = vmul.f32 %v1357, %v1471
  %v1546 = vmul.f32 %v1357, %v1472
  %v1547 = vmul.f32 %v1361, %v1471
  %v1548 = vmul.f32 %v1361, %v1472
  %v1549 = vmul.f32 %v1365, %v1471
  %v1550 = vmul.f32 %v1365, %v1472
  %v1551 = vmul.f32 %v1369, %v1471
  %v1552 = vmul.f32 %v1369, %v1472
  %v1553 = vmul.f32 %v1373, %v1471
  %v1554 = vmul.f32 %v1373, %v1472
  %v1555 = vmul.f32 %v1377, %v1471
  %v1556 = vmul.f32 %v1377, %v1472
  %v1557 = vmul.f32 %v1381, %v1471
  %v1558 = vmul.f32 %v1381, %v1472
  %v1559 = vmul.f32 %v1385, %v1471
  %v1560 = vmul.f32 %v1385, %v1472
  %v1561 = vmul.f32 %v1389, %v1471
  %v1562 = vmul.f32 %v1389, %v1472
  %v1563 = vmul.f32 %v1393, %v1471
  %v1564 = vmul.f32 %v1393, %v1472
  %v1565 = vmul.f32 %v1397, %v1471
  %v1566 = vmul.f32 %v1397, %v1472
  %v1567 = vmul.f32 %v1401, %v1471
  %v1568 = vmul.f32 %v1401, %v1472
  %v1569 = vmul.f32 %v1405, %v1471
  %v1570 = vmul.f32 %v1405, %v1472
  %v1571 = vmul.f32 %v1409, %v1471
  %v1572 = vmul.f32 %v1409, %v1472
  %v1573 = vmul.f32 %v1413, %v1471
  %v1574 = vmul.f32 %v1413, %v1472
  %v1575 = vmul.f32 %v1417, %v1471
  %v1576 = vmul.f32 %v1417, %v1472
  %v1577 = vmul.f32 %v1421, %v1471
  %v1578 = vmul.f32 %v1421, %v1472
  %v1579 = vmul.f32 %v1425, %v1471
  %v1580 = vmul.f32 %v1425, %v1472
  %v1581 = vmul.f32 %v1429, %v1471
  %v1582 = vmul.f32 %v1429, %v1472
  %v1583 = vmul.f32 %v1433, %v1471
  %v1584 = vmul.f32 %v1433, %v1472
  %v1585 = vmul.f32 %v1437, %v1471
  %v1586 = vmul.f32 %v1437, %v1472
  %v1587 = vmul.f32 %v1441, %v1471
  %v1588 = vmul.f32 %v1441, %v1472
  %v1589 = vmul.f32 %v1445, %v1471
  %v1590 = vmul.f32 %v1445, %v1472
  %v1591 = vmul.f32 %v1449, %v1471
  %v1592 = vmul.f32 %v1449, %v1472
  %v1593 = vmul.f32 %v1453, %v1471
  %v1594 = vmul.f32 %v1453, %v1472
  %v1595 = vmul.f32 %v1457, %v1471
  %v1596 = vmul.f32 %v1457, %v1472
  %v1597 = vmul.f32 %v1461, %v1471
  %v1598 = vmul.f32 %v1461, %v1472
  %v1599 = vmul.f32 %v1465, %v1471
  %v1600 = vmul.f32 %v1465, %v1472
  %v1601 = vadd.f32 %v1083, %v1473
  %v1602 = vadd.f32 %v1084, %v1474
  %v1603 = vadd.f32 %v1085, %v1475
  %v1604 = vadd.f32 %v1086, %v1476
  %v1605 = vadd.f32 %v1087, %v1477
  %v1606 = vadd.f32 %v1088, %v1478
  %v1607 = vadd.f32 %v1089, %v1479
  %v1608 = vadd.f32 %v1090, %v1480
  %v1609 = vadd.f32 %v1091, %v1481
  %v1610 = vadd.f32 %v1092, %v1482
  %v1611 = vadd.f32 %v1093, %v1483
  %v1612 = vadd.f32 %v1094, %v1484
  %v1613 = vadd.f32 %v1095, %v1485
  %v1614 = vadd.f32 %v1096, %v1486
  %v1615 = vadd.f32 %v1097, %v1487
  %v1616 = vadd.f32 %v1098, %v1488
  %v1617 = vadd.f32 %v1099, %v1489
  %v1618 = vadd.f32 %v1100, %v1490
  %v1619 = vadd.f32 %v1101, %v1491
  %v1620 = vadd.f32 %v1102, %v1492
  %v1621 = vadd.f32 %v1103, %v1493
  %v1622 = vadd.f32 %v1104, %v1494
  %v1623 = vadd.f32 %v1105, %v1495
  %v1624 = vadd.f32 %v1106, %v1496
  %v1625 = vadd.f32 %v1107, %v1497
  %v1626 = vadd.f32 %v1108, %v1498
  %v1627 = vadd.f32 %v1109, %v1499
  %v1628 = vadd.f32 %v1110, %v1500
  %v1629 = vadd.f32 %v1111, %v1501
  %v1630 = vadd.f32 %v1112, %v1502
  %v1631 = vadd.f32 %v1113, %v1503
  %v1632 = vadd.f32 %v1114, %v1504
  %v1633 = vadd.f32 %v1115, %v1505
  %v1634 = vadd.f32 %v1116, %v1506
  %v1635 = vadd.f32 %v1117, %v1507
  %v1636 = vadd.f32 %v1118, %v1508
  %v1637 = vadd.f32 %v1119, %v1509
  %v1638 = vadd.f32 %v1120, %v1510
  %v1639 = vadd.f32 %v1121, %v1511
  %v1640 = vadd.f32 %v1122, %v1512
  %v1641 = vadd.f32 %v1123, %v1513
  %v1642 = vadd.f32 %v1124, %v1514
  %v1643 = vadd.f32 %v1125, %v1515
  %v1644 = vadd.f32 %v1126, %v1516
  %v1645 = vadd.f32 %v1127, %v1517
  %v1646 = vadd.f32 %v1128, %v1518
  %v1647 = vadd.f32 %v1129, %v1519
  %v1648 = vadd.f32 %v1130, %v1520
  %v1649 = vadd.f32 %v1131, %v1521
  %v1650 = vadd.f32 %v1132, %v1522
  %v1651 = vadd.f32 %v1133, %v1523
  %v1652 = vadd.f32 %v1134, %v1524
  %v1653 = vadd.f32 %v1135, %v1525
  %v1654 = vadd.f32 %v1136, %v1526
  %v1655 = vadd.f32 %v1137, %v1527
  %v1656 = vadd.f32 %v1138, %v1528
  %v1657 = vadd.f32 %v1139, %v1529
  %v1658 = vadd.f32 %v1140, %v1530
  %v1659 = vadd.f32 %v1141, %v1531
  %v1660 = vadd.f32 %v1142, %v1532
  %v1661 = vadd.f32 %v1143, %v1533
  %v1662 = vadd.f32 %v1144, %v1534
  %v1663 = vadd.f32 %v1145, %v1535
  %v1664 = vadd.f32 %v1146, %v1536
  %v1665 = vadd.f32 %v1147, %v1537
  %v1666 = vadd.f32 %v1148, %v1538
  %v1667 = vadd.f32 %v1149, %v1539
  %v1668 = vadd.f32 %v1150, %v1540
  %v1669 = vadd.f32 %v1151, %v1541
  %v1670 = vadd.f32 %v1152, %v1542
  %v1671 = vadd.f32 %v1153, %v1543
  %v1672 = vadd.f32 %v1154, %v1544
  %v1673 = vadd.f32 %v1155, %v1545
  %v1674 = vadd.f32 %v1156, %v1546
  %v1675 = vadd.f32 %v1157, %v1547
  %v1676 = vadd.f32 %v1158, %v1548
  %v1677 = vadd.f32 %v1159, %v1549
  %v1678 = vadd.f32 %v1160, %v1550
  %v1679 = vadd.f32 %v1161, %v1551
  %v1680 = vadd.f32 %v1162, %v1552
  %v1681 = vadd.f32 %v1163, %v1553
  %v1682 = vadd.f32 %v1164, %v1554
  %v1683 = vadd.f32 %v1165, %v1555
  %v1684 = vadd.f32 %v1166, %v1556
  %v1685 = vadd.f32 %v1167, %v1557
  %v1686 = vadd.f32 %v1168, %v1558
  %v1687 = vadd.f32 %v1169, %v1559
  %v1688 = vadd.f32 %v1170, %v1560
  %v1689 = vadd.f32 %v1171, %v1561
  %v1690 = vadd.f32 %v1172, %v1562
  %v1691 = vadd.f32 %v1173, %v1563
  %v1692 = vadd.f32 %v1174, %v1564
  %v1693 = vadd.f32 %v1175, %v1565
  %v1694 = vadd.f32 %v1176, %v1566
  %v1695 = vadd.f32 %v1177, %v1567
  %v1696 = vadd.f32 %v1178, %v1568
  %v1697 = vadd.f32 %v1179, %v1569
  %v1698 = vadd.f32 %v1180, %v1570
  %v1699 = vadd.f32 %v1181, %v1571
  %v1700 = vadd.f32 %v1182, %v1572
  %v1701 = vadd.f32 %v1183, %v1573
  %v1702 = vadd.f32 %v1184, %v1574
  %v1703 = vadd.f32 %v1185, %v1575
  %v1704 = vadd.f32 %v1186, %v1576
  %v1705 = vadd.f32 %v1187, %v1577
  %v1706 = vadd.f32 %v1188, %v1578
  %v1707 = vadd.f32 %v1189, %v1579
  %v1708 = vadd.f32 %v1190, %v1580
  %v1709 = vadd.f32 %v1191, %v1581
  %v1710 = vadd.f32 %v1192, %v1582
  %v1711 = vadd.f32 %v1193, %v1583
  %v1712 = vadd.f32 %v1194, %v1584
  %v1713 = vadd.f32 %v1195, %v1585
  %v1714 = vadd.f32 %v1196, %v1586
  %v1715 = vadd.f32 %v1197, %v1587
  %v1716 = vadd.f32 %v1198, %v1588
  %v1717 = vadd.f32 %v1199, %v1589
  %v1718 = vadd.f32 %v1200, %v1590
  %v1719 = vadd.f32 %v1201, %v1591
  %v1720 = vadd.f32 %v1202, %v1592
  %v1721 = vadd.f32 %v1203, %v1593
  %v1722 = vadd.f32 %v1204, %v1594
  %v1723 = vadd.f32 %v1205, %v1595
  %v1724 = vadd.f32 %v1206, %v1596
  %v1725 = vadd.f32 %v1207, %v1597
  %v1726 = vadd.f32 %v1208, %v1598
  %v1727 = vadd.f32 %v1209, %v1599
  %v1728 = vadd.f32 %v1210, %v1600
  %v1729 = vmax.f32 %v1601, 0.0
  %v1730 = vmax.f32 %v1602, 0.0
  %v1731 = vmax.f32 %v1603, 0.0
  %v1732 = vmax.f32 %v1604, 0.0
  %v1733 = vmax.f32 %v1605, 0.0
  %v1734 = vmax.f32 %v1606, 0.0
  %v1735 = vmax.f32 %v1607, 0.0
  %v1736 = vmax.f32 %v1608, 0.0
  %v1737 = vmax.f32 %v1609, 0.0
  %v1738 = vmax.f32 %v1610, 0.0
  %v1739 = vmax.f32 %v1611, 0.0
  %v1740 = vmax.f32 %v1612, 0.0
  %v1741 = vmax.f32 %v1613, 0.0
  %v1742 = vmax.f32 %v1614, 0.0
  %v1743 = vmax.f32 %v1615, 0.0
  %v1744 = vmax.f32 %v1616, 0.0
  %v1745 = vmax.f32 %v1617, 0.0
  %v1746 = vmax.f32 %v1618, 0.0
  %v1747 = vmax.f32 %v1619, 0.0
  %v1748 = vmax.f32 %v1620, 0.0
  %v1749 = vmax.f32 %v1621, 0.0
  %v1750 = vmax.f32 %v1622, 0.0
  %v1751 = vmax.f32 %v1623, 0.0
  %v1752 = vmax.f32 %v1624, 0.0
  %v1753 = vmax.f32 %v1625, 0.0
  %v1754 = vmax.f32 %v1626, 0.0
  %v1755 = vmax.f32 %v1627, 0.0
  %v1756 = vmax.f32 %v1628, 0.0
  %v1757 = vmax.f32 %v1629, 0.0
  %v1758 = vmax.f32 %v1630, 0.0
  %v1759 = vmax.f32 %v1631, 0.0
  %v1760 = vmax.f32 %v1632, 0.0
  %v1761 = vmax.f32 %v1633, 0.0
  %v1762 = vmax.f32 %v1634, 0.0
  %v1763 = vmax.f32 %v1635, 0.0
  %v1764 = vmax.f32 %v1636, 0.0
  %v1765 = vmax.f32 %v1637, 0.0
  %v1766 = vmax.f32 %v1638, 0.0
  %v1767 = vmax.f32 %v1639, 0.0
  %v1768 = vmax.f32 %v1640, 0.0
  %v1769 = vmax.f32 %v1641, 0.0
  %v1770 = vmax.f32 %v1642, 0.0
  %v1771 = vmax.f32 %v1643, 0.0
  %v1772 = vmax.f32 %v1644, 0.0
  %v1773 = vmax.f32 %v1645, 0.0
  %v1774 = vmax.f32 %v1646, 0.0
  %v1775 = vmax.f32 %v1647, 0.0
  %v1776 = vmax.f32 %v1648, 0.0
  %v1777 = vmax.f32 %v1649, 0.0
  %v1778 = vmax.f32 %v1650, 0.0
  %v1779 = vmax.f32 %v1651, 0.0
  %v1780 = vmax.f32 %v1652, 0.0
  %v1781 = vmax.f32 %v1653, 0.0
  %v1782 = vmax.f32 %v1654, 0.0
  %v1783 = vmax.f32 %v1655, 0.0
  %v1784 = vmax.f32 %v1656, 0.0
  %v1785 = vmax.f32 %v1657, 0.0
  %v1786 = vmax.f32 %v1658, 0.0
  %v1787 = vmax.f32 %v1659, 0.0
  %v1788 = vmax.f32 %v1660, 0.0
  %v1789 = vmax.f32 %v1661, 0.0
  %v1790 = vmax.f32 %v1662, 0.0
  %v1791 = vmax.f32 %v1663, 0.0
  %v1792 = vmax.f32 %v1664, 0.0
  %v1793 = vmax.f32 %v1665, 0.0
  %v1794 = vmax.f32 %v1666, 0.0
  %v1795 = vmax.f32 %v1667, 0.0
  %v1796 = vmax.f32 %v1668, 0.0
  %v1797 = vmax.f32 %v1669, 0.0
  %v1798 = vmax.f32 %v1670, 0.0
  %v1799 = vmax.f32 %v1671, 0.0
  %v1800 = vmax.f32 %v1672, 0.0
  %v1801 = vmax.f32 %v1673, 0.0
  %v1802 = vmax.f32 %v1674, 0.0
  %v1803 = vmax.f32 %v1675, 0.0
  %v1804 = vmax.f32 %v1676, 0.0
  %v1805 = vmax.f32 %v1677, 0.0
  %v1806 = vmax.f32 %v1678, 0.0
  %v1807 = vmax.f32 %v1679, 0.0
  %v1808 = vmax.f32 %v1680, 0.0
  %v1809 = vmax.f32 %v1681, 0.0
  %v1810 = vmax.f32 %v1682, 0.0
  %v1811 = vmax.f32 %v1683, 0.0
  %v1812 = vmax.f32 %v1684, 0.0
  %v1813 = vmax.f32 %v1685, 0.0
  %v1814 = vmax.f32 %v1686, 0.0
  %v1815 = vmax.f32 %v1687, 0.0
  %v1816 = vmax.f32 %v1688, 0.0
  %v1817 = vmax.f32 %v1689, 0.0
  %v1818 = vmax.f32 %v1690, 0.0
  %v1819 = vmax.f32 %v1691, 0.0
  %v1820 = vmax.f32 %v1692, 0.0
  %v1821 = vmax.f32 %v1693, 0.0
  %v1822 = vmax.f32 %v1694, 0.0
  %v1823 = vmax.f32 %v1695, 0.0
  %v1824 = vmax.f32 %v1696, 0.0
  %v1825 = vmax.f32 %v1697, 0.0
  %v1826 = vmax.f32 %v1698, 0.0
  %v1827 = vmax.f32 %v1699, 0.0
  %v1828 = vmax.f32 %v1700, 0.0
  %v1829 = vmax.f32 %v1701, 0.0
  %v1830 = vmax.f32 %v1702, 0.0
  %v1831 = vmax.f32 %v1703, 0.0
  %v1832 = vmax.f32 %v1704, 0.0
  %v1833 = vmax.f32 %v1705, 0.0
  %v1834 = vmax.f32 %v1706, 0.0
  %v1835 = vmax.f32 %v1707, 0.0
  %v1836 = vmax.f32 %v1708, 0.0
  %v1837 = vmax.f32 %v1709, 0.0
  %v1838 = vmax.f32 %v1710, 0.0
  %v1839 = vmax.f32 %v1711, 0.0
  %v1840 = vmax.f32 %v1712, 0.0
  %v1841 = vmax.f32 %v1713, 0.0
  %v1842 = vmax.f32 %v1714, 0.0
  %v1843 = vmax.f32 %v1715, 0.0
  %v1844 = vmax.f32 %v1716, 0.0
  %v1845 = vmax.f32 %v1717, 0.0
  %v1846 = vmax.f32 %v1718, 0.0
  %v1847 = vmax.f32 %v1719, 0.0
  %v1848 = vmax.f32 %v1720, 0.0
  %v1849 = vmax.f32 %v1721, 0.0
  %v1850 = vmax.f32 %v1722, 0.0
  %v1851 = vmax.f32 %v1723, 0.0
  %v1852 = vmax.f32 %v1724, 0.0
  %v1853 = vmax.f32 %v1725, 0.0
  %v1854 = vmax.f32 %v1726, 0.0
  %v1855 = vmax.f32 %v1727, 0.0
  %v1856 = vmax.f32 %v1728, 0.0
  %v1857 = vpack.c.bf16 %v1731, %v1729
  %v1858 = vpack.c.bf16 %v1732, %v1730
  %v1859 = vpack.c.bf16 %v1735, %v1733
  %v1860 = vpack.c.bf16 %v1736, %v1734
  %v1861 = vpack.c.bf16 %v1739, %v1737
  %v1862 = vpack.c.bf16 %v1740, %v1738
  %v1863 = vpack.c.bf16 %v1743, %v1741
  %v1864 = vpack.c.bf16 %v1744, %v1742
  %v1865 = vpack.c.bf16 %v1747, %v1745
  %v1866 = vpack.c.bf16 %v1748, %v1746
  %v1867 = vpack.c.bf16 %v1751, %v1749
  %v1868 = vpack.c.bf16 %v1752, %v1750
  %v1869 = vpack.c.bf16 %v1755, %v1753
  %v1870 = vpack.c.bf16 %v1756, %v1754
  %v1871 = vpack.c.bf16 %v1759, %v1757
  %v1872 = vpack.c.bf16 %v1760, %v1758
  %v1873 = vpack.c.bf16 %v1763, %v1761
  %v1874 = vpack.c.bf16 %v1764, %v1762
  %v1875 = vpack.c.bf16 %v1767, %v1765
  %v1876 = vpack.c.bf16 %v1768, %v1766
  %v1877 = vpack.c.bf16 %v1771, %v1769
  %v1878 = vpack.c.bf16 %v1772, %v1770
  %v1879 = vpack.c.bf16 %v1775, %v1773
  %v1880 = vpack.c.bf16 %v1776, %v1774
  %v1881 = vpack.c.bf16 %v1779, %v1777
  %v1882 = vpack.c.bf16 %v1780, %v1778
  %v1883 = vpack.c.bf16 %v1783, %v1781
  %v1884 = vpack.c.bf16 %v1784, %v1782
  %v1885 = vpack.c.bf16 %v1787, %v1785
  %v1886 = vpack.c.bf16 %v1788, %v1786
  %v1887 = vpack.c.bf16 %v1791, %v1789
  %v1888 = vpack.c.bf16 %v1792, %v1790
  %v1889 = vpack.c.bf16 %v1795, %v1793
  %v1890 = vpack.c.bf16 %v1796, %v1794
  %v1891 = vpack.c.bf16 %v1799, %v1797
  %v1892 = vpack.c.bf16 %v1800, %v1798
  %v1893 = vpack.c.bf16 %v1803, %v1801
  %v1894 = vpack.c.bf16 %v1804, %v1802
  %v1895 = vpack.c.bf16 %v1807, %v1805
  %v1896 = vpack.c.bf16 %v1808, %v1806
  %v1897 = vpack.c.bf16 %v1811, %v1809
  %v1898 = vpack.c.bf16 %v1812, %v1810
  %v1899 = vpack.c.bf16 %v1815, %v1813
  %v1900 = vpack.c.bf16 %v1816, %v1814
  %v1901 = vpack.c.bf16 %v1819, %v1817
  %v1902 = vpack.c.bf16 %v1820, %v1818
  %v1903 = vpack.c.bf16 %v1823, %v1821
  %v1904 = vpack.c.bf16 %v1824, %v1822
  %v1905 = vpack.c.bf16 %v1827, %v1825
  %v1906 = vpack.c.bf16 %v1828, %v1826
  %v1907 = vpack.c.bf16 %v1831, %v1829
  %v1908 = vpack.c.bf16 %v1832, %v1830
  %v1909 = vpack.c.bf16 %v1835, %v1833
  %v1910 = vpack.c.bf16 %v1836, %v1834
  %v1911 = vpack.c.bf16 %v1839, %v1837
  %v1912 = vpack.c.bf16 %v1840, %v1838
  %v1913 = vpack.c.bf16 %v1843, %v1841
  %v1914 = vpack.c.bf16 %v1844, %v1842
  %v1915 = vpack.c.bf16 %v1847, %v1845
  %v1916 = vpack.c.bf16 %v1848, %v1846
  %v1917 = vpack.c.bf16 %v1851, %v1849
  %v1918 = vpack.c.bf16 %v1852, %v1850
  %v1919 = vpack.c.bf16 %v1855, %v1853
  %v1920 = vpack.c.bf16 %v1856, %v1854
  %v1921 = vld [vmem:[%s3] sm:$0xff]
  %v1922 = vld [vmem:[%s3 + $0x8] sm:$0xff]
  %v1923 = vld [vmem:[%s3 + $0x10] sm:$0xff]
  %v1924 = vld [vmem:[%s3 + $0x18] sm:$0xff]
  %v1925 = vld [vmem:[%s3 + $0x20] sm:$0xff]
  %v1926 = vld [vmem:[%s3 + $0x28] sm:$0xff]
  %v1927 = vld [vmem:[%s3 + $0x30] sm:$0xff]
  %v1928 = vld [vmem:[%s3 + $0x38] sm:$0xff]
  %v1929 = vld [vmem:[%s3 + $0x40] sm:$0xff]
  %v1930 = vld [vmem:[%s3 + $0x48] sm:$0xff]
  %v1931 = vld [vmem:[%s3 + $0x50] sm:$0xff]
  %v1932 = vld [vmem:[%s3 + $0x58] sm:$0xff]
  %v1933 = vld [vmem:[%s3 + $0x60] sm:$0xff]
  %v1934 = vld [vmem:[%s3 + $0x68] sm:$0xff]
  %v1935 = vld [vmem:[%s3 + $0x70] sm:$0xff]
  %v1936 = vld [vmem:[%s3 + $0x78] sm:$0xff]
  %v1937 = vld [vmem:[%s3 + $0x80] sm:$0xff]
  %v1938 = vld [vmem:[%s3 + $0x88] sm:$0xff]
  %v1939 = vld [vmem:[%s3 + $0x90] sm:$0xff]
  %v1940 = vld [vmem:[%s3 + $0x98] sm:$0xff]
  %v1941 = vld [vmem:[%s3 + $0xa0] sm:$0xff]
  %v1942 = vld [vmem:[%s3 + $0xa8] sm:$0xff]
  %v1943 = vld [vmem:[%s3 + $0xb0] sm:$0xff]
  %v1944 = vld [vmem:[%s3 + $0xb8] sm:$0xff]
  %v1945 = vld [vmem:[%s3 + $0xc0] sm:$0xff]
  %v1946 = vld [vmem:[%s3 + $0xc8] sm:$0xff]
  %v1947 = vld [vmem:[%s3 + $0xd0] sm:$0xff]
  %v1948 = vld [vmem:[%s3 + $0xd8] sm:$0xff]
  %v1949 = vld [vmem:[%s3 + $0xe0] sm:$0xff]
  %v1950 = vld [vmem:[%s3 + $0xe8] sm:$0xff]
  %v1951 = vld [vmem:[%s3 + $0xf0] sm:$0xff]
  %v1952 = vld [vmem:[%s3 + $0xf8] sm:$0xff]
  %v1953 = vld [vmem:[%s4] sm:$0x3]
  %v1955 = vperm.slane %v1953, 0
  %v1956 = vperm.slane %v1953, 1
  %v1991 = vunpack.c.l.b16 %v1921
  %v1992 = vunpack.c.h.b16 %v1921
  %v1993 = vunpack.c.l.b16 %v1922
  %v1994 = vunpack.c.h.b16 %v1922
  %v1995 = vunpack.c.l.b16 %v1923
  %v1996 = vunpack.c.h.b16 %v1923
  %v1997 = vunpack.c.l.b16 %v1924
  %v1998 = vunpack.c.h.b16 %v1924
  %v1999 = vunpack.c.l.b16 %v1925
  %v2000 = vunpack.c.h.b16 %v1925
  %v2001 = vunpack.c.l.b16 %v1926
  %v2002 = vunpack.c.h.b16 %v1926
  %v2003 = vunpack.c.l.b16 %v1927
  %v2004 = vunpack.c.h.b16 %v1927
  %v2005 = vunpack.c.l.b16 %v1928
  %v2006 = vunpack.c.h.b16 %v1928
  %v2007 = vunpack.c.l.b16 %v1929
  %v2008 = vunpack.c.h.b16 %v1929
  %v2009 = vunpack.c.l.b16 %v1930
  %v2010 = vunpack.c.h.b16 %v1930
  %v2011 = vunpack.c.l.b16 %v1931
  %v2012 = vunpack.c.h.b16 %v1931
  %v2013 = vunpack.c.l.b16 %v1932
  %v2014 = vunpack.c.h.b16 %v1932
  %v2015 = vunpack.c.l.b16 %v1933
  %v2016 = vunpack.c.h.b16 %v1933
  %v2017 = vunpack.c.l.b16 %v1934
  %v2018 = vunpack.c.h.b16 %v1934
  %v2019 = vunpack.c.l.b16 %v1935
  %v2020 = vunpack.c.h.b16 %v1935
  %v2021 = vunpack.c.l.b16 %v1936
  %v2022 = vunpack.c.h.b16 %v1936
  %v2023 = vunpack.c.l.b16 %v1937
  %v2024 = vunpack.c.h.b16 %v1937
  %v2025 = vunpack.c.l.b16 %v1938
  %v2026 = vunpack.c.h.b16 %v1938
  %v2027 = vunpack.c.l.b16 %v1939
  %v2028 = vunpack.c.h.b16 %v1939
  %v2029 = vunpack.c.l.b16 %v1940
  %v2030 = vunpack.c.h.b16 %v1940
  %v2031 = vunpack.c.l.b16 %v1941
  %v2032 = vunpack.c.h.b16 %v1941
  %v2033 = vunpack.c.l.b16 %v1942
  %v2034 = vunpack.c.h.b16 %v1942
  %v2035 = vunpack.c.l.b16 %v1943
  %v2036 = vunpack.c.h.b16 %v1943
  %v2037 = vunpack.c.l.b16 %v1944
  %v2038 = vunpack.c.h.b16 %v1944
  %v2039 = vunpack.c.l.b16 %v1945
  %v2040 = vunpack.c.h.b16 %v1945
  %v2041 = vunpack.c.l.b16 %v1946
  %v2042 = vunpack.c.h.b16 %v1946
  %v2043 = vunpack.c.l.b16 %v1947
  %v2044 = vunpack.c.h.b16 %v1947
  %v2045 = vunpack.c.l.b16 %v1948
  %v2046 = vunpack.c.h.b16 %v1948
  %v2047 = vunpack.c.l.b16 %v1949
  %v2048 = vunpack.c.h.b16 %v1949
  %v2049 = vunpack.c.l.b16 %v1950
  %v2050 = vunpack.c.h.b16 %v1950
  %v2051 = vunpack.c.l.b16 %v1951
  %v2052 = vunpack.c.h.b16 %v1951
  %v2053 = vunpack.c.l.b16 %v1952
  %v2054 = vunpack.c.h.b16 %v1952
  %v2055 = vpack.c.b16 %v1993, %v1991
  %v2056 = vpack.c.b16 %v1994, %v1992
  %v2057 = vpack.c.b16 %v1997, %v1995
  %v2058 = vpack.c.b16 %v1998, %v1996
  %v2059 = vpack.c.b16 %v2001, %v1999
  %v2060 = vpack.c.b16 %v2002, %v2000
  %v2061 = vpack.c.b16 %v2005, %v2003
  %v2062 = vpack.c.b16 %v2006, %v2004
  %v2063 = vpack.c.b16 %v2009, %v2007
  %v2064 = vpack.c.b16 %v2010, %v2008
  %v2065 = vpack.c.b16 %v2013, %v2011
  %v2066 = vpack.c.b16 %v2014, %v2012
  %v2067 = vpack.c.b16 %v2017, %v2015
  %v2068 = vpack.c.b16 %v2018, %v2016
  %v2069 = vpack.c.b16 %v2021, %v2019
  %v2070 = vpack.c.b16 %v2022, %v2020
  %v2071 = vpack.c.b16 %v2025, %v2023
  %v2072 = vpack.c.b16 %v2026, %v2024
  %v2073 = vpack.c.b16 %v2029, %v2027
  %v2074 = vpack.c.b16 %v2030, %v2028
  %v2075 = vpack.c.b16 %v2033, %v2031
  %v2076 = vpack.c.b16 %v2034, %v2032
  %v2077 = vpack.c.b16 %v2037, %v2035
  %v2078 = vpack.c.b16 %v2038, %v2036
  %v2079 = vpack.c.b16 %v2041, %v2039
  %v2080 = vpack.c.b16 %v2042, %v2040
  %v2081 = vpack.c.b16 %v2045, %v2043
  %v2082 = vpack.c.b16 %v2046, %v2044
  %v2083 = vpack.c.b16 %v2049, %v2047
  %v2084 = vpack.c.b16 %v2050, %v2048
  %v2085 = vpack.c.b16 %v2053, %v2051
  %v2086 = vpack.c.b16 %v2054, %v2052
  %2119 = vmatpush.bf16.msra.mxu0 %v2069
  %2120 = vmatpush.bf16.msra.mxu0 %v2067
  %2121 = vmatpush.bf16.msra.mxu0 %v2065
  %2122 = vmatpush.bf16.msra.mxu0 %v2063
  %2123 = vmatpush.bf16.msra.mxu0 %v2061
  %2124 = vmatpush.bf16.msra.mxu0 %v2059
  %2125 = vmatpush.bf16.msra.mxu0 %v2057
  %2126 = vmatpush.bf16.msra.mxu0 %v2055
  %2127 = vmatmul.bf16.gmra.mxu0 %v1857
  %v2128 = vpop.f32.mrf.mxu0
  %v2129 = vadd.f32 %v1955, %v2128
  %v2130 = vpop.f32.mrf.mxu0
  %v2131 = vadd.f32 %v1955, %v2130
  %2132 = vmatmul.bf16.gmra.mxu0 %v1859
  %v2133 = vpop.f32.mrf.mxu0
  %v2134 = vadd.f32 %v1955, %v2133
  %v2135 = vpop.f32.mrf.mxu0
  %v2136 = vadd.f32 %v1955, %v2135
  %2137 = vmatmul.bf16.gmra.mxu0 %v1861
  %v2138 = vpop.f32.mrf.mxu0
  %v2139 = vadd.f32 %v1955, %v2138
  %v2140 = vpop.f32.mrf.mxu0
  %v2141 = vadd.f32 %v1955, %v2140
  %2142 = vmatmul.bf16.gmra.mxu0 %v1863
  %v2143 = vpop.f32.mrf.mxu0
  %v2144 = vadd.f32 %v1955, %v2143
  %v2145 = vpop.f32.mrf.mxu0
  %v2146 = vadd.f32 %v1955, %v2145
  %2147 = vmatmul.bf16.gmra.mxu0 %v1865
  %v2148 = vpop.f32.mrf.mxu0
  %v2149 = vadd.f32 %v1955, %v2148
  %v2150 = vpop.f32.mrf.mxu0
  %v2151 = vadd.f32 %v1955, %v2150
  %2152 = vmatmul.bf16.gmra.mxu0 %v1867
  %v2153 = vpop.f32.mrf.mxu0
  %v2154 = vadd.f32 %v1955, %v2153
  %v2155 = vpop.f32.mrf.mxu0
  %v2156 = vadd.f32 %v1955, %v2155
  %2157 = vmatmul.bf16.gmra.mxu0 %v1869
  %v2158 = vpop.f32.mrf.mxu0
  %v2159 = vadd.f32 %v1955, %v2158
  %v2160 = vpop.f32.mrf.mxu0
  %v2161 = vadd.f32 %v1955, %v2160
  %2162 = vmatmul.bf16.gmra.mxu0 %v1871
  %v2163 = vpop.f32.mrf.mxu0
  %v2164 = vadd.f32 %v1955, %v2163
  %v2165 = vpop.f32.mrf.mxu0
  %v2166 = vadd.f32 %v1955, %v2165
  %2167 = vmatmul.bf16.gmra.mxu0 %v1873
  %v2168 = vpop.f32.mrf.mxu0
  %v2169 = vadd.f32 %v1955, %v2168
  %v2170 = vpop.f32.mrf.mxu0
  %v2171 = vadd.f32 %v1955, %v2170
  %2172 = vmatmul.bf16.gmra.mxu0 %v1875
  %v2173 = vpop.f32.mrf.mxu0
  %v2174 = vadd.f32 %v1955, %v2173
  %v2175 = vpop.f32.mrf.mxu0
  %v2176 = vadd.f32 %v1955, %v2175
  %2177 = vmatmul.bf16.gmra.mxu0 %v1877
  %v2178 = vpop.f32.mrf.mxu0
  %v2179 = vadd.f32 %v1955, %v2178
  %v2180 = vpop.f32.mrf.mxu0
  %v2181 = vadd.f32 %v1955, %v2180
  %2182 = vmatmul.bf16.gmra.mxu0 %v1879
  %v2183 = vpop.f32.mrf.mxu0
  %v2184 = vadd.f32 %v1955, %v2183
  %v2185 = vpop.f32.mrf.mxu0
  %v2186 = vadd.f32 %v1955, %v2185
  %2187 = vmatmul.bf16.gmra.mxu0 %v1881
  %v2188 = vpop.f32.mrf.mxu0
  %v2189 = vadd.f32 %v1955, %v2188
  %v2190 = vpop.f32.mrf.mxu0
  %v2191 = vadd.f32 %v1955, %v2190
  %2192 = vmatmul.bf16.gmra.mxu0 %v1883
  %v2193 = vpop.f32.mrf.mxu0
  %v2194 = vadd.f32 %v1955, %v2193
  %v2195 = vpop.f32.mrf.mxu0
  %v2196 = vadd.f32 %v1955, %v2195
  %2197 = vmatmul.bf16.gmra.mxu0 %v1885
  %v2198 = vpop.f32.mrf.mxu0
  %v2199 = vadd.f32 %v1955, %v2198
  %v2200 = vpop.f32.mrf.mxu0
  %v2201 = vadd.f32 %v1955, %v2200
  %2202 = vmatmul.bf16.gmra.mxu0 %v1887
  %v2203 = vpop.f32.mrf.mxu0
  %v2204 = vadd.f32 %v1955, %v2203
  %v2205 = vpop.f32.mrf.mxu0
  %v2206 = vadd.f32 %v1955, %v2205
  %2207 = vmatmul.bf16.gmra.mxu0 %v1889
  %v2208 = vpop.f32.mrf.mxu0
  %v2209 = vadd.f32 %v1955, %v2208
  %v2210 = vpop.f32.mrf.mxu0
  %v2211 = vadd.f32 %v1955, %v2210
  %2212 = vmatmul.bf16.gmra.mxu0 %v1891
  %v2213 = vpop.f32.mrf.mxu0
  %v2214 = vadd.f32 %v1955, %v2213
  %v2215 = vpop.f32.mrf.mxu0
  %v2216 = vadd.f32 %v1955, %v2215
  %2217 = vmatmul.bf16.gmra.mxu0 %v1893
  %v2218 = vpop.f32.mrf.mxu0
  %v2219 = vadd.f32 %v1955, %v2218
  %v2220 = vpop.f32.mrf.mxu0
  %v2221 = vadd.f32 %v1955, %v2220
  %2222 = vmatmul.bf16.gmra.mxu0 %v1895
  %v2223 = vpop.f32.mrf.mxu0
  %v2224 = vadd.f32 %v1955, %v2223
  %v2225 = vpop.f32.mrf.mxu0
  %v2226 = vadd.f32 %v1955, %v2225
  %2227 = vmatmul.bf16.gmra.mxu0 %v1897
  %v2228 = vpop.f32.mrf.mxu0
  %v2229 = vadd.f32 %v1955, %v2228
  %v2230 = vpop.f32.mrf.mxu0
  %v2231 = vadd.f32 %v1955, %v2230
  %2232 = vmatmul.bf16.gmra.mxu0 %v1899
  %v2233 = vpop.f32.mrf.mxu0
  %v2234 = vadd.f32 %v1955, %v2233
  %v2235 = vpop.f32.mrf.mxu0
  %v2236 = vadd.f32 %v1955, %v2235
  %2237 = vmatmul.bf16.gmra.mxu0 %v1901
  %v2238 = vpop.f32.mrf.mxu0
  %v2239 = vadd.f32 %v1955, %v2238
  %v2240 = vpop.f32.mrf.mxu0
  %v2241 = vadd.f32 %v1955, %v2240
  %2242 = vmatmul.bf16.gmra.mxu0 %v1903
  %v2243 = vpop.f32.mrf.mxu0
  %v2244 = vadd.f32 %v1955, %v2243
  %v2245 = vpop.f32.mrf.mxu0
  %v2246 = vadd.f32 %v1955, %v2245
  %2247 = vmatmul.bf16.gmra.mxu0 %v1905
  %v2248 = vpop.f32.mrf.mxu0
  %v2249 = vadd.f32 %v1955, %v2248
  %v2250 = vpop.f32.mrf.mxu0
  %v2251 = vadd.f32 %v1955, %v2250
  %2252 = vmatmul.bf16.gmra.mxu0 %v1907
  %v2253 = vpop.f32.mrf.mxu0
  %v2254 = vadd.f32 %v1955, %v2253
  %v2255 = vpop.f32.mrf.mxu0
  %v2256 = vadd.f32 %v1955, %v2255
  %2257 = vmatmul.bf16.gmra.mxu0 %v1909
  %v2258 = vpop.f32.mrf.mxu0
  %v2259 = vadd.f32 %v1955, %v2258
  %v2260 = vpop.f32.mrf.mxu0
  %v2261 = vadd.f32 %v1955, %v2260
  %2262 = vmatmul.bf16.gmra.mxu0 %v1911
  %v2263 = vpop.f32.mrf.mxu0
  %v2264 = vadd.f32 %v1955, %v2263
  %v2265 = vpop.f32.mrf.mxu0
  %v2266 = vadd.f32 %v1955, %v2265
  %2267 = vmatmul.bf16.gmra.mxu0 %v1913
  %v2268 = vpop.f32.mrf.mxu0
  %v2269 = vadd.f32 %v1955, %v2268
  %v2270 = vpop.f32.mrf.mxu0
  %v2271 = vadd.f32 %v1955, %v2270
  %2272 = vmatmul.bf16.gmra.mxu0 %v1915
  %v2273 = vpop.f32.mrf.mxu0
  %v2274 = vadd.f32 %v1955, %v2273
  %v2275 = vpop.f32.mrf.mxu0
  %v2276 = vadd.f32 %v1955, %v2275
  %2277 = vmatmul.bf16.gmra.mxu0 %v1917
  %v2278 = vpop.f32.mrf.mxu0
  %v2279 = vadd.f32 %v1955, %v2278
  %v2280 = vpop.f32.mrf.mxu0
  %v2281 = vadd.f32 %v1955, %v2280
  %2282 = vmatmul.bf16.gmra.mxu0 %v1919
  %v2283 = vpop.f32.mrf.mxu0
  %v2284 = vadd.f32 %v1955, %v2283
  %v2285 = vpop.f32.mrf.mxu0
  %v2286 = vadd.f32 %v1955, %v2285
  %2287 = vdwg.mxu0
  %2288 = vmatpush.bf16.msra.mxu0 %v2085
  %2289 = vmatpush.bf16.msra.mxu0 %v2083
  %2290 = vmatpush.bf16.msra.mxu0 %v2081
  %2291 = vmatpush.bf16.msra.mxu0 %v2079
  %2292 = vmatpush.bf16.msra.mxu0 %v2077
  %2293 = vmatpush.bf16.msra.mxu0 %v2075
  %2294 = vmatpush.bf16.msra.mxu0 %v2073
  %2295 = vmatpush.bf16.msra.mxu0 %v2071
  %2296 = vmatmul.bf16.gmra.mxu0 %v1858
  %v2297 = vpop.f32.mrf.mxu0
  %v2298 = vadd.f32 %v2129, %v2297
  %v2299 = vpop.f32.mrf.mxu0
  %v2300 = vadd.f32 %v2131, %v2299
  %2301 = vmatmul.bf16.gmra.mxu0 %v1860
  %v2302 = vpop.f32.mrf.mxu0
  %v2303 = vadd.f32 %v2134, %v2302
  %v2304 = vpop.f32.mrf.mxu0
  %v2305 = vadd.f32 %v2136, %v2304
  %2306 = vmatmul.bf16.gmra.mxu0 %v1862
  %v2307 = vpop.f32.mrf.mxu0
  %v2308 = vadd.f32 %v2139, %v2307
  %v2309 = vpop.f32.mrf.mxu0
  %v2310 = vadd.f32 %v2141, %v2309
  %2311 = vmatmul.bf16.gmra.mxu0 %v1864
  %v2312 = vpop.f32.mrf.mxu0
  %v2313 = vadd.f32 %v2144, %v2312
  %v2314 = vpop.f32.mrf.mxu0
  %v2315 = vadd.f32 %v2146, %v2314
  %2316 = vmatmul.bf16.gmra.mxu0 %v1866
  %v2317 = vpop.f32.mrf.mxu0
  %v2318 = vadd.f32 %v2149, %v2317
  %v2319 = vpop.f32.mrf.mxu0
  %v2320 = vadd.f32 %v2151, %v2319
  %2321 = vmatmul.bf16.gmra.mxu0 %v1868
  %v2322 = vpop.f32.mrf.mxu0
  %v2323 = vadd.f32 %v2154, %v2322
  %v2324 = vpop.f32.mrf.mxu0
  %v2325 = vadd.f32 %v2156, %v2324
  %2326 = vmatmul.bf16.gmra.mxu0 %v1870
  %v2327 = vpop.f32.mrf.mxu0
  %v2328 = vadd.f32 %v2159, %v2327
  %v2329 = vpop.f32.mrf.mxu0
  %v2330 = vadd.f32 %v2161, %v2329
  %2331 = vmatmul.bf16.gmra.mxu0 %v1872
  %v2332 = vpop.f32.mrf.mxu0
  %v2333 = vadd.f32 %v2164, %v2332
  %v2334 = vpop.f32.mrf.mxu0
  %v2335 = vadd.f32 %v2166, %v2334
  %2336 = vmatmul.bf16.gmra.mxu0 %v1874
  %v2337 = vpop.f32.mrf.mxu0
  %v2338 = vadd.f32 %v2169, %v2337
  %v2339 = vpop.f32.mrf.mxu0
  %v2340 = vadd.f32 %v2171, %v2339
  %2341 = vmatmul.bf16.gmra.mxu0 %v1876
  %v2342 = vpop.f32.mrf.mxu0
  %v2343 = vadd.f32 %v2174, %v2342
  %v2344 = vpop.f32.mrf.mxu0
  %v2345 = vadd.f32 %v2176, %v2344
  %2346 = vmatmul.bf16.gmra.mxu0 %v1878
  %v2347 = vpop.f32.mrf.mxu0
  %v2348 = vadd.f32 %v2179, %v2347
  %v2349 = vpop.f32.mrf.mxu0
  %v2350 = vadd.f32 %v2181, %v2349
  %2351 = vmatmul.bf16.gmra.mxu0 %v1880
  %v2352 = vpop.f32.mrf.mxu0
  %v2353 = vadd.f32 %v2184, %v2352
  %v2354 = vpop.f32.mrf.mxu0
  %v2355 = vadd.f32 %v2186, %v2354
  %2356 = vmatmul.bf16.gmra.mxu0 %v1882
  %v2357 = vpop.f32.mrf.mxu0
  %v2358 = vadd.f32 %v2189, %v2357
  %v2359 = vpop.f32.mrf.mxu0
  %v2360 = vadd.f32 %v2191, %v2359
  %2361 = vmatmul.bf16.gmra.mxu0 %v1884
  %v2362 = vpop.f32.mrf.mxu0
  %v2363 = vadd.f32 %v2194, %v2362
  %v2364 = vpop.f32.mrf.mxu0
  %v2365 = vadd.f32 %v2196, %v2364
  %2366 = vmatmul.bf16.gmra.mxu0 %v1886
  %v2367 = vpop.f32.mrf.mxu0
  %v2368 = vadd.f32 %v2199, %v2367
  %v2369 = vpop.f32.mrf.mxu0
  %v2370 = vadd.f32 %v2201, %v2369
  %2371 = vmatmul.bf16.gmra.mxu0 %v1888
  %v2372 = vpop.f32.mrf.mxu0
  %v2373 = vadd.f32 %v2204, %v2372
  %v2374 = vpop.f32.mrf.mxu0
  %v2375 = vadd.f32 %v2206, %v2374
  %2376 = vmatmul.bf16.gmra.mxu0 %v1890
  %v2377 = vpop.f32.mrf.mxu0
  %v2378 = vadd.f32 %v2209, %v2377
  %v2379 = vpop.f32.mrf.mxu0
  %v2380 = vadd.f32 %v2211, %v2379
  %2381 = vmatmul.bf16.gmra.mxu0 %v1892
  %v2382 = vpop.f32.mrf.mxu0
  %v2383 = vadd.f32 %v2214, %v2382
  %v2384 = vpop.f32.mrf.mxu0
  %v2385 = vadd.f32 %v2216, %v2384
  %2386 = vmatmul.bf16.gmra.mxu0 %v1894
  %v2387 = vpop.f32.mrf.mxu0
  %v2388 = vadd.f32 %v2219, %v2387
  %v2389 = vpop.f32.mrf.mxu0
  %v2390 = vadd.f32 %v2221, %v2389
  %2391 = vmatmul.bf16.gmra.mxu0 %v1896
  %v2392 = vpop.f32.mrf.mxu0
  %v2393 = vadd.f32 %v2224, %v2392
  %v2394 = vpop.f32.mrf.mxu0
  %v2395 = vadd.f32 %v2226, %v2394
  %2396 = vmatmul.bf16.gmra.mxu0 %v1898
  %v2397 = vpop.f32.mrf.mxu0
  %v2398 = vadd.f32 %v2229, %v2397
  %v2399 = vpop.f32.mrf.mxu0
  %v2400 = vadd.f32 %v2231, %v2399
  %2401 = vmatmul.bf16.gmra.mxu0 %v1900
  %v2402 = vpop.f32.mrf.mxu0
  %v2403 = vadd.f32 %v2234, %v2402
  %v2404 = vpop.f32.mrf.mxu0
  %v2405 = vadd.f32 %v2236, %v2404
  %2406 = vmatmul.bf16.gmra.mxu0 %v1902
  %v2407 = vpop.f32.mrf.mxu0
  %v2408 = vadd.f32 %v2239, %v2407
  %v2409 = vpop.f32.mrf.mxu0
  %v2410 = vadd.f32 %v2241, %v2409
  %2411 = vmatmul.bf16.gmra.mxu0 %v1904
  %v2412 = vpop.f32.mrf.mxu0
  %v2413 = vadd.f32 %v2244, %v2412
  %v2414 = vpop.f32.mrf.mxu0
  %v2415 = vadd.f32 %v2246, %v2414
  %2416 = vmatmul.bf16.gmra.mxu0 %v1906
  %v2417 = vpop.f32.mrf.mxu0
  %v2418 = vadd.f32 %v2249, %v2417
  %v2419 = vpop.f32.mrf.mxu0
  %v2420 = vadd.f32 %v2251, %v2419
  %2421 = vmatmul.bf16.gmra.mxu0 %v1908
  %v2422 = vpop.f32.mrf.mxu0
  %v2423 = vadd.f32 %v2254, %v2422
  %v2424 = vpop.f32.mrf.mxu0
  %v2425 = vadd.f32 %v2256, %v2424
  %2426 = vmatmul.bf16.gmra.mxu0 %v1910
  %v2427 = vpop.f32.mrf.mxu0
  %v2428 = vadd.f32 %v2259, %v2427
  %v2429 = vpop.f32.mrf.mxu0
  %v2430 = vadd.f32 %v2261, %v2429
  %2431 = vmatmul.bf16.gmra.mxu0 %v1912
  %v2432 = vpop.f32.mrf.mxu0
  %v2433 = vadd.f32 %v2264, %v2432
  %v2434 = vpop.f32.mrf.mxu0
  %v2435 = vadd.f32 %v2266, %v2434
  %2436 = vmatmul.bf16.gmra.mxu0 %v1914
  %v2437 = vpop.f32.mrf.mxu0
  %v2438 = vadd.f32 %v2269, %v2437
  %v2439 = vpop.f32.mrf.mxu0
  %v2440 = vadd.f32 %v2271, %v2439
  %2441 = vmatmul.bf16.gmra.mxu0 %v1916
  %v2442 = vpop.f32.mrf.mxu0
  %v2443 = vadd.f32 %v2274, %v2442
  %v2444 = vpop.f32.mrf.mxu0
  %v2445 = vadd.f32 %v2276, %v2444
  %2446 = vmatmul.bf16.gmra.mxu0 %v1918
  %v2447 = vpop.f32.mrf.mxu0
  %v2448 = vadd.f32 %v2279, %v2447
  %v2449 = vpop.f32.mrf.mxu0
  %v2450 = vadd.f32 %v2281, %v2449
  %2451 = vmatmul.bf16.gmra.mxu0 %v1920
  %v2452 = vpop.f32.mrf.mxu0
  %v2453 = vadd.f32 %v2284, %v2452
  %v2454 = vpop.f32.mrf.mxu0
  %v2455 = vadd.f32 %v2286, %v2454
  %2456 = vdwg.mxu0
  %2457 = vmatpush.bf16.msra.mxu0 %v2070
  %2458 = vmatpush.bf16.msra.mxu0 %v2068
  %2459 = vmatpush.bf16.msra.mxu0 %v2066
  %2460 = vmatpush.bf16.msra.mxu0 %v2064
  %2461 = vmatpush.bf16.msra.mxu0 %v2062
  %2462 = vmatpush.bf16.msra.mxu0 %v2060
  %2463 = vmatpush.bf16.msra.mxu0 %v2058
  %2464 = vmatpush.bf16.msra.mxu0 %v2056
  %2465 = vmatmul.bf16.gmra.mxu0 %v1857
  %v2466 = vpop.f32.mrf.mxu0
  %v2467 = vadd.f32 %v1956, %v2466
  %v2468 = vpop.f32.mrf.mxu0
  %v2469 = vadd.f32 %v1956, %v2468
  %2470 = vmatmul.bf16.gmra.mxu0 %v1859
  %v2471 = vpop.f32.mrf.mxu0
  %v2472 = vadd.f32 %v1956, %v2471
  %v2473 = vpop.f32.mrf.mxu0
  %v2474 = vadd.f32 %v1956, %v2473
  %2475 = vmatmul.bf16.gmra.mxu0 %v1861
  %v2476 = vpop.f32.mrf.mxu0
  %v2477 = vadd.f32 %v1956, %v2476
  %v2478 = vpop.f32.mrf.mxu0
  %v2479 = vadd.f32 %v1956, %v2478
  %2480 = vmatmul.bf16.gmra.mxu0 %v1863
  %v2481 = vpop.f32.mrf.mxu0
  %v2482 = vadd.f32 %v1956, %v2481
  %v2483 = vpop.f32.mrf.mxu0
  %v2484 = vadd.f32 %v1956, %v2483
  %2485 = vmatmul.bf16.gmra.mxu0 %v1865
  %v2486 = vpop.f32.mrf.mxu0
  %v2487 = vadd.f32 %v1956, %v2486
  %v2488 = vpop.f32.mrf.mxu0
  %v2489 = vadd.f32 %v1956, %v2488
  %2490 = vmatmul.bf16.gmra.mxu0 %v1867
  %v2491 = vpop.f32.mrf.mxu0
  %v2492 = vadd.f32 %v1956, %v2491
  %v2493 = vpop.f32.mrf.mxu0
  %v2494 = vadd.f32 %v1956, %v2493
  %2495 = vmatmul.bf16.gmra.mxu0 %v1869
  %v2496 = vpop.f32.mrf.mxu0
  %v2497 = vadd.f32 %v1956, %v2496
  %v2498 = vpop.f32.mrf.mxu0
  %v2499 = vadd.f32 %v1956, %v2498
  %2500 = vmatmul.bf16.gmra.mxu0 %v1871
  %v2501 = vpop.f32.mrf.mxu0
  %v2502 = vadd.f32 %v1956, %v2501
  %v2503 = vpop.f32.mrf.mxu0
  %v2504 = vadd.f32 %v1956, %v2503
  %2505 = vmatmul.bf16.gmra.mxu0 %v1873
  %v2506 = vpop.f32.mrf.mxu0
  %v2507 = vadd.f32 %v1956, %v2506
  %v2508 = vpop.f32.mrf.mxu0
  %v2509 = vadd.f32 %v1956, %v2508
  %2510 = vmatmul.bf16.gmra.mxu0 %v1875
  %v2511 = vpop.f32.mrf.mxu0
  %v2512 = vadd.f32 %v1956, %v2511
  %v2513 = vpop.f32.mrf.mxu0
  %v2514 = vadd.f32 %v1956, %v2513
  %2515 = vmatmul.bf16.gmra.mxu0 %v1877
  %v2516 = vpop.f32.mrf.mxu0
  %v2517 = vadd.f32 %v1956, %v2516
  %v2518 = vpop.f32.mrf.mxu0
  %v2519 = vadd.f32 %v1956, %v2518
  %2520 = vmatmul.bf16.gmra.mxu0 %v1879
  %v2521 = vpop.f32.mrf.mxu0
  %v2522 = vadd.f32 %v1956, %v2521
  %v2523 = vpop.f32.mrf.mxu0
  %v2524 = vadd.f32 %v1956, %v2523
  %2525 = vmatmul.bf16.gmra.mxu0 %v1881
  %v2526 = vpop.f32.mrf.mxu0
  %v2527 = vadd.f32 %v1956, %v2526
  %v2528 = vpop.f32.mrf.mxu0
  %v2529 = vadd.f32 %v1956, %v2528
  %2530 = vmatmul.bf16.gmra.mxu0 %v1883
  %v2531 = vpop.f32.mrf.mxu0
  %v2532 = vadd.f32 %v1956, %v2531
  %v2533 = vpop.f32.mrf.mxu0
  %v2534 = vadd.f32 %v1956, %v2533
  %2535 = vmatmul.bf16.gmra.mxu0 %v1885
  %v2536 = vpop.f32.mrf.mxu0
  %v2537 = vadd.f32 %v1956, %v2536
  %v2538 = vpop.f32.mrf.mxu0
  %v2539 = vadd.f32 %v1956, %v2538
  %2540 = vmatmul.bf16.gmra.mxu0 %v1887
  %v2541 = vpop.f32.mrf.mxu0
  %v2542 = vadd.f32 %v1956, %v2541
  %v2543 = vpop.f32.mrf.mxu0
  %v2544 = vadd.f32 %v1956, %v2543
  %2545 = vmatmul.bf16.gmra.mxu0 %v1889
  %v2546 = vpop.f32.mrf.mxu0
  %v2547 = vadd.f32 %v1956, %v2546
  %v2548 = vpop.f32.mrf.mxu0
  %v2549 = vadd.f32 %v1956, %v2548
  %2550 = vmatmul.bf16.gmra.mxu0 %v1891
  %v2551 = vpop.f32.mrf.mxu0
  %v2552 = vadd.f32 %v1956, %v2551
  %v2553 = vpop.f32.mrf.mxu0
  %v2554 = vadd.f32 %v1956, %v2553
  %2555 = vmatmul.bf16.gmra.mxu0 %v1893
  %v2556 = vpop.f32.mrf.mxu0
  %v2557 = vadd.f32 %v1956, %v2556
  %v2558 = vpop.f32.mrf.mxu0
  %v2559 = vadd.f32 %v1956, %v2558
  %2560 = vmatmul.bf16.gmra.mxu0 %v1895
  %v2561 = vpop.f32.mrf.mxu0
  %v2562 = vadd.f32 %v1956, %v2561
  %v2563 = vpop.f32.mrf.mxu0
  %v2564 = vadd.f32 %v1956, %v2563
  %2565 = vmatmul.bf16.gmra.mxu0 %v1897
  %v2566 = vpop.f32.mrf.mxu0
  %v2567 = vadd.f32 %v1956, %v2566
  %v2568 = vpop.f32.mrf.mxu0
  %v2569 = vadd.f32 %v1956, %v2568
  %2570 = vmatmul.bf16.gmra.mxu0 %v1899
  %v2571 = vpop.f32.mrf.mxu0
  %v2572 = vadd.f32 %v1956, %v2571
  %v2573 = vpop.f32.mrf.mxu0
  %v2574 = vadd.f32 %v1956, %v2573
  %2575 = vmatmul.bf16.gmra.mxu0 %v1901
  %v2576 = vpop.f32.mrf.mxu0
  %v2577 = vadd.f32 %v1956, %v2576
  %v2578 = vpop.f32.mrf.mxu0
  %v2579 = vadd.f32 %v1956, %v2578
  %2580 = vmatmul.bf16.gmra.mxu0 %v1903
  %v2581 = vpop.f32.mrf.mxu0
  %v2582 = vadd.f32 %v1956, %v2581
  %v2583 = vpop.f32.mrf.mxu0
  %v2584 = vadd.f32 %v1956, %v2583
  %2585 = vmatmul.bf16.gmra.mxu0 %v1905
  %v2586 = vpop.f32.mrf.mxu0
  %v2587 = vadd.f32 %v1956, %v2586
  %v2588 = vpop.f32.mrf.mxu0
  %v2589 = vadd.f32 %v1956, %v2588
  %2590 = vmatmul.bf16.gmra.mxu0 %v1907
  %v2591 = vpop.f32.mrf.mxu0
  %v2592 = vadd.f32 %v1956, %v2591
  %v2593 = vpop.f32.mrf.mxu0
  %v2594 = vadd.f32 %v1956, %v2593
  %2595 = vmatmul.bf16.gmra.mxu0 %v1909
  %v2596 = vpop.f32.mrf.mxu0
  %v2597 = vadd.f32 %v1956, %v2596
  %v2598 = vpop.f32.mrf.mxu0
  %v2599 = vadd.f32 %v1956, %v2598
  %2600 = vmatmul.bf16.gmra.mxu0 %v1911
  %v2601 = vpop.f32.mrf.mxu0
  %v2602 = vadd.f32 %v1956, %v2601
  %v2603 = vpop.f32.mrf.mxu0
  %v2604 = vadd.f32 %v1956, %v2603
  %2605 = vmatmul.bf16.gmra.mxu0 %v1913
  %v2606 = vpop.f32.mrf.mxu0
  %v2607 = vadd.f32 %v1956, %v2606
  %v2608 = vpop.f32.mrf.mxu0
  %v2609 = vadd.f32 %v1956, %v2608
  %2610 = vmatmul.bf16.gmra.mxu0 %v1915
  %v2611 = vpop.f32.mrf.mxu0
  %v2612 = vadd.f32 %v1956, %v2611
  %v2613 = vpop.f32.mrf.mxu0
  %v2614 = vadd.f32 %v1956, %v2613
  %2615 = vmatmul.bf16.gmra.mxu0 %v1917
  %v2616 = vpop.f32.mrf.mxu0
  %v2617 = vadd.f32 %v1956, %v2616
  %v2618 = vpop.f32.mrf.mxu0
  %v2619 = vadd.f32 %v1956, %v2618
  %2620 = vmatmul.bf16.gmra.mxu0 %v1919
  %v2621 = vpop.f32.mrf.mxu0
  %v2622 = vadd.f32 %v1956, %v2621
  %v2623 = vpop.f32.mrf.mxu0
  %v2624 = vadd.f32 %v1956, %v2623
  %2625 = vdwg.mxu0
  %2626 = vmatpush.bf16.msra.mxu0 %v2086
  %2627 = vmatpush.bf16.msra.mxu0 %v2084
  %2628 = vmatpush.bf16.msra.mxu0 %v2082
  %2629 = vmatpush.bf16.msra.mxu0 %v2080
  %2630 = vmatpush.bf16.msra.mxu0 %v2078
  %2631 = vmatpush.bf16.msra.mxu0 %v2076
  %2632 = vmatpush.bf16.msra.mxu0 %v2074
  %2633 = vmatpush.bf16.msra.mxu0 %v2072
  %2634 = vmatmul.bf16.gmra.mxu0 %v1858
  %v2635 = vpop.f32.mrf.mxu0
  %v2636 = vadd.f32 %v2467, %v2635
  %v2637 = vpop.f32.mrf.mxu0
  %v2638 = vadd.f32 %v2469, %v2637
  %2639 = vmatmul.bf16.gmra.mxu0 %v1860
  %v2640 = vpop.f32.mrf.mxu0
  %v2641 = vadd.f32 %v2472, %v2640
  %v2642 = vpop.f32.mrf.mxu0
  %v2643 = vadd.f32 %v2474, %v2642
  %2644 = vmatmul.bf16.gmra.mxu0 %v1862
  %v2645 = vpop.f32.mrf.mxu0
  %v2646 = vadd.f32 %v2477, %v2645
  %v2647 = vpop.f32.mrf.mxu0
  %v2648 = vadd.f32 %v2479, %v2647
  %2649 = vmatmul.bf16.gmra.mxu0 %v1864
  %v2650 = vpop.f32.mrf.mxu0
  %v2651 = vadd.f32 %v2482, %v2650
  %v2652 = vpop.f32.mrf.mxu0
  %v2653 = vadd.f32 %v2484, %v2652
  %2654 = vmatmul.bf16.gmra.mxu0 %v1866
  %v2655 = vpop.f32.mrf.mxu0
  %v2656 = vadd.f32 %v2487, %v2655
  %v2657 = vpop.f32.mrf.mxu0
  %v2658 = vadd.f32 %v2489, %v2657
  %2659 = vmatmul.bf16.gmra.mxu0 %v1868
  %v2660 = vpop.f32.mrf.mxu0
  %v2661 = vadd.f32 %v2492, %v2660
  %v2662 = vpop.f32.mrf.mxu0
  %v2663 = vadd.f32 %v2494, %v2662
  %2664 = vmatmul.bf16.gmra.mxu0 %v1870
  %v2665 = vpop.f32.mrf.mxu0
  %v2666 = vadd.f32 %v2497, %v2665
  %v2667 = vpop.f32.mrf.mxu0
  %v2668 = vadd.f32 %v2499, %v2667
  %2669 = vmatmul.bf16.gmra.mxu0 %v1872
  %v2670 = vpop.f32.mrf.mxu0
  %v2671 = vadd.f32 %v2502, %v2670
  %v2672 = vpop.f32.mrf.mxu0
  %v2673 = vadd.f32 %v2504, %v2672
  %2674 = vmatmul.bf16.gmra.mxu0 %v1874
  %v2675 = vpop.f32.mrf.mxu0
  %v2676 = vadd.f32 %v2507, %v2675
  %v2677 = vpop.f32.mrf.mxu0
  %v2678 = vadd.f32 %v2509, %v2677
  %2679 = vmatmul.bf16.gmra.mxu0 %v1876
  %v2680 = vpop.f32.mrf.mxu0
  %v2681 = vadd.f32 %v2512, %v2680
  %v2682 = vpop.f32.mrf.mxu0
  %v2683 = vadd.f32 %v2514, %v2682
  %2684 = vmatmul.bf16.gmra.mxu0 %v1878
  %v2685 = vpop.f32.mrf.mxu0
  %v2686 = vadd.f32 %v2517, %v2685
  %v2687 = vpop.f32.mrf.mxu0
  %v2688 = vadd.f32 %v2519, %v2687
  %2689 = vmatmul.bf16.gmra.mxu0 %v1880
  %v2690 = vpop.f32.mrf.mxu0
  %v2691 = vadd.f32 %v2522, %v2690
  %v2692 = vpop.f32.mrf.mxu0
  %v2693 = vadd.f32 %v2524, %v2692
  %2694 = vmatmul.bf16.gmra.mxu0 %v1882
  %v2695 = vpop.f32.mrf.mxu0
  %v2696 = vadd.f32 %v2527, %v2695
  %v2697 = vpop.f32.mrf.mxu0
  %v2698 = vadd.f32 %v2529, %v2697
  %2699 = vmatmul.bf16.gmra.mxu0 %v1884
  %v2700 = vpop.f32.mrf.mxu0
  %v2701 = vadd.f32 %v2532, %v2700
  %v2702 = vpop.f32.mrf.mxu0
  %v2703 = vadd.f32 %v2534, %v2702
  %2704 = vmatmul.bf16.gmra.mxu0 %v1886
  %v2705 = vpop.f32.mrf.mxu0
  %v2706 = vadd.f32 %v2537, %v2705
  %v2707 = vpop.f32.mrf.mxu0
  %v2708 = vadd.f32 %v2539, %v2707
  %2709 = vmatmul.bf16.gmra.mxu0 %v1888
  %v2710 = vpop.f32.mrf.mxu0
  %v2711 = vadd.f32 %v2542, %v2710
  %v2712 = vpop.f32.mrf.mxu0
  %v2713 = vadd.f32 %v2544, %v2712
  %2714 = vmatmul.bf16.gmra.mxu0 %v1890
  %v2715 = vpop.f32.mrf.mxu0
  %v2716 = vadd.f32 %v2547, %v2715
  %v2717 = vpop.f32.mrf.mxu0
  %v2718 = vadd.f32 %v2549, %v2717
  %2719 = vmatmul.bf16.gmra.mxu0 %v1892
  %v2720 = vpop.f32.mrf.mxu0
  %v2721 = vadd.f32 %v2552, %v2720
  %v2722 = vpop.f32.mrf.mxu0
  %v2723 = vadd.f32 %v2554, %v2722
  %2724 = vmatmul.bf16.gmra.mxu0 %v1894
  %v2725 = vpop.f32.mrf.mxu0
  %v2726 = vadd.f32 %v2557, %v2725
  %v2727 = vpop.f32.mrf.mxu0
  %v2728 = vadd.f32 %v2559, %v2727
  %2729 = vmatmul.bf16.gmra.mxu0 %v1896
  %v2730 = vpop.f32.mrf.mxu0
  %v2731 = vadd.f32 %v2562, %v2730
  %v2732 = vpop.f32.mrf.mxu0
  %v2733 = vadd.f32 %v2564, %v2732
  %2734 = vmatmul.bf16.gmra.mxu0 %v1898
  %v2735 = vpop.f32.mrf.mxu0
  %v2736 = vadd.f32 %v2567, %v2735
  %v2737 = vpop.f32.mrf.mxu0
  %v2738 = vadd.f32 %v2569, %v2737
  %2739 = vmatmul.bf16.gmra.mxu0 %v1900
  %v2740 = vpop.f32.mrf.mxu0
  %v2741 = vadd.f32 %v2572, %v2740
  %v2742 = vpop.f32.mrf.mxu0
  %v2743 = vadd.f32 %v2574, %v2742
  %2744 = vmatmul.bf16.gmra.mxu0 %v1902
  %v2745 = vpop.f32.mrf.mxu0
  %v2746 = vadd.f32 %v2577, %v2745
  %v2747 = vpop.f32.mrf.mxu0
  %v2748 = vadd.f32 %v2579, %v2747
  %2749 = vmatmul.bf16.gmra.mxu0 %v1904
  %v2750 = vpop.f32.mrf.mxu0
  %v2751 = vadd.f32 %v2582, %v2750
  %v2752 = vpop.f32.mrf.mxu0
  %v2753 = vadd.f32 %v2584, %v2752
  %2754 = vmatmul.bf16.gmra.mxu0 %v1906
  %v2755 = vpop.f32.mrf.mxu0
  %v2756 = vadd.f32 %v2587, %v2755
  %v2757 = vpop.f32.mrf.mxu0
  %v2758 = vadd.f32 %v2589, %v2757
  %2759 = vmatmul.bf16.gmra.mxu0 %v1908
  %v2760 = vpop.f32.mrf.mxu0
  %v2761 = vadd.f32 %v2592, %v2760
  %v2762 = vpop.f32.mrf.mxu0
  %v2763 = vadd.f32 %v2594, %v2762
  %2764 = vmatmul.bf16.gmra.mxu0 %v1910
  %v2765 = vpop.f32.mrf.mxu0
  %v2766 = vadd.f32 %v2597, %v2765
  %v2767 = vpop.f32.mrf.mxu0
  %v2768 = vadd.f32 %v2599, %v2767
  %2769 = vmatmul.bf16.gmra.mxu0 %v1912
  %v2770 = vpop.f32.mrf.mxu0
  %v2771 = vadd.f32 %v2602, %v2770
  %v2772 = vpop.f32.mrf.mxu0
  %v2773 = vadd.f32 %v2604, %v2772
  %2774 = vmatmul.bf16.gmra.mxu0 %v1914
  %v2775 = vpop.f32.mrf.mxu0
  %v2776 = vadd.f32 %v2607, %v2775
  %v2777 = vpop.f32.mrf.mxu0
  %v2778 = vadd.f32 %v2609, %v2777
  %2779 = vmatmul.bf16.gmra.mxu0 %v1916
  %v2780 = vpop.f32.mrf.mxu0
  %v2781 = vadd.f32 %v2612, %v2780
  %v2782 = vpop.f32.mrf.mxu0
  %v2783 = vadd.f32 %v2614, %v2782
  %2784 = vmatmul.bf16.gmra.mxu0 %v1918
  %v2785 = vpop.f32.mrf.mxu0
  %v2786 = vadd.f32 %v2617, %v2785
  %v2787 = vpop.f32.mrf.mxu0
  %v2788 = vadd.f32 %v2619, %v2787
  %2789 = vmatmul.bf16.gmra.mxu0 %v1920
  %v2790 = vpop.f32.mrf.mxu0
  %v2791 = vadd.f32 %v2622, %v2790
  %v2792 = vpop.f32.mrf.mxu0
  %v2793 = vadd.f32 %v2624, %v2792
  %2794 = vdwg.mxu0
  %v2795 = vmax.f32 %v2298, 0.0
  %v2796 = vmax.f32 %v2636, 0.0
  %v2797 = vmax.f32 %v2300, 0.0
  %v2798 = vmax.f32 %v2638, 0.0
  %v2799 = vmax.f32 %v2303, 0.0
  %v2800 = vmax.f32 %v2641, 0.0
  %v2801 = vmax.f32 %v2305, 0.0
  %v2802 = vmax.f32 %v2643, 0.0
  %v2803 = vmax.f32 %v2308, 0.0
  %v2804 = vmax.f32 %v2646, 0.0
  %v2805 = vmax.f32 %v2310, 0.0
  %v2806 = vmax.f32 %v2648, 0.0
  %v2807 = vmax.f32 %v2313, 0.0
  %v2808 = vmax.f32 %v2651, 0.0
  %v2809 = vmax.f32 %v2315, 0.0
  %v2810 = vmax.f32 %v2653, 0.0
  %v2811 = vmax.f32 %v2318, 0.0
  %v2812 = vmax.f32 %v2656, 0.0
  %v2813 = vmax.f32 %v2320, 0.0
  %v2814 = vmax.f32 %v2658, 0.0
  %v2815 = vmax.f32 %v2323, 0.0
  %v2816 = vmax.f32 %v2661, 0.0
  %v2817 = vmax.f32 %v2325, 0.0
  %v2818 = vmax.f32 %v2663, 0.0
  %v2819 = vmax.f32 %v2328, 0.0
  %v2820 = vmax.f32 %v2666, 0.0
  %v2821 = vmax.f32 %v2330, 0.0
  %v2822 = vmax.f32 %v2668, 0.0
  %v2823 = vmax.f32 %v2333, 0.0
  %v2824 = vmax.f32 %v2671, 0.0
  %v2825 = vmax.f32 %v2335, 0.0
  %v2826 = vmax.f32 %v2673, 0.0
  %v2827 = vmax.f32 %v2338, 0.0
  %v2828 = vmax.f32 %v2676, 0.0
  %v2829 = vmax.f32 %v2340, 0.0
  %v2830 = vmax.f32 %v2678, 0.0
  %v2831 = vmax.f32 %v2343, 0.0
  %v2832 = vmax.f32 %v2681, 0.0
  %v2833 = vmax.f32 %v2345, 0.0
  %v2834 = vmax.f32 %v2683, 0.0
  %v2835 = vmax.f32 %v2348, 0.0
  %v2836 = vmax.f32 %v2686, 0.0
  %v2837 = vmax.f32 %v2350, 0.0
  %v2838 = vmax.f32 %v2688, 0.0
  %v2839 = vmax.f32 %v2353, 0.0
  %v2840 = vmax.f32 %v2691, 0.0
  %v2841 = vmax.f32 %v2355, 0.0
  %v2842 = vmax.f32 %v2693, 0.0
  %v2843 = vmax.f32 %v2358, 0.0
  %v2844 = vmax.f32 %v2696, 0.0
  %v2845 = vmax.f32 %v2360, 0.0
  %v2846 = vmax.f32 %v2698, 0.0
  %v2847 = vmax.f32 %v2363, 0.0
  %v2848 = vmax.f32 %v2701, 0.0
  %v2849 = vmax.f32 %v2365, 0.0
  %v2850 = vmax.f32 %v2703, 0.0
  %v2851 = vmax.f32 %v2368, 0.0
  %v2852 = vmax.f32 %v2706, 0.0
  %v2853 = vmax.f32 %v2370, 0.0
  %v2854 = vmax.f32 %v2708, 0.0
  %v2855 = vmax.f32 %v2373, 0.0
  %v2856 = vmax.f32 %v2711, 0.0
  %v2857 = vmax.f32 %v2375, 0.0
  %v2858 = vmax.f32 %v2713, 0.0
  %v2859 = vmax.f32 %v2378, 0.0
  %v2860 = vmax.f32 %v2716, 0.0
  %v2861 = vmax.f32 %v2380, 0.0
  %v2862 = vmax.f32 %v2718, 0.0
  %v2863 = vmax.f32 %v2383, 0.0
  %v2864 = vmax.f32 %v2721, 0.0
  %v2865 = vmax.f32 %v2385, 0.0
  %v2866 = vmax.f32 %v2723, 0.0
  %v2867 = vmax.f32 %v2388, 0.0
  %v2868 = vmax.f32 %v2726, 0.0
  %v2869 = vmax.f32 %v2390, 0.0
  %v2870 = vmax.f32 %v2728, 0.0
  %v2871 = vmax.f32 %v2393, 0.0
  %v2872 = vmax.f32 %v2731, 0.0
  %v2873 = vmax.f32 %v2395, 0.0
  %v2874 = vmax.f32 %v2733, 0.0
  %v2875 = vmax.f32 %v2398, 0.0
  %v2876 = vmax.f32 %v2736, 0.0
  %v2877 = vmax.f32 %v2400, 0.0
  %v2878 = vmax.f32 %v2738, 0.0
  %v2879 = vmax.f32 %v2403, 0.0
  %v2880 = vmax.f32 %v2741, 0.0
  %v2881 = vmax.f32 %v2405, 0.0
  %v2882 = vmax.f32 %v2743, 0.0
  %v2883 = vmax.f32 %v2408, 0.0
  %v2884 = vmax.f32 %v2746, 0.0
  %v2885 = vmax.f32 %v2410, 0.0
  %v2886 = vmax.f32 %v2748, 0.0
  %v2887 = vmax.f32 %v2413, 0.0
  %v2888 = vmax.f32 %v2751, 0.0
  %v2889 = vmax.f32 %v2415, 0.0
  %v2890 = vmax.f32 %v2753, 0.0
  %v2891 = vmax.f32 %v2418, 0.0
  %v2892 = vmax.f32 %v2756, 0.0
  %v2893 = vmax.f32 %v2420, 0.0
  %v2894 = vmax.f32 %v2758, 0.0
  %v2895 = vmax.f32 %v2423, 0.0
  %v2896 = vmax.f32 %v2761, 0.0
  %v2897 = vmax.f32 %v2425, 0.0
  %v2898 = vmax.f32 %v2763, 0.0
  %v2899 = vmax.f32 %v2428, 0.0
  %v2900 = vmax.f32 %v2766, 0.0
  %v2901 = vmax.f32 %v2430, 0.0
  %v2902 = vmax.f32 %v2768, 0.0
  %v2903 = vmax.f32 %v2433, 0.0
  %v2904 = vmax.f32 %v2771, 0.0
  %v2905 = vmax.f32 %v2435, 0.0
  %v2906 = vmax.f32 %v2773, 0.0
  %v2907 = vmax.f32 %v2438, 0.0
  %v2908 = vmax.f32 %v2776, 0.0
  %v2909 = vmax.f32 %v2440, 0.0
  %v2910 = vmax.f32 %v2778, 0.0
  %v2911 = vmax.f32 %v2443, 0.0
  %v2912 = vmax.f32 %v2781, 0.0
  %v2913 = vmax.f32 %v2445, 0.0
  %v2914 = vmax.f32 %v2783, 0.0
  %v2915 = vmax.f32 %v2448, 0.0
  %v2916 = vmax.f32 %v2786, 0.0
  %v2917 = vmax.f32 %v2450, 0.0
  %v2918 = vmax.f32 %v2788, 0.0
  %v2919 = vmax.f32 %v2453, 0.0
  %v2920 = vmax.f32 %v2791, 0.0
  %v2921 = vmax.f32 %v2455, 0.0
  %v2922 = vmax.f32 %v2793, 0.0
  %v2923 = vpack.c.bf16 %v2797, %v2795
  %v2924 = vpack.c.bf16 %v2798, %v2796
  %v2925 = vpack.c.bf16 %v2801, %v2799
  %v2926 = vpack.c.bf16 %v2802, %v2800
  %v2927 = vpack.c.bf16 %v2805, %v2803
  %v2928 = vpack.c.bf16 %v2806, %v2804
  %v2929 = vpack.c.bf16 %v2809, %v2807
  %v2930 = vpack.c.bf16 %v2810, %v2808
  %v2931 = vpack.c.bf16 %v2813, %v2811
  %v2932 = vpack.c.bf16 %v2814, %v2812
  %v2933 = vpack.c.bf16 %v2817, %v2815
  %v2934 = vpack.c.bf16 %v2818, %v2816
  %v2935 = vpack.c.bf16 %v2821, %v2819
  %v2936 = vpack.c.bf16 %v2822, %v2820
  %v2937 = vpack.c.bf16 %v2825, %v2823
  %v2938 = vpack.c.bf16 %v2826, %v2824
  %v2939 = vpack.c.bf16 %v2829, %v2827
  %v2940 = vpack.c.bf16 %v2830, %v2828
  %v2941 = vpack.c.bf16 %v2833, %v2831
  %v2942 = vpack.c.bf16 %v2834, %v2832
  %v2943 = vpack.c.bf16 %v2837, %v2835
  %v2944 = vpack.c.bf16 %v2838, %v2836
  %v2945 = vpack.c.bf16 %v2841, %v2839
  %v2946 = vpack.c.bf16 %v2842, %v2840
  %v2947 = vpack.c.bf16 %v2845, %v2843
  %v2948 = vpack.c.bf16 %v2846, %v2844
  %v2949 = vpack.c.bf16 %v2849, %v2847
  %v2950 = vpack.c.bf16 %v2850, %v2848
  %v2951 = vpack.c.bf16 %v2853, %v2851
  %v2952 = vpack.c.bf16 %v2854, %v2852
  %v2953 = vpack.c.bf16 %v2857, %v2855
  %v2954 = vpack.c.bf16 %v2858, %v2856
  %v2955 = vpack.c.bf16 %v2861, %v2859
  %v2956 = vpack.c.bf16 %v2862, %v2860
  %v2957 = vpack.c.bf16 %v2865, %v2863
  %v2958 = vpack.c.bf16 %v2866, %v2864
  %v2959 = vpack.c.bf16 %v2869, %v2867
  %v2960 = vpack.c.bf16 %v2870, %v2868
  %v2961 = vpack.c.bf16 %v2873, %v2871
  %v2962 = vpack.c.bf16 %v2874, %v2872
  %v2963 = vpack.c.bf16 %v2877, %v2875
  %v2964 = vpack.c.bf16 %v2878, %v2876
  %v2965 = vpack.c.bf16 %v2881, %v2879
  %v2966 = vpack.c.bf16 %v2882, %v2880
  %v2967 = vpack.c.bf16 %v2885, %v2883
  %v2968 = vpack.c.bf16 %v2886, %v2884
  %v2969 = vpack.c.bf16 %v2889, %v2887
  %v2970 = vpack.c.bf16 %v2890, %v2888
  %v2971 = vpack.c.bf16 %v2893, %v2891
  %v2972 = vpack.c.bf16 %v2894, %v2892
  %v2973 = vpack.c.bf16 %v2897, %v2895
  %v2974 = vpack.c.bf16 %v2898, %v2896
  %v2975 = vpack.c.bf16 %v2901, %v2899
  %v2976 = vpack.c.bf16 %v2902, %v2900
  %v2977 = vpack.c.bf16 %v2905, %v2903
  %v2978 = vpack.c.bf16 %v2906, %v2904
  %v2979 = vpack.c.bf16 %v2909, %v2907
  %v2980 = vpack.c.bf16 %v2910, %v2908
  %v2981 = vpack.c.bf16 %v2913, %v2911
  %v2982 = vpack.c.bf16 %v2914, %v2912
  %v2983 = vpack.c.bf16 %v2917, %v2915
  %v2984 = vpack.c.bf16 %v2918, %v2916
  %v2985 = vpack.c.bf16 %v2921, %v2919
  %v2986 = vpack.c.bf16 %v2922, %v2920
  %v2987 = vld [vmem:[%s5] sm:$0xf]
  %v2988 = vld [vmem:[%s5 + $0x4] sm:$0xf]
  %v2989 = vld [vmem:[%s5 + $0x8] sm:$0xf]
  %v2990 = vld [vmem:[%s5 + $0xc] sm:$0xf]
  %v2991 = vld [vmem:[%s5 + $0x10] sm:$0xf]
  %v2992 = vld [vmem:[%s5 + $0x14] sm:$0xf]
  %v2993 = vld [vmem:[%s5 + $0x18] sm:$0xf]
  %v2994 = vld [vmem:[%s5 + $0x1c] sm:$0xf]
  %v2995 = vld [vmem:[%s5 + $0x20] sm:$0xf]
  %v2996 = vld [vmem:[%s5 + $0x24] sm:$0xf]
  %v2997 = vld [vmem:[%s5 + $0x28] sm:$0xf]
  %v2998 = vld [vmem:[%s5 + $0x2c] sm:$0xf]
  %v2999 = vld [vmem:[%s5 + $0x30] sm:$0xf]
  %v3000 = vld [vmem:[%s5 + $0x34] sm:$0xf]
  %v3001 = vld [vmem:[%s5 + $0x38] sm:$0xf]
  %v3002 = vld [vmem:[%s5 + $0x3c] sm:$0xf]
  %v3003 = vld [vmem:[%s5 + $0x40] sm:$0xf]
  %v3004 = vld [vmem:[%s5 + $0x44] sm:$0xf]
  %v3005 = vld [vmem:[%s5 + $0x48] sm:$0xf]
  %v3006 = vld [vmem:[%s5 + $0x4c] sm:$0xf]
  %v3007 = vld [vmem:[%s5 + $0x50] sm:$0xf]
  %v3008 = vld [vmem:[%s5 + $0x54] sm:$0xf]
  %v3009 = vld [vmem:[%s5 + $0x58] sm:$0xf]
  %v3010 = vld [vmem:[%s5 + $0x5c] sm:$0xf]
  %v3011 = vld [vmem:[%s5 + $0x60] sm:$0xf]
  %v3012 = vld [vmem:[%s5 + $0x64] sm:$0xf]
  %v3013 = vld [vmem:[%s5 + $0x68] sm:$0xf]
  %v3014 = vld [vmem:[%s5 + $0x6c] sm:$0xf]
  %v3015 = vld [vmem:[%s5 + $0x70] sm:$0xf]
  %v3016 = vld [vmem:[%s5 + $0x74] sm:$0xf]
  %v3017 = vld [vmem:[%s5 + $0x78] sm:$0xf]
  %v3018 = vld [vmem:[%s5 + $0x7c] sm:$0xf]
  %v3019 = vld [vmem:[%s6] sm:$0x1]
  %v3021 = vperm.slane %v3019, 0
  %v3055 = vunpack.c.l.b16 %v2987
  %v3056 = vunpack.c.l.b16 %v2988
  %v3057 = vunpack.c.l.b16 %v2989
  %v3058 = vunpack.c.l.b16 %v2990
  %v3059 = vunpack.c.l.b16 %v2991
  %v3060 = vunpack.c.l.b16 %v2992
  %v3061 = vunpack.c.l.b16 %v2993
  %v3062 = vunpack.c.l.b16 %v2994
  %v3063 = vunpack.c.l.b16 %v2995
  %v3064 = vunpack.c.l.b16 %v2996
  %v3065 = vunpack.c.l.b16 %v2997
  %v3066 = vunpack.c.l.b16 %v2998
  %v3067 = vunpack.c.l.b16 %v2999
  %v3068 = vunpack.c.l.b16 %v3000
  %v3069 = vunpack.c.l.b16 %v3001
  %v3070 = vunpack.c.l.b16 %v3002
  %v3071 = vunpack.c.l.b16 %v3003
  %v3072 = vunpack.c.l.b16 %v3004
  %v3073 = vunpack.c.l.b16 %v3005
  %v3074 = vunpack.c.l.b16 %v3006
  %v3075 = vunpack.c.l.b16 %v3007
  %v3076 = vunpack.c.l.b16 %v3008
  %v3077 = vunpack.c.l.b16 %v3009
  %v3078 = vunpack.c.l.b16 %v3010
  %v3079 = vunpack.c.l.b16 %v3011
  %v3080 = vunpack.c.l.b16 %v3012
  %v3081 = vunpack.c.l.b16 %v3013
  %v3082 = vunpack.c.l.b16 %v3014
  %v3083 = vunpack.c.l.b16 %v3015
  %v3084 = vunpack.c.l.b16 %v3016
  %v3085 = vunpack.c.l.b16 %v3017
  %v3086 = vunpack.c.l.b16 %v3018
  %v3087 = vpack.c.b16 %v3056, %v3055
  %v3088 = vpack.c.b16 %v3058, %v3057
  %v3089 = vpack.c.b16 %v3060, %v3059
  %v3090 = vpack.c.b16 %v3062, %v3061
  %v3091 = vpack.c.b16 %v3064, %v3063
  %v3092 = vpack.c.b16 %v3066, %v3065
  %v3093 = vpack.c.b16 %v3068, %v3067
  %v3094 = vpack.c.b16 %v3070, %v3069
  %v3095 = vpack.c.b16 %v3072, %v3071
  %v3096 = vpack.c.b16 %v3074, %v3073
  %v3097 = vpack.c.b16 %v3076, %v3075
  %v3098 = vpack.c.b16 %v3078, %v3077
  %v3099 = vpack.c.b16 %v3080, %v3079
  %v3100 = vpack.c.b16 %v3082, %v3081
  %v3101 = vpack.c.b16 %v3084, %v3083
  %v3102 = vpack.c.b16 %v3086, %v3085
  %3119 = vmatpush.bf16.msra.mxu0 %v3094
  %3120 = vmatpush.bf16.msra.mxu0 %v3093
  %3121 = vmatpush.bf16.msra.mxu0 %v3092
  %3122 = vmatpush.bf16.msra.mxu0 %v3091
  %3123 = vmatpush.bf16.msra.mxu0 %v3090
  %3124 = vmatpush.bf16.msra.mxu0 %v3089
  %3125 = vmatpush.bf16.msra.mxu0 %v3088
  %3126 = vmatpush.bf16.msra.mxu0 %v3087
  %3127 = vmatmul.bf16.gmra.mxu0 %v2923
  %v3128 = vpop.f32.mrf.mxu0
  %v3129 = vadd.f32 %v3021, %v3128
  %v3130 = vpop.f32.mrf.mxu0
  %v3131 = vadd.f32 %v3021, %v3130
  %3132 = vmatmul.bf16.gmra.mxu0 %v2925
  %v3133 = vpop.f32.mrf.mxu0
  %v3134 = vadd.f32 %v3021, %v3133
  %v3135 = vpop.f32.mrf.mxu0
  %v3136 = vadd.f32 %v3021, %v3135
  %3137 = vmatmul.bf16.gmra.mxu0 %v2927
  %v3138 = vpop.f32.mrf.mxu0
  %v3139 = vadd.f32 %v3021, %v3138
  %v3140 = vpop.f32.mrf.mxu0
  %v3141 = vadd.f32 %v3021, %v3140
  %3142 = vmatmul.bf16.gmra.mxu0 %v2929
  %v3143 = vpop.f32.mrf.mxu0
  %v3144 = vadd.f32 %v3021, %v3143
  %v3145 = vpop.f32.mrf.mxu0
  %v3146 = vadd.f32 %v3021, %v3145
  %3147 = vmatmul.bf16.gmra.mxu0 %v2931
  %v3148 = vpop.f32.mrf.mxu0
  %v3149 = vadd.f32 %v3021, %v3148
  %v3150 = vpop.f32.mrf.mxu0
  %v3151 = vadd.f32 %v3021, %v3150
  %3152 = vmatmul.bf16.gmra.mxu0 %v2933
  %v3153 = vpop.f32.mrf.mxu0
  %v3154 = vadd.f32 %v3021, %v3153
  %v3155 = vpop.f32.mrf.mxu0
  %v3156 = vadd.f32 %v3021, %v3155
  %3157 = vmatmul.bf16.gmra.mxu0 %v2935
  %v3158 = vpop.f32.mrf.mxu0
  %v3159 = vadd.f32 %v3021, %v3158
  %v3160 = vpop.f32.mrf.mxu0
  %v3161 = vadd.f32 %v3021, %v3160
  %3162 = vmatmul.bf16.gmra.mxu0 %v2937
  %v3163 = vpop.f32.mrf.mxu0
  %v3164 = vadd.f32 %v3021, %v3163
  %v3165 = vpop.f32.mrf.mxu0
  %v3166 = vadd.f32 %v3021, %v3165
  %3167 = vmatmul.bf16.gmra.mxu0 %v2939
  %v3168 = vpop.f32.mrf.mxu0
  %v3169 = vadd.f32 %v3021, %v3168
  %v3170 = vpop.f32.mrf.mxu0
  %v3171 = vadd.f32 %v3021, %v3170
  %3172 = vmatmul.bf16.gmra.mxu0 %v2941
  %v3173 = vpop.f32.mrf.mxu0
  %v3174 = vadd.f32 %v3021, %v3173
  %v3175 = vpop.f32.mrf.mxu0
  %v3176 = vadd.f32 %v3021, %v3175
  %3177 = vmatmul.bf16.gmra.mxu0 %v2943
  %v3178 = vpop.f32.mrf.mxu0
  %v3179 = vadd.f32 %v3021, %v3178
  %v3180 = vpop.f32.mrf.mxu0
  %v3181 = vadd.f32 %v3021, %v3180
  %3182 = vmatmul.bf16.gmra.mxu0 %v2945
  %v3183 = vpop.f32.mrf.mxu0
  %v3184 = vadd.f32 %v3021, %v3183
  %v3185 = vpop.f32.mrf.mxu0
  %v3186 = vadd.f32 %v3021, %v3185
  %3187 = vmatmul.bf16.gmra.mxu0 %v2947
  %v3188 = vpop.f32.mrf.mxu0
  %v3189 = vadd.f32 %v3021, %v3188
  %v3190 = vpop.f32.mrf.mxu0
  %v3191 = vadd.f32 %v3021, %v3190
  %3192 = vmatmul.bf16.gmra.mxu0 %v2949
  %v3193 = vpop.f32.mrf.mxu0
  %v3194 = vadd.f32 %v3021, %v3193
  %v3195 = vpop.f32.mrf.mxu0
  %v3196 = vadd.f32 %v3021, %v3195
  %3197 = vmatmul.bf16.gmra.mxu0 %v2951
  %v3198 = vpop.f32.mrf.mxu0
  %v3199 = vadd.f32 %v3021, %v3198
  %v3200 = vpop.f32.mrf.mxu0
  %v3201 = vadd.f32 %v3021, %v3200
  %3202 = vmatmul.bf16.gmra.mxu0 %v2953
  %v3203 = vpop.f32.mrf.mxu0
  %v3204 = vadd.f32 %v3021, %v3203
  %v3205 = vpop.f32.mrf.mxu0
  %v3206 = vadd.f32 %v3021, %v3205
  %3207 = vmatmul.bf16.gmra.mxu0 %v2955
  %v3208 = vpop.f32.mrf.mxu0
  %v3209 = vadd.f32 %v3021, %v3208
  %v3210 = vpop.f32.mrf.mxu0
  %v3211 = vadd.f32 %v3021, %v3210
  %3212 = vmatmul.bf16.gmra.mxu0 %v2957
  %v3213 = vpop.f32.mrf.mxu0
  %v3214 = vadd.f32 %v3021, %v3213
  %v3215 = vpop.f32.mrf.mxu0
  %v3216 = vadd.f32 %v3021, %v3215
  %3217 = vmatmul.bf16.gmra.mxu0 %v2959
  %v3218 = vpop.f32.mrf.mxu0
  %v3219 = vadd.f32 %v3021, %v3218
  %v3220 = vpop.f32.mrf.mxu0
  %v3221 = vadd.f32 %v3021, %v3220
  %3222 = vmatmul.bf16.gmra.mxu0 %v2961
  %v3223 = vpop.f32.mrf.mxu0
  %v3224 = vadd.f32 %v3021, %v3223
  %v3225 = vpop.f32.mrf.mxu0
  %v3226 = vadd.f32 %v3021, %v3225
  %3227 = vmatmul.bf16.gmra.mxu0 %v2963
  %v3228 = vpop.f32.mrf.mxu0
  %v3229 = vadd.f32 %v3021, %v3228
  %v3230 = vpop.f32.mrf.mxu0
  %v3231 = vadd.f32 %v3021, %v3230
  %3232 = vmatmul.bf16.gmra.mxu0 %v2965
  %v3233 = vpop.f32.mrf.mxu0
  %v3234 = vadd.f32 %v3021, %v3233
  %v3235 = vpop.f32.mrf.mxu0
  %v3236 = vadd.f32 %v3021, %v3235
  %3237 = vmatmul.bf16.gmra.mxu0 %v2967
  %v3238 = vpop.f32.mrf.mxu0
  %v3239 = vadd.f32 %v3021, %v3238
  %v3240 = vpop.f32.mrf.mxu0
  %v3241 = vadd.f32 %v3021, %v3240
  %3242 = vmatmul.bf16.gmra.mxu0 %v2969
  %v3243 = vpop.f32.mrf.mxu0
  %v3244 = vadd.f32 %v3021, %v3243
  %v3245 = vpop.f32.mrf.mxu0
  %v3246 = vadd.f32 %v3021, %v3245
  %3247 = vmatmul.bf16.gmra.mxu0 %v2971
  %v3248 = vpop.f32.mrf.mxu0
  %v3249 = vadd.f32 %v3021, %v3248
  %v3250 = vpop.f32.mrf.mxu0
  %v3251 = vadd.f32 %v3021, %v3250
  %3252 = vmatmul.bf16.gmra.mxu0 %v2973
  %v3253 = vpop.f32.mrf.mxu0
  %v3254 = vadd.f32 %v3021, %v3253
  %v3255 = vpop.f32.mrf.mxu0
  %v3256 = vadd.f32 %v3021, %v3255
  %3257 = vmatmul.bf16.gmra.mxu0 %v2975
  %v3258 = vpop.f32.mrf.mxu0
  %v3259 = vadd.f32 %v3021, %v3258
  %v3260 = vpop.f32.mrf.mxu0
  %v3261 = vadd.f32 %v3021, %v3260
  %3262 = vmatmul.bf16.gmra.mxu0 %v2977
  %v3263 = vpop.f32.mrf.mxu0
  %v3264 = vadd.f32 %v3021, %v3263
  %v3265 = vpop.f32.mrf.mxu0
  %v3266 = vadd.f32 %v3021, %v3265
  %3267 = vmatmul.bf16.gmra.mxu0 %v2979
  %v3268 = vpop.f32.mrf.mxu0
  %v3269 = vadd.f32 %v3021, %v3268
  %v3270 = vpop.f32.mrf.mxu0
  %v3271 = vadd.f32 %v3021, %v3270
  %3272 = vmatmul.bf16.gmra.mxu0 %v2981
  %v3273 = vpop.f32.mrf.mxu0
  %v3274 = vadd.f32 %v3021, %v3273
  %v3275 = vpop.f32.mrf.mxu0
  %v3276 = vadd.f32 %v3021, %v3275
  %3277 = vmatmul.bf16.gmra.mxu0 %v2983
  %v3278 = vpop.f32.mrf.mxu0
  %v3279 = vadd.f32 %v3021, %v3278
  %v3280 = vpop.f32.mrf.mxu0
  %v3281 = vadd.f32 %v3021, %v3280
  %3282 = vmatmul.bf16.gmra.mxu0 %v2985
  %v3283 = vpop.f32.mrf.mxu0
  %v3284 = vadd.f32 %v3021, %v3283
  %v3285 = vpop.f32.mrf.mxu0
  %v3286 = vadd.f32 %v3021, %v3285
  %3287 = vdwg.mxu0
  %3288 = vmatpush.bf16.msra.mxu0 %v3102
  %3289 = vmatpush.bf16.msra.mxu0 %v3101
  %3290 = vmatpush.bf16.msra.mxu0 %v3100
  %3291 = vmatpush.bf16.msra.mxu0 %v3099
  %3292 = vmatpush.bf16.msra.mxu0 %v3098
  %3293 = vmatpush.bf16.msra.mxu0 %v3097
  %3294 = vmatpush.bf16.msra.mxu0 %v3096
  %3295 = vmatpush.bf16.msra.mxu0 %v3095
  %3296 = vmatmul.bf16.gmra.mxu0 %v2924
  %v3297 = vpop.f32.mrf.mxu0
  %v3298 = vadd.f32 %v3129, %v3297
  %v3299 = vpop.f32.mrf.mxu0
  %v3300 = vadd.f32 %v3131, %v3299
  %3301 = vmatmul.bf16.gmra.mxu0 %v2926
  %v3302 = vpop.f32.mrf.mxu0
  %v3303 = vadd.f32 %v3134, %v3302
  %v3304 = vpop.f32.mrf.mxu0
  %v3305 = vadd.f32 %v3136, %v3304
  %3306 = vmatmul.bf16.gmra.mxu0 %v2928
  %v3307 = vpop.f32.mrf.mxu0
  %v3308 = vadd.f32 %v3139, %v3307
  %v3309 = vpop.f32.mrf.mxu0
  %v3310 = vadd.f32 %v3141, %v3309
  %3311 = vmatmul.bf16.gmra.mxu0 %v2930
  %v3312 = vpop.f32.mrf.mxu0
  %v3313 = vadd.f32 %v3144, %v3312
  %v3314 = vpop.f32.mrf.mxu0
  %v3315 = vadd.f32 %v3146, %v3314
  %3316 = vmatmul.bf16.gmra.mxu0 %v2932
  %v3317 = vpop.f32.mrf.mxu0
  %v3318 = vadd.f32 %v3149, %v3317
  %v3319 = vpop.f32.mrf.mxu0
  %v3320 = vadd.f32 %v3151, %v3319
  %3321 = vmatmul.bf16.gmra.mxu0 %v2934
  %v3322 = vpop.f32.mrf.mxu0
  %v3323 = vadd.f32 %v3154, %v3322
  %v3324 = vpop.f32.mrf.mxu0
  %v3325 = vadd.f32 %v3156, %v3324
  %3326 = vmatmul.bf16.gmra.mxu0 %v2936
  %v3327 = vpop.f32.mrf.mxu0
  %v3328 = vadd.f32 %v3159, %v3327
  %v3329 = vpop.f32.mrf.mxu0
  %v3330 = vadd.f32 %v3161, %v3329
  %3331 = vmatmul.bf16.gmra.mxu0 %v2938
  %v3332 = vpop.f32.mrf.mxu0
  %v3333 = vadd.f32 %v3164, %v3332
  %v3334 = vpop.f32.mrf.mxu0
  %v3335 = vadd.f32 %v3166, %v3334
  %3336 = vmatmul.bf16.gmra.mxu0 %v2940
  %v3337 = vpop.f32.mrf.mxu0
  %v3338 = vadd.f32 %v3169, %v3337
  %v3339 = vpop.f32.mrf.mxu0
  %v3340 = vadd.f32 %v3171, %v3339
  %3341 = vmatmul.bf16.gmra.mxu0 %v2942
  %v3342 = vpop.f32.mrf.mxu0
  %v3343 = vadd.f32 %v3174, %v3342
  %v3344 = vpop.f32.mrf.mxu0
  %v3345 = vadd.f32 %v3176, %v3344
  %3346 = vmatmul.bf16.gmra.mxu0 %v2944
  %v3347 = vpop.f32.mrf.mxu0
  %v3348 = vadd.f32 %v3179, %v3347
  %v3349 = vpop.f32.mrf.mxu0
  %v3350 = vadd.f32 %v3181, %v3349
  %3351 = vmatmul.bf16.gmra.mxu0 %v2946
  %v3352 = vpop.f32.mrf.mxu0
  %v3353 = vadd.f32 %v3184, %v3352
  %v3354 = vpop.f32.mrf.mxu0
  %v3355 = vadd.f32 %v3186, %v3354
  %3356 = vmatmul.bf16.gmra.mxu0 %v2948
  %v3357 = vpop.f32.mrf.mxu0
  %v3358 = vadd.f32 %v3189, %v3357
  %v3359 = vpop.f32.mrf.mxu0
  %v3360 = vadd.f32 %v3191, %v3359
  %3361 = vmatmul.bf16.gmra.mxu0 %v2950
  %v3362 = vpop.f32.mrf.mxu0
  %v3363 = vadd.f32 %v3194, %v3362
  %v3364 = vpop.f32.mrf.mxu0
  %v3365 = vadd.f32 %v3196, %v3364
  %3366 = vmatmul.bf16.gmra.mxu0 %v2952
  %v3367 = vpop.f32.mrf.mxu0
  %v3368 = vadd.f32 %v3199, %v3367
  %v3369 = vpop.f32.mrf.mxu0
  %v3370 = vadd.f32 %v3201, %v3369
  %3371 = vmatmul.bf16.gmra.mxu0 %v2954
  %v3372 = vpop.f32.mrf.mxu0
  %v3373 = vadd.f32 %v3204, %v3372
  %v3374 = vpop.f32.mrf.mxu0
  %v3375 = vadd.f32 %v3206, %v3374
  %3376 = vmatmul.bf16.gmra.mxu0 %v2956
  %v3377 = vpop.f32.mrf.mxu0
  %v3378 = vadd.f32 %v3209, %v3377
  %v3379 = vpop.f32.mrf.mxu0
  %v3380 = vadd.f32 %v3211, %v3379
  %3381 = vmatmul.bf16.gmra.mxu0 %v2958
  %v3382 = vpop.f32.mrf.mxu0
  %v3383 = vadd.f32 %v3214, %v3382
  %v3384 = vpop.f32.mrf.mxu0
  %v3385 = vadd.f32 %v3216, %v3384
  %3386 = vmatmul.bf16.gmra.mxu0 %v2960
  %v3387 = vpop.f32.mrf.mxu0
  %v3388 = vadd.f32 %v3219, %v3387
  %v3389 = vpop.f32.mrf.mxu0
  %v3390 = vadd.f32 %v3221, %v3389
  %3391 = vmatmul.bf16.gmra.mxu0 %v2962
  %v3392 = vpop.f32.mrf.mxu0
  %v3393 = vadd.f32 %v3224, %v3392
  %v3394 = vpop.f32.mrf.mxu0
  %v3395 = vadd.f32 %v3226, %v3394
  %3396 = vmatmul.bf16.gmra.mxu0 %v2964
  %v3397 = vpop.f32.mrf.mxu0
  %v3398 = vadd.f32 %v3229, %v3397
  %v3399 = vpop.f32.mrf.mxu0
  %v3400 = vadd.f32 %v3231, %v3399
  %3401 = vmatmul.bf16.gmra.mxu0 %v2966
  %v3402 = vpop.f32.mrf.mxu0
  %v3403 = vadd.f32 %v3234, %v3402
  %v3404 = vpop.f32.mrf.mxu0
  %v3405 = vadd.f32 %v3236, %v3404
  %3406 = vmatmul.bf16.gmra.mxu0 %v2968
  %v3407 = vpop.f32.mrf.mxu0
  %v3408 = vadd.f32 %v3239, %v3407
  %v3409 = vpop.f32.mrf.mxu0
  %v3410 = vadd.f32 %v3241, %v3409
  %3411 = vmatmul.bf16.gmra.mxu0 %v2970
  %v3412 = vpop.f32.mrf.mxu0
  %v3413 = vadd.f32 %v3244, %v3412
  %v3414 = vpop.f32.mrf.mxu0
  %v3415 = vadd.f32 %v3246, %v3414
  %3416 = vmatmul.bf16.gmra.mxu0 %v2972
  %v3417 = vpop.f32.mrf.mxu0
  %v3418 = vadd.f32 %v3249, %v3417
  %v3419 = vpop.f32.mrf.mxu0
  %v3420 = vadd.f32 %v3251, %v3419
  %3421 = vmatmul.bf16.gmra.mxu0 %v2974
  %v3422 = vpop.f32.mrf.mxu0
  %v3423 = vadd.f32 %v3254, %v3422
  %v3424 = vpop.f32.mrf.mxu0
  %v3425 = vadd.f32 %v3256, %v3424
  %3426 = vmatmul.bf16.gmra.mxu0 %v2976
  %v3427 = vpop.f32.mrf.mxu0
  %v3428 = vadd.f32 %v3259, %v3427
  %v3429 = vpop.f32.mrf.mxu0
  %v3430 = vadd.f32 %v3261, %v3429
  %3431 = vmatmul.bf16.gmra.mxu0 %v2978
  %v3432 = vpop.f32.mrf.mxu0
  %v3433 = vadd.f32 %v3264, %v3432
  %v3434 = vpop.f32.mrf.mxu0
  %v3435 = vadd.f32 %v3266, %v3434
  %3436 = vmatmul.bf16.gmra.mxu0 %v2980
  %v3437 = vpop.f32.mrf.mxu0
  %v3438 = vadd.f32 %v3269, %v3437
  %v3439 = vpop.f32.mrf.mxu0
  %v3440 = vadd.f32 %v3271, %v3439
  %3441 = vmatmul.bf16.gmra.mxu0 %v2982
  %v3442 = vpop.f32.mrf.mxu0
  %v3443 = vadd.f32 %v3274, %v3442
  %v3444 = vpop.f32.mrf.mxu0
  %v3445 = vadd.f32 %v3276, %v3444
  %3446 = vmatmul.bf16.gmra.mxu0 %v2984
  %v3447 = vpop.f32.mrf.mxu0
  %v3448 = vadd.f32 %v3279, %v3447
  %v3449 = vpop.f32.mrf.mxu0
  %v3450 = vadd.f32 %v3281, %v3449
  %3451 = vmatmul.bf16.gmra.mxu0 %v2986
  %v3452 = vpop.f32.mrf.mxu0
  %v3453 = vadd.f32 %v3284, %v3452
  %v3454 = vpop.f32.mrf.mxu0
  %v3455 = vadd.f32 %v3286, %v3454
  %3456 = vdwg.mxu0
  %v3457 = vmax.f32 %v3298, 0.0
  %v3458 = vmax.f32 %v3300, 0.0
  %v3459 = vmax.f32 %v3303, 0.0
  %v3460 = vmax.f32 %v3305, 0.0
  %v3461 = vmax.f32 %v3308, 0.0
  %v3462 = vmax.f32 %v3310, 0.0
  %v3463 = vmax.f32 %v3313, 0.0
  %v3464 = vmax.f32 %v3315, 0.0
  %v3465 = vmax.f32 %v3318, 0.0
  %v3466 = vmax.f32 %v3320, 0.0
  %v3467 = vmax.f32 %v3323, 0.0
  %v3468 = vmax.f32 %v3325, 0.0
  %v3469 = vmax.f32 %v3328, 0.0
  %v3470 = vmax.f32 %v3330, 0.0
  %v3471 = vmax.f32 %v3333, 0.0
  %v3472 = vmax.f32 %v3335, 0.0
  %v3473 = vmax.f32 %v3338, 0.0
  %v3474 = vmax.f32 %v3340, 0.0
  %v3475 = vmax.f32 %v3343, 0.0
  %v3476 = vmax.f32 %v3345, 0.0
  %v3477 = vmax.f32 %v3348, 0.0
  %v3478 = vmax.f32 %v3350, 0.0
  %v3479 = vmax.f32 %v3353, 0.0
  %v3480 = vmax.f32 %v3355, 0.0
  %v3481 = vmax.f32 %v3358, 0.0
  %v3482 = vmax.f32 %v3360, 0.0
  %v3483 = vmax.f32 %v3363, 0.0
  %v3484 = vmax.f32 %v3365, 0.0
  %v3485 = vmax.f32 %v3368, 0.0
  %v3486 = vmax.f32 %v3370, 0.0
  %v3487 = vmax.f32 %v3373, 0.0
  %v3488 = vmax.f32 %v3375, 0.0
  %v3489 = vmax.f32 %v3378, 0.0
  %v3490 = vmax.f32 %v3380, 0.0
  %v3491 = vmax.f32 %v3383, 0.0
  %v3492 = vmax.f32 %v3385, 0.0
  %v3493 = vmax.f32 %v3388, 0.0
  %v3494 = vmax.f32 %v3390, 0.0
  %v3495 = vmax.f32 %v3393, 0.0
  %v3496 = vmax.f32 %v3395, 0.0
  %v3497 = vmax.f32 %v3398, 0.0
  %v3498 = vmax.f32 %v3400, 0.0
  %v3499 = vmax.f32 %v3403, 0.0
  %v3500 = vmax.f32 %v3405, 0.0
  %v3501 = vmax.f32 %v3408, 0.0
  %v3502 = vmax.f32 %v3410, 0.0
  %v3503 = vmax.f32 %v3413, 0.0
  %v3504 = vmax.f32 %v3415, 0.0
  %v3505 = vmax.f32 %v3418, 0.0
  %v3506 = vmax.f32 %v3420, 0.0
  %v3507 = vmax.f32 %v3423, 0.0
  %v3508 = vmax.f32 %v3425, 0.0
  %v3509 = vmax.f32 %v3428, 0.0
  %v3510 = vmax.f32 %v3430, 0.0
  %v3511 = vmax.f32 %v3433, 0.0
  %v3512 = vmax.f32 %v3435, 0.0
  %v3513 = vmax.f32 %v3438, 0.0
  %v3514 = vmax.f32 %v3440, 0.0
  %v3515 = vmax.f32 %v3443, 0.0
  %v3516 = vmax.f32 %v3445, 0.0
  %v3517 = vmax.f32 %v3448, 0.0
  %v3518 = vmax.f32 %v3450, 0.0
  %v3519 = vmax.f32 %v3453, 0.0
  %v3520 = vmax.f32 %v3455, 0.0
  %v3521 = vpack.c.bf16 %v3458, %v3457
  %v3522 = vpack.c.bf16 %v3460, %v3459
  %v3523 = vpack.c.bf16 %v3462, %v3461
  %v3524 = vpack.c.bf16 %v3464, %v3463
  %v3525 = vpack.c.bf16 %v3466, %v3465
  %v3526 = vpack.c.bf16 %v3468, %v3467
  %v3527 = vpack.c.bf16 %v3470, %v3469
  %v3528 = vpack.c.bf16 %v3472, %v3471
  %v3529 = vpack.c.bf16 %v3474, %v3473
  %v3530 = vpack.c.bf16 %v3476, %v3475
  %v3531 = vpack.c.bf16 %v3478, %v3477
  %v3532 = vpack.c.bf16 %v3480, %v3479
  %v3533 = vpack.c.bf16 %v3482, %v3481
  %v3534 = vpack.c.bf16 %v3484, %v3483
  %v3535 = vpack.c.bf16 %v3486, %v3485
  %v3536 = vpack.c.bf16 %v3488, %v3487
  %v3537 = vpack.c.bf16 %v3490, %v3489
  %v3538 = vpack.c.bf16 %v3492, %v3491
  %v3539 = vpack.c.bf16 %v3494, %v3493
  %v3540 = vpack.c.bf16 %v3496, %v3495
  %v3541 = vpack.c.bf16 %v3498, %v3497
  %v3542 = vpack.c.bf16 %v3500, %v3499
  %v3543 = vpack.c.bf16 %v3502, %v3501
  %v3544 = vpack.c.bf16 %v3504, %v3503
  %v3545 = vpack.c.bf16 %v3506, %v3505
  %v3546 = vpack.c.bf16 %v3508, %v3507
  %v3547 = vpack.c.bf16 %v3510, %v3509
  %v3548 = vpack.c.bf16 %v3512, %v3511
  %v3549 = vpack.c.bf16 %v3514, %v3513
  %v3550 = vpack.c.bf16 %v3516, %v3515
  %v3551 = vpack.c.bf16 %v3518, %v3517
  %v3552 = vpack.c.bf16 %v3520, %v3519
  %v3553 = vld [vmem:[%s7] sm:$0xf]
  %v3554 = vld [vmem:[%s7 + $0x4] sm:$0xf]
  %v3555 = vld [vmem:[%s7 + $0x8] sm:$0xf]
  %v3556 = vld [vmem:[%s7 + $0xc] sm:$0xf]
  %v3557 = vld [vmem:[%s7 + $0x10] sm:$0xf]
  %v3558 = vld [vmem:[%s7 + $0x14] sm:$0xf]
  %v3559 = vld [vmem:[%s7 + $0x18] sm:$0xf]
  %v3560 = vld [vmem:[%s7 + $0x1c] sm:$0xf]
  %v3561 = vld [vmem:[%s7 + $0x20] sm:$0xf]
  %v3562 = vld [vmem:[%s7 + $0x24] sm:$0xf]
  %v3563 = vld [vmem:[%s7 + $0x28] sm:$0xf]
  %v3564 = vld [vmem:[%s7 + $0x2c] sm:$0xf]
  %v3565 = vld [vmem:[%s7 + $0x30] sm:$0xf]
  %v3566 = vld [vmem:[%s7 + $0x34] sm:$0xf]
  %v3567 = vld [vmem:[%s7 + $0x38] sm:$0xf]
  %v3568 = vld [vmem:[%s7 + $0x3c] sm:$0xf]
  %v3569 = vld [vmem:[%s8] sm:$0x1]
  %v3571 = vperm.slane %v3569, 0
  %v3589 = vunpack.c.l.b16 %v3553
  %v3590 = vunpack.c.l.b16 %v3554
  %v3591 = vunpack.c.l.b16 %v3555
  %v3592 = vunpack.c.l.b16 %v3556
  %v3593 = vunpack.c.l.b16 %v3557
  %v3594 = vunpack.c.l.b16 %v3558
  %v3595 = vunpack.c.l.b16 %v3559
  %v3596 = vunpack.c.l.b16 %v3560
  %v3597 = vunpack.c.l.b16 %v3561
  %v3598 = vunpack.c.l.b16 %v3562
  %v3599 = vunpack.c.l.b16 %v3563
  %v3600 = vunpack.c.l.b16 %v3564
  %v3601 = vunpack.c.l.b16 %v3565
  %v3602 = vunpack.c.l.b16 %v3566
  %v3603 = vunpack.c.l.b16 %v3567
  %v3604 = vunpack.c.l.b16 %v3568
  %v3605 = vpack.c.b16 %v3590, %v3589
  %v3606 = vpack.c.b16 %v3592, %v3591
  %v3607 = vpack.c.b16 %v3594, %v3593
  %v3608 = vpack.c.b16 %v3596, %v3595
  %v3609 = vpack.c.b16 %v3598, %v3597
  %v3610 = vpack.c.b16 %v3600, %v3599
  %v3611 = vpack.c.b16 %v3602, %v3601
  %v3612 = vpack.c.b16 %v3604, %v3603
  %3621 = vmatpush.bf16.msra.mxu0 %v3612
  %3622 = vmatpush.bf16.msra.mxu0 %v3611
  %3623 = vmatpush.bf16.msra.mxu0 %v3610
  %3624 = vmatpush.bf16.msra.mxu0 %v3609
  %3625 = vmatpush.bf16.msra.mxu0 %v3608
  %3626 = vmatpush.bf16.msra.mxu0 %v3607
  %3627 = vmatpush.bf16.msra.mxu0 %v3606
  %3628 = vmatpush.bf16.msra.mxu0 %v3605
  %3629 = vmatmul.bf16.gmra.mxu0 %v3521
  %v3630 = vpop.f32.mrf.mxu0
  %v3631 = vadd.f32 %v3571, %v3630
  %v3632 = vpop.f32.mrf.mxu0
  %v3633 = vadd.f32 %v3571, %v3632
  %3634 = vmatmul.bf16.gmra.mxu0 %v3522
  %v3635 = vpop.f32.mrf.mxu0
  %v3636 = vadd.f32 %v3571, %v3635
  %v3637 = vpop.f32.mrf.mxu0
  %v3638 = vadd.f32 %v3571, %v3637
  %3639 = vmatmul.bf16.gmra.mxu0 %v3523
  %v3640 = vpop.f32.mrf.mxu0
  %v3641 = vadd.f32 %v3571, %v3640
  %v3642 = vpop.f32.mrf.mxu0
  %v3643 = vadd.f32 %v3571, %v3642
  %3644 = vmatmul.bf16.gmra.mxu0 %v3524
  %v3645 = vpop.f32.mrf.mxu0
  %v3646 = vadd.f32 %v3571, %v3645
  %v3647 = vpop.f32.mrf.mxu0
  %v3648 = vadd.f32 %v3571, %v3647
  %3649 = vmatmul.bf16.gmra.mxu0 %v3525
  %v3650 = vpop.f32.mrf.mxu0
  %v3651 = vadd.f32 %v3571, %v3650
  %v3652 = vpop.f32.mrf.mxu0
  %v3653 = vadd.f32 %v3571, %v3652
  %3654 = vmatmul.bf16.gmra.mxu0 %v3526
  %v3655 = vpop.f32.mrf.mxu0
  %v3656 = vadd.f32 %v3571, %v3655
  %v3657 = vpop.f32.mrf.mxu0
  %v3658 = vadd.f32 %v3571, %v3657
  %3659 = vmatmul.bf16.gmra.mxu0 %v3527
  %v3660 = vpop.f32.mrf.mxu0
  %v3661 = vadd.f32 %v3571, %v3660
  %v3662 = vpop.f32.mrf.mxu0
  %v3663 = vadd.f32 %v3571, %v3662
  %3664 = vmatmul.bf16.gmra.mxu0 %v3528
  %v3665 = vpop.f32.mrf.mxu0
  %v3666 = vadd.f32 %v3571, %v3665
  %v3667 = vpop.f32.mrf.mxu0
  %v3668 = vadd.f32 %v3571, %v3667
  %3669 = vmatmul.bf16.gmra.mxu0 %v3529
  %v3670 = vpop.f32.mrf.mxu0
  %v3671 = vadd.f32 %v3571, %v3670
  %v3672 = vpop.f32.mrf.mxu0
  %v3673 = vadd.f32 %v3571, %v3672
  %3674 = vmatmul.bf16.gmra.mxu0 %v3530
  %v3675 = vpop.f32.mrf.mxu0
  %v3676 = vadd.f32 %v3571, %v3675
  %v3677 = vpop.f32.mrf.mxu0
  %v3678 = vadd.f32 %v3571, %v3677
  %3679 = vmatmul.bf16.gmra.mxu0 %v3531
  %v3680 = vpop.f32.mrf.mxu0
  %v3681 = vadd.f32 %v3571, %v3680
  %v3682 = vpop.f32.mrf.mxu0
  %v3683 = vadd.f32 %v3571, %v3682
  %3684 = vmatmul.bf16.gmra.mxu0 %v3532
  %v3685 = vpop.f32.mrf.mxu0
  %v3686 = vadd.f32 %v3571, %v3685
  %v3687 = vpop.f32.mrf.mxu0
  %v3688 = vadd.f32 %v3571, %v3687
  %3689 = vmatmul.bf16.gmra.mxu0 %v3533
  %v3690 = vpop.f32.mrf.mxu0
  %v3691 = vadd.f32 %v3571, %v3690
  %v3692 = vpop.f32.mrf.mxu0
  %v3693 = vadd.f32 %v3571, %v3692
  %3694 = vmatmul.bf16.gmra.mxu0 %v3534
  %v3695 = vpop.f32.mrf.mxu0
  %v3696 = vadd.f32 %v3571, %v3695
  %v3697 = vpop.f32.mrf.mxu0
  %v3698 = vadd.f32 %v3571, %v3697
  %3699 = vmatmul.bf16.gmra.mxu0 %v3535
  %v3700 = vpop.f32.mrf.mxu0
  %v3701 = vadd.f32 %v3571, %v3700
  %v3702 = vpop.f32.mrf.mxu0
  %v3703 = vadd.f32 %v3571, %v3702
  %3704 = vmatmul.bf16.gmra.mxu0 %v3536
  %v3705 = vpop.f32.mrf.mxu0
  %v3706 = vadd.f32 %v3571, %v3705
  %v3707 = vpop.f32.mrf.mxu0
  %v3708 = vadd.f32 %v3571, %v3707
  %3709 = vmatmul.bf16.gmra.mxu0 %v3537
  %v3710 = vpop.f32.mrf.mxu0
  %v3711 = vadd.f32 %v3571, %v3710
  %v3712 = vpop.f32.mrf.mxu0
  %v3713 = vadd.f32 %v3571, %v3712
  %3714 = vmatmul.bf16.gmra.mxu0 %v3538
  %v3715 = vpop.f32.mrf.mxu0
  %v3716 = vadd.f32 %v3571, %v3715
  %v3717 = vpop.f32.mrf.mxu0
  %v3718 = vadd.f32 %v3571, %v3717
  %3719 = vmatmul.bf16.gmra.mxu0 %v3539
  %v3720 = vpop.f32.mrf.mxu0
  %v3721 = vadd.f32 %v3571, %v3720
  %v3722 = vpop.f32.mrf.mxu0
  %v3723 = vadd.f32 %v3571, %v3722
  %3724 = vmatmul.bf16.gmra.mxu0 %v3540
  %v3725 = vpop.f32.mrf.mxu0
  %v3726 = vadd.f32 %v3571, %v3725
  %v3727 = vpop.f32.mrf.mxu0
  %v3728 = vadd.f32 %v3571, %v3727
  %3729 = vmatmul.bf16.gmra.mxu0 %v3541
  %v3730 = vpop.f32.mrf.mxu0
  %v3731 = vadd.f32 %v3571, %v3730
  %v3732 = vpop.f32.mrf.mxu0
  %v3733 = vadd.f32 %v3571, %v3732
  %3734 = vmatmul.bf16.gmra.mxu0 %v3542
  %v3735 = vpop.f32.mrf.mxu0
  %v3736 = vadd.f32 %v3571, %v3735
  %v3737 = vpop.f32.mrf.mxu0
  %v3738 = vadd.f32 %v3571, %v3737
  %3739 = vmatmul.bf16.gmra.mxu0 %v3543
  %v3740 = vpop.f32.mrf.mxu0
  %v3741 = vadd.f32 %v3571, %v3740
  %v3742 = vpop.f32.mrf.mxu0
  %v3743 = vadd.f32 %v3571, %v3742
  %3744 = vmatmul.bf16.gmra.mxu0 %v3544
  %v3745 = vpop.f32.mrf.mxu0
  %v3746 = vadd.f32 %v3571, %v3745
  %v3747 = vpop.f32.mrf.mxu0
  %v3748 = vadd.f32 %v3571, %v3747
  %3749 = vmatmul.bf16.gmra.mxu0 %v3545
  %v3750 = vpop.f32.mrf.mxu0
  %v3751 = vadd.f32 %v3571, %v3750
  %v3752 = vpop.f32.mrf.mxu0
  %v3753 = vadd.f32 %v3571, %v3752
  %3754 = vmatmul.bf16.gmra.mxu0 %v3546
  %v3755 = vpop.f32.mrf.mxu0
  %v3756 = vadd.f32 %v3571, %v3755
  %v3757 = vpop.f32.mrf.mxu0
  %v3758 = vadd.f32 %v3571, %v3757
  %3759 = vmatmul.bf16.gmra.mxu0 %v3547
  %v3760 = vpop.f32.mrf.mxu0
  %v3761 = vadd.f32 %v3571, %v3760
  %v3762 = vpop.f32.mrf.mxu0
  %v3763 = vadd.f32 %v3571, %v3762
  %3764 = vmatmul.bf16.gmra.mxu0 %v3548
  %v3765 = vpop.f32.mrf.mxu0
  %v3766 = vadd.f32 %v3571, %v3765
  %v3767 = vpop.f32.mrf.mxu0
  %v3768 = vadd.f32 %v3571, %v3767
  %3769 = vmatmul.bf16.gmra.mxu0 %v3549
  %v3770 = vpop.f32.mrf.mxu0
  %v3771 = vadd.f32 %v3571, %v3770
  %v3772 = vpop.f32.mrf.mxu0
  %v3773 = vadd.f32 %v3571, %v3772
  %3774 = vmatmul.bf16.gmra.mxu0 %v3550
  %v3775 = vpop.f32.mrf.mxu0
  %v3776 = vadd.f32 %v3571, %v3775
  %v3777 = vpop.f32.mrf.mxu0
  %v3778 = vadd.f32 %v3571, %v3777
  %3779 = vmatmul.bf16.gmra.mxu0 %v3551
  %v3780 = vpop.f32.mrf.mxu0
  %v3781 = vadd.f32 %v3571, %v3780
  %v3782 = vpop.f32.mrf.mxu0
  %v3783 = vadd.f32 %v3571, %v3782
  %3784 = vmatmul.bf16.gmra.mxu0 %v3552
  %v3785 = vpop.f32.mrf.mxu0
  %v3786 = vadd.f32 %v3571, %v3785
  %v3787 = vpop.f32.mrf.mxu0
  %v3788 = vadd.f32 %v3571, %v3787
  %3789 = vdwg.mxu0
  %v3790 = vmax.f32 %v3631, 0.0
  %v3791 = vmax.f32 %v3633, 0.0
  %v3792 = vmax.f32 %v3636, 0.0
  %v3793 = vmax.f32 %v3638, 0.0
  %v3794 = vmax.f32 %v3641, 0.0
  %v3795 = vmax.f32 %v3643, 0.0
  %v3796 = vmax.f32 %v3646, 0.0
  %v3797 = vmax.f32 %v3648, 0.0
  %v3798 = vmax.f32 %v3651, 0.0
  %v3799 = vmax.f32 %v3653, 0.0
  %v3800 = vmax.f32 %v3656, 0.0
  %v3801 = vmax.f32 %v3658, 0.0
  %v3802 = vmax.f32 %v3661, 0.0
  %v3803 = vmax.f32 %v3663, 0.0
  %v3804 = vmax.f32 %v3666, 0.0
  %v3805 = vmax.f32 %v3668, 0.0
  %v3806 = vmax.f32 %v3671, 0.0
  %v3807 = vmax.f32 %v3673, 0.0
  %v3808 = vmax.f32 %v3676, 0.0
  %v3809 = vmax.f32 %v3678, 0.0
  %v3810 = vmax.f32 %v3681, 0.0
  %v3811 = vmax.f32 %v3683, 0.0
  %v3812 = vmax.f32 %v3686, 0.0
  %v3813 = vmax.f32 %v3688, 0.0
  %v3814 = vmax.f32 %v3691, 0.0
  %v3815 = vmax.f32 %v3693, 0.0
  %v3816 = vmax.f32 %v3696, 0.0
  %v3817 = vmax.f32 %v3698, 0.0
  %v3818 = vmax.f32 %v3701, 0.0
  %v3819 = vmax.f32 %v3703, 0.0
  %v3820 = vmax.f32 %v3706, 0.0
  %v3821 = vmax.f32 %v3708, 0.0
  %v3822 = vmax.f32 %v3711, 0.0
  %v3823 = vmax.f32 %v3713, 0.0
  %v3824 = vmax.f32 %v3716, 0.0
  %v3825 = vmax.f32 %v3718, 0.0
  %v3826 = vmax.f32 %v3721, 0.0
  %v3827 = vmax.f32 %v3723, 0.0
  %v3828 = vmax.f32 %v3726, 0.0
  %v3829 = vmax.f32 %v3728, 0.0
  %v3830 = vmax.f32 %v3731, 0.0
  %v3831 = vmax.f32 %v3733, 0.0
  %v3832 = vmax.f32 %v3736, 0.0
  %v3833 = vmax.f32 %v3738, 0.0
  %v3834 = vmax.f32 %v3741, 0.0
  %v3835 = vmax.f32 %v3743, 0.0
  %v3836 = vmax.f32 %v3746, 0.0
  %v3837 = vmax.f32 %v3748, 0.0
  %v3838 = vmax.f32 %v3751, 0.0
  %v3839 = vmax.f32 %v3753, 0.0
  %v3840 = vmax.f32 %v3756, 0.0
  %v3841 = vmax.f32 %v3758, 0.0
  %v3842 = vmax.f32 %v3761, 0.0
  %v3843 = vmax.f32 %v3763, 0.0
  %v3844 = vmax.f32 %v3766, 0.0
  %v3845 = vmax.f32 %v3768, 0.0
  %v3846 = vmax.f32 %v3771, 0.0
  %v3847 = vmax.f32 %v3773, 0.0
  %v3848 = vmax.f32 %v3776, 0.0
  %v3849 = vmax.f32 %v3778, 0.0
  %v3850 = vmax.f32 %v3781, 0.0
  %v3851 = vmax.f32 %v3783, 0.0
  %v3852 = vmax.f32 %v3786, 0.0
  %v3853 = vmax.f32 %v3788, 0.0
  %v3854 = vpack.c.bf16 %v3791, %v3790
  %v3855 = vpack.c.bf16 %v3793, %v3792
  %v3856 = vpack.c.bf16 %v3795, %v3794
  %v3857 = vpack.c.bf16 %v3797, %v3796
  %v3858 = vpack.c.bf16 %v3799, %v3798
  %v3859 = vpack.c.bf16 %v3801, %v3800
  %v3860 = vpack.c.bf16 %v3803, %v3802
  %v3861 = vpack.c.bf16 %v3805, %v3804
  %v3862 = vpack.c.bf16 %v3807, %v3806
  %v3863 = vpack.c.bf16 %v3809, %v3808
  %v3864 = vpack.c.bf16 %v3811, %v3810
  %v3865 = vpack.c.bf16 %v3813, %v3812
  %v3866 = vpack.c.bf16 %v3815, %v3814
  %v3867 = vpack.c.bf16 %v3817, %v3816
  %v3868 = vpack.c.bf16 %v3819, %v3818
  %v3869 = vpack.c.bf16 %v3821, %v3820
  %v3870 = vpack.c.bf16 %v3823, %v3822
  %v3871 = vpack.c.bf16 %v3825, %v3824
  %v3872 = vpack.c.bf16 %v3827, %v3826
  %v3873 = vpack.c.bf16 %v3829, %v3828
  %v3874 = vpack.c.bf16 %v3831, %v3830
  %v3875 = vpack.c.bf16 %v3833, %v3832
  %v3876 = vpack.c.bf16 %v3835, %v3834
  %v3877 = vpack.c.bf16 %v3837, %v3836
  %v3878 = vpack.c.bf16 %v3839, %v3838
  %v3879 = vpack.c.bf16 %v3841, %v3840
  %v3880 = vpack.c.bf16 %v3843, %v3842
  %v3881 = vpack.c.bf16 %v3845, %v3844
  %v3882 = vpack.c.bf16 %v3847, %v3846
  %v3883 = vpack.c.bf16 %v3849, %v3848
  %v3884 = vpack.c.bf16 %v3851, %v3850
  %v3885 = vpack.c.bf16 %v3853, %v3852
  %v3886 = vld [vmem:[%s9] sm:$0xf]
  %v3887 = vld [vmem:[%s9 + $0x4] sm:$0xf]
  %v3888 = vld [vmem:[%s9 + $0x8] sm:$0xf]
  %v3889 = vld [vmem:[%s9 + $0xc] sm:$0xf]
  %v3890 = vld [vmem:[%s9 + $0x10] sm:$0xf]
  %v3891 = vld [vmem:[%s9 + $0x14] sm:$0xf]
  %v3892 = vld [vmem:[%s9 + $0x18] sm:$0xf]
  %v3893 = vld [vmem:[%s9 + $0x1c] sm:$0xf]
  %v3894 = vld [vmem:[%s10] sm:$0x1]
  %v3896 = vperm.slane %v3894, 0
  %v3906 = vunpack.c.l.b16 %v3886
  %v3907 = vunpack.c.l.b16 %v3887
  %v3908 = vunpack.c.l.b16 %v3888
  %v3909 = vunpack.c.l.b16 %v3889
  %v3910 = vunpack.c.l.b16 %v3890
  %v3911 = vunpack.c.l.b16 %v3891
  %v3912 = vunpack.c.l.b16 %v3892
  %v3913 = vunpack.c.l.b16 %v3893
  %v3914 = vpack.c.b16 %v3907, %v3906
  %v3915 = vpack.c.b16 %v3909, %v3908
  %v3916 = vpack.c.b16 %v3911, %v3910
  %v3917 = vpack.c.b16 %v3913, %v3912
  %vm3922 = vcmask 523264
  %v3924 = vsel %vm3922, %v3854, 0
  %v3927 = vsel %vm3922, %v3855, 0
  %v3930 = vsel %vm3922, %v3856, 0
  %v3933 = vsel %vm3922, %v3857, 0
  %v3936 = vsel %vm3922, %v3858, 0
  %v3939 = vsel %vm3922, %v3859, 0
  %v3942 = vsel %vm3922, %v3860, 0
  %v3945 = vsel %vm3922, %v3861, 0
  %v3948 = vsel %vm3922, %v3862, 0
  %v3951 = vsel %vm3922, %v3863, 0
  %v3954 = vsel %vm3922, %v3864, 0
  %v3957 = vsel %vm3922, %v3865, 0
  %v3960 = vsel %vm3922, %v3866, 0
  %v3963 = vsel %vm3922, %v3867, 0
  %v3966 = vsel %vm3922, %v3868, 0
  %v3969 = vsel %vm3922, %v3869, 0
  %v3972 = vsel %vm3922, %v3870, 0
  %v3975 = vsel %vm3922, %v3871, 0
  %v3978 = vsel %vm3922, %v3872, 0
  %v3981 = vsel %vm3922, %v3873, 0
  %v3984 = vsel %vm3922, %v3874, 0
  %v3987 = vsel %vm3922, %v3875, 0
  %v3990 = vsel %vm3922, %v3876, 0
  %v3993 = vsel %vm3922, %v3877, 0
  %v3996 = vsel %vm3922, %v3878, 0
  %v3999 = vsel %vm3922, %v3879, 0
  %v4002 = vsel %vm3922, %v3880, 0
  %v4005 = vsel %vm3922, %v3881, 0
  %v4008 = vsel %vm3922, %v3882, 0
  %v4011 = vsel %vm3922, %v3883, 0
  %v4014 = vsel %vm3922, %v3884, 0
  %v4017 = vsel %vm3922, %v3885, 0
  %4019 = vmatpush.bf16.msra.mxu0 0
  %4020 = vmatpush.bf16.msra.mxu0 0
  %4021 = vmatpush.bf16.msra.mxu0 0
  %4022 = vmatpush.bf16.msra.mxu0 0
  %4023 = vmatpush.bf16.msra.mxu0 %v3917
  %4024 = vmatpush.bf16.msra.mxu0 %v3916
  %4025 = vmatpush.bf16.msra.mxu0 %v3915
  %4026 = vmatpush.bf16.msra.mxu0 %v3914
  %4027 = vmatmul.bf16.gmra.mxu0 %v3924
  %v4028 = vpop.f32.mrf.mxu0
  %v4029 = vadd.f32 %v3896, %v4028
  %v4030 = vpop.f32.mrf.mxu0
  %v4031 = vadd.f32 %v3896, %v4030
  %4032 = vmatmul.bf16.gmra.mxu0 %v3927
  %v4033 = vpop.f32.mrf.mxu0
  %v4034 = vadd.f32 %v3896, %v4033
  %v4035 = vpop.f32.mrf.mxu0
  %v4036 = vadd.f32 %v3896, %v4035
  %4037 = vmatmul.bf16.gmra.mxu0 %v3930
  %v4038 = vpop.f32.mrf.mxu0
  %v4039 = vadd.f32 %v3896, %v4038
  %v4040 = vpop.f32.mrf.mxu0
  %v4041 = vadd.f32 %v3896, %v4040
  %4042 = vmatmul.bf16.gmra.mxu0 %v3933
  %v4043 = vpop.f32.mrf.mxu0
  %v4044 = vadd.f32 %v3896, %v4043
  %v4045 = vpop.f32.mrf.mxu0
  %v4046 = vadd.f32 %v3896, %v4045
  %4047 = vmatmul.bf16.gmra.mxu0 %v3936
  %v4048 = vpop.f32.mrf.mxu0
  %v4049 = vadd.f32 %v3896, %v4048
  %v4050 = vpop.f32.mrf.mxu0
  %v4051 = vadd.f32 %v3896, %v4050
  %4052 = vmatmul.bf16.gmra.mxu0 %v3939
  %v4053 = vpop.f32.mrf.mxu0
  %v4054 = vadd.f32 %v3896, %v4053
  %v4055 = vpop.f32.mrf.mxu0
  %v4056 = vadd.f32 %v3896, %v4055
  %4057 = vmatmul.bf16.gmra.mxu0 %v3942
  %v4058 = vpop.f32.mrf.mxu0
  %v4059 = vadd.f32 %v3896, %v4058
  %v4060 = vpop.f32.mrf.mxu0
  %v4061 = vadd.f32 %v3896, %v4060
  %4062 = vmatmul.bf16.gmra.mxu0 %v3945
  %v4063 = vpop.f32.mrf.mxu0
  %v4064 = vadd.f32 %v3896, %v4063
  %v4065 = vpop.f32.mrf.mxu0
  %v4066 = vadd.f32 %v3896, %v4065
  %4067 = vmatmul.bf16.gmra.mxu0 %v3948
  %v4068 = vpop.f32.mrf.mxu0
  %v4069 = vadd.f32 %v3896, %v4068
  %v4070 = vpop.f32.mrf.mxu0
  %v4071 = vadd.f32 %v3896, %v4070
  %4072 = vmatmul.bf16.gmra.mxu0 %v3951
  %v4073 = vpop.f32.mrf.mxu0
  %v4074 = vadd.f32 %v3896, %v4073
  %v4075 = vpop.f32.mrf.mxu0
  %v4076 = vadd.f32 %v3896, %v4075
  %4077 = vmatmul.bf16.gmra.mxu0 %v3954
  %v4078 = vpop.f32.mrf.mxu0
  %v4079 = vadd.f32 %v3896, %v4078
  %v4080 = vpop.f32.mrf.mxu0
  %v4081 = vadd.f32 %v3896, %v4080
  %4082 = vmatmul.bf16.gmra.mxu0 %v3957
  %v4083 = vpop.f32.mrf.mxu0
  %v4084 = vadd.f32 %v3896, %v4083
  %v4085 = vpop.f32.mrf.mxu0
  %v4086 = vadd.f32 %v3896, %v4085
  %4087 = vmatmul.bf16.gmra.mxu0 %v3960
  %v4088 = vpop.f32.mrf.mxu0
  %v4089 = vadd.f32 %v3896, %v4088
  %v4090 = vpop.f32.mrf.mxu0
  %v4091 = vadd.f32 %v3896, %v4090
  %4092 = vmatmul.bf16.gmra.mxu0 %v3963
  %v4093 = vpop.f32.mrf.mxu0
  %v4094 = vadd.f32 %v3896, %v4093
  %v4095 = vpop.f32.mrf.mxu0
  %v4096 = vadd.f32 %v3896, %v4095
  %4097 = vmatmul.bf16.gmra.mxu0 %v3966
  %v4098 = vpop.f32.mrf.mxu0
  %v4099 = vadd.f32 %v3896, %v4098
  %v4100 = vpop.f32.mrf.mxu0
  %v4101 = vadd.f32 %v3896, %v4100
  %4102 = vmatmul.bf16.gmra.mxu0 %v3969
  %v4103 = vpop.f32.mrf.mxu0
  %v4104 = vadd.f32 %v3896, %v4103
  %v4105 = vpop.f32.mrf.mxu0
  %v4106 = vadd.f32 %v3896, %v4105
  %4107 = vmatmul.bf16.gmra.mxu0 %v3972
  %v4108 = vpop.f32.mrf.mxu0
  %v4109 = vadd.f32 %v3896, %v4108
  %v4110 = vpop.f32.mrf.mxu0
  %v4111 = vadd.f32 %v3896, %v4110
  %4112 = vmatmul.bf16.gmra.mxu0 %v3975
  %v4113 = vpop.f32.mrf.mxu0
  %v4114 = vadd.f32 %v3896, %v4113
  %v4115 = vpop.f32.mrf.mxu0
  %v4116 = vadd.f32 %v3896, %v4115
  %4117 = vmatmul.bf16.gmra.mxu0 %v3978
  %v4118 = vpop.f32.mrf.mxu0
  %v4119 = vadd.f32 %v3896, %v4118
  %v4120 = vpop.f32.mrf.mxu0
  %v4121 = vadd.f32 %v3896, %v4120
  %4122 = vmatmul.bf16.gmra.mxu0 %v3981
  %v4123 = vpop.f32.mrf.mxu0
  %v4124 = vadd.f32 %v3896, %v4123
  %v4125 = vpop.f32.mrf.mxu0
  %v4126 = vadd.f32 %v3896, %v4125
  %4127 = vmatmul.bf16.gmra.mxu0 %v3984
  %v4128 = vpop.f32.mrf.mxu0
  %v4129 = vadd.f32 %v3896, %v4128
  %v4130 = vpop.f32.mrf.mxu0
  %v4131 = vadd.f32 %v3896, %v4130
  %4132 = vmatmul.bf16.gmra.mxu0 %v3987
  %v4133 = vpop.f32.mrf.mxu0
  %v4134 = vadd.f32 %v3896, %v4133
  %v4135 = vpop.f32.mrf.mxu0
  %v4136 = vadd.f32 %v3896, %v4135
  %4137 = vmatmul.bf16.gmra.mxu0 %v3990
  %v4138 = vpop.f32.mrf.mxu0
  %v4139 = vadd.f32 %v3896, %v4138
  %v4140 = vpop.f32.mrf.mxu0
  %v4141 = vadd.f32 %v3896, %v4140
  %4142 = vmatmul.bf16.gmra.mxu0 %v3993
  %v4143 = vpop.f32.mrf.mxu0
  %v4144 = vadd.f32 %v3896, %v4143
  %v4145 = vpop.f32.mrf.mxu0
  %v4146 = vadd.f32 %v3896, %v4145
  %4147 = vmatmul.bf16.gmra.mxu0 %v3996
  %v4148 = vpop.f32.mrf.mxu0
  %v4149 = vadd.f32 %v3896, %v4148
  %v4150 = vpop.f32.mrf.mxu0
  %v4151 = vadd.f32 %v3896, %v4150
  %4152 = vmatmul.bf16.gmra.mxu0 %v3999
  %v4153 = vpop.f32.mrf.mxu0
  %v4154 = vadd.f32 %v3896, %v4153
  %v4155 = vpop.f32.mrf.mxu0
  %v4156 = vadd.f32 %v3896, %v4155
  %4157 = vmatmul.bf16.gmra.mxu0 %v4002
  %v4158 = vpop.f32.mrf.mxu0
  %v4159 = vadd.f32 %v3896, %v4158
  %v4160 = vpop.f32.mrf.mxu0
  %v4161 = vadd.f32 %v3896, %v4160
  %4162 = vmatmul.bf16.gmra.mxu0 %v4005
  %v4163 = vpop.f32.mrf.mxu0
  %v4164 = vadd.f32 %v3896, %v4163
  %v4165 = vpop.f32.mrf.mxu0
  %v4166 = vadd.f32 %v3896, %v4165
  %4167 = vmatmul.bf16.gmra.mxu0 %v4008
  %v4168 = vpop.f32.mrf.mxu0
  %v4169 = vadd.f32 %v3896, %v4168
  %v4170 = vpop.f32.mrf.mxu0
  %v4171 = vadd.f32 %v3896, %v4170
  %4172 = vmatmul.bf16.gmra.mxu0 %v4011
  %v4173 = vpop.f32.mrf.mxu0
  %v4174 = vadd.f32 %v3896, %v4173
  %v4175 = vpop.f32.mrf.mxu0
  %v4176 = vadd.f32 %v3896, %v4175
  %4177 = vmatmul.bf16.gmra.mxu0 %v4014
  %v4178 = vpop.f32.mrf.mxu0
  %v4179 = vadd.f32 %v3896, %v4178
  %v4180 = vpop.f32.mrf.mxu0
  %v4181 = vadd.f32 %v3896, %v4180
  %4182 = vmatmul.bf16.gmra.mxu0 %v4017
  %v4183 = vpop.f32.mrf.mxu0
  %v4184 = vadd.f32 %v3896, %v4183
  %v4185 = vpop.f32.mrf.mxu0
  %v4186 = vadd.f32 %v3896, %v4185
  %4187 = vdwg.mxu0
  %4188 = vst [vmem:[%s11] sm:$0xff] %v4029
  %4189 = vst [vmem:[%s11 + $0x8] sm:$0xff] %v4031
  %4190 = vst [vmem:[%s11 + $0x10] sm:$0xff] %v4034
  %4191 = vst [vmem:[%s11 + $0x18] sm:$0xff] %v4036
  %4192 = vst [vmem:[%s11 + $0x20] sm:$0xff] %v4039
  %4193 = vst [vmem:[%s11 + $0x28] sm:$0xff] %v4041
  %4194 = vst [vmem:[%s11 + $0x30] sm:$0xff] %v4044
  %4195 = vst [vmem:[%s11 + $0x38] sm:$0xff] %v4046
  %4196 = vst [vmem:[%s11 + $0x40] sm:$0xff] %v4049
  %4197 = vst [vmem:[%s11 + $0x48] sm:$0xff] %v4051
  %4198 = vst [vmem:[%s11 + $0x50] sm:$0xff] %v4054
  %4199 = vst [vmem:[%s11 + $0x58] sm:$0xff] %v4056
  %4200 = vst [vmem:[%s11 + $0x60] sm:$0xff] %v4059
  %4201 = vst [vmem:[%s11 + $0x68] sm:$0xff] %v4061
  %4202 = vst [vmem:[%s11 + $0x70] sm:$0xff] %v4064
  %4203 = vst [vmem:[%s11 + $0x78] sm:$0xff] %v4066
  %4204 = vst [vmem:[%s11 + $0x80] sm:$0xff] %v4069
  %4205 = vst [vmem:[%s11 + $0x88] sm:$0xff] %v4071
  %4206 = vst [vmem:[%s11 + $0x90] sm:$0xff] %v4074
  %4207 = vst [vmem:[%s11 + $0x98] sm:$0xff] %v4076
  %4208 = vst [vmem:[%s11 + $0xa0] sm:$0xff] %v4079
  %4209 = vst [vmem:[%s11 + $0xa8] sm:$0xff] %v4081
  %4210 = vst [vmem:[%s11 + $0xb0] sm:$0xff] %v4084
  %4211 = vst [vmem:[%s11 + $0xb8] sm:$0xff] %v4086
  %4212 = vst [vmem:[%s11 + $0xc0] sm:$0xff] %v4089
  %4213 = vst [vmem:[%s11 + $0xc8] sm:$0xff] %v4091
  %4214 = vst [vmem:[%s11 + $0xd0] sm:$0xff] %v4094
  %4215 = vst [vmem:[%s11 + $0xd8] sm:$0xff] %v4096
  %4216 = vst [vmem:[%s11 + $0xe0] sm:$0xff] %v4099
  %4217 = vst [vmem:[%s11 + $0xe8] sm:$0xff] %v4101
  %4218 = vst [vmem:[%s11 + $0xf0] sm:$0xff] %v4104
  %4219 = vst [vmem:[%s11 + $0xf8] sm:$0xff] %v4106
  %4220 = vst [vmem:[%s11 + $0x100] sm:$0xff] %v4109
  %4221 = vst [vmem:[%s11 + $0x108] sm:$0xff] %v4111
  %4222 = vst [vmem:[%s11 + $0x110] sm:$0xff] %v4114
  %4223 = vst [vmem:[%s11 + $0x118] sm:$0xff] %v4116
  %4224 = vst [vmem:[%s11 + $0x120] sm:$0xff] %v4119
  %4225 = vst [vmem:[%s11 + $0x128] sm:$0xff] %v4121
  %4226 = vst [vmem:[%s11 + $0x130] sm:$0xff] %v4124
  %4227 = vst [vmem:[%s11 + $0x138] sm:$0xff] %v4126
  %4228 = vst [vmem:[%s11 + $0x140] sm:$0xff] %v4129
  %4229 = vst [vmem:[%s11 + $0x148] sm:$0xff] %v4131
  %4230 = vst [vmem:[%s11 + $0x150] sm:$0xff] %v4134
  %4231 = vst [vmem:[%s11 + $0x158] sm:$0xff] %v4136
  %4232 = vst [vmem:[%s11 + $0x160] sm:$0xff] %v4139
  %4233 = vst [vmem:[%s11 + $0x168] sm:$0xff] %v4141
  %4234 = vst [vmem:[%s11 + $0x170] sm:$0xff] %v4144
  %4235 = vst [vmem:[%s11 + $0x178] sm:$0xff] %v4146
  %4236 = vst [vmem:[%s11 + $0x180] sm:$0xff] %v4149
  %4237 = vst [vmem:[%s11 + $0x188] sm:$0xff] %v4151
  %4238 = vst [vmem:[%s11 + $0x190] sm:$0xff] %v4154
  %4239 = vst [vmem:[%s11 + $0x198] sm:$0xff] %v4156
  %4240 = vst [vmem:[%s11 + $0x1a0] sm:$0xff] %v4159
  %4241 = vst [vmem:[%s11 + $0x1a8] sm:$0xff] %v4161
  %4242 = vst [vmem:[%s11 + $0x1b0] sm:$0xff] %v4164
  %4243 = vst [vmem:[%s11 + $0x1b8] sm:$0xff] %v4166
  %4244 = vst [vmem:[%s11 + $0x1c0] sm:$0xff] %v4169
  %4245 = vst [vmem:[%s11 + $0x1c8] sm:$0xff] %v4171
  %4246 = vst [vmem:[%s11 + $0x1d0] sm:$0xff] %v4174
  %4247 = vst [vmem:[%s11 + $0x1d8] sm:$0xff] %v4176
  %4248 = vst [vmem:[%s11 + $0x1e0] sm:$0xff] %v4179
  %4249 = vst [vmem:[%s11 + $0x1e8] sm:$0xff] %v4181
  %4250 = vst [vmem:[%s11 + $0x1f0] sm:$0xff] %v4184
  %4251 = vst [vmem:[%s11 + $0x1f8] sm:$0xff] %v4186
  // Predicated region
  $region46: #{mlp_forward.1} parent=0 // pred_check
    _
  $region47: #{mlp_forward.1} parent=0 // pred_check_branch
    %4253 = sbr.rel (0) target = $region49
  $region48: #{mlp_forward.1} parent=0 // pred_region
    _
  $region49: #{mlp_forward.1} parent=0 // pred_fallthru
    _
  // Predicated region
  $region50: #{mlp_forward.1} parent=0 // pred_check
    _
  $region51: #{mlp_forward.1} parent=0 // pred_check_branch
    %4255 = sbr.rel (0) target = $region53
  $region52: #{mlp_forward.1} parent=0 // pred_region
    _
  $region53: #{mlp_forward.1} parent=0 // pred_fallthru
    _

</llo_original>
